<compile_context>
chip_gen: v5e
topology: v5e:2x2
jax: 0.10.0
libtpu: 0.0.40
codegen_flags: <defaults>
</compile_context>

<pallas_src>
import jax
import jax.numpy as jnp
from jax.experimental import pallas as pl
from jax.experimental.pallas import tpu as pltpu

IN_DIM = 1536
HIDDEN = 768
BN_EPS = 1e-5


def encoder_kernel(x_ref, w_ref, gb_ref, o_ref):
    # x_ref:  (B, IN_DIM)   f32   (full activation each step — tiny, 48 KiB at B=8)
    # w_ref:  (IN_DIM, TN)  bf16  column tile of W^T, fed straight to the MXU
    # gb_ref: (2, TN)       f32   row 0 = gamma, row 1 = beta
    # o_ref:  (B, TN)       f32
    x = x_ref[...].astype(jnp.bfloat16)
    w = w_ref[...]  # already bf16: no in-kernel upcast, MXU accumulates in f32

    # Linear (bias omitted — cancelled exactly by the BN batch-mean subtraction).
    y = jnp.dot(x, w, preferred_element_type=jnp.float32)  # (B, TN) f32

    # BatchNorm1d, training-mode forward: per-feature batch mean / biased variance,
    # then affine — matches PyTorch nn.BatchNorm1d(track stats irrelevant for fwd).
    inv_b = 1.0 / y.shape[0]
    mean = jnp.sum(y, axis=0, keepdims=True) * inv_b          # (1, TN)
    centered = y - mean
    var = jnp.sum(centered * centered, axis=0, keepdims=True) * inv_b
    scale = gb_ref[0:1, :] * jax.lax.rsqrt(var + BN_EPS)      # gamma folded into 1/std
    y_bn = centered * scale + gb_ref[1:2, :]

    # ReLU
    o_ref[...] = jnp.maximum(y_bn, 0.0).astype(o_ref.dtype)


def _default_tn(f_out):
    """Full-width single step on 1-TC chips; split across both TCs on v7x."""
    try:
        kind = jax.devices()[0].device_kind.lower()
    except Exception:
        kind = ""
    if "v7" in kind and (f_out // 2) % 128 == 0:
        return f_out // 2  # grid=(2,), "parallel" -> one column half per TensorCore
    return f_out           # grid=(1,): no per-step overhead, 768-lane-dense store


def text_encoder_forward(x, w_t_bf16, gamma_beta, *, tn=None):
    """x: (B, IN_DIM) f32; w_t_bf16: (IN_DIM, HIDDEN) bf16 = W^T (cast ONCE at init);
    gamma_beta: (2, HIDDEN) f32 packed [gamma; beta].

    The Linear bias is not an input: under training-mode BatchNorm it is a no-op.
    """
    B, F_in = x.shape
    F_out = w_t_bf16.shape[1]
    assert F_in == IN_DIM
    assert B > 1, "training-mode BatchNorm1d needs batch > 1"
    assert w_t_bf16.dtype == jnp.bfloat16, "pass the weight pre-cast to bf16 (once, at init)"
    if tn is None:
        tn = _default_tn(F_out)
    assert F_out % tn == 0 and tn % 128 == 0

    grid = (F_out // tn,)
    bytes_accessed = (x.size * 4            # activations in (f32)
                      + w_t_bf16.size * 2   # weight in (bf16) — the dominant term
                      + gamma_beta.size * 4
                      + B * F_out * 4)      # output (f32)
    return pl.pallas_call(
        encoder_kernel,
        out_shape=jax.ShapeDtypeStruct((B, F_out), jnp.float32),
        grid=grid,
        in_specs=[
            pl.BlockSpec((B, F_in), lambda j: (0, 0)),    # full x every step (tiny)
            pl.BlockSpec((F_in, tn), lambda j: (0, j)),   # bf16 column tile of W^T
            pl.BlockSpec((2, tn), lambda j: (0, j)),      # packed gamma/beta tile
        ],
        out_specs=pl.BlockSpec((B, tn), lambda j: (0, j)),
        compiler_params=pltpu.CompilerParams(
            dimension_semantics=("parallel",),
        ),
        cost_estimate=pl.CostEstimate(
            flops=2 * B * F_in * F_out,
            bytes_accessed=bytes_accessed,
            transcendentals=0,
        ),
    )(x, w_t_bf16, gamma_beta)


def reference_forward(x, w_t, b, gamma, beta):
    # Full nn.Linear + BatchNorm1d(train) + ReLU semantics. The matmul uses the same
    # bf16 operand precision as the kernel so the comparison is tight; the bias is
    # kept here — BN cancels it up to fp rounding.
    y = jnp.dot(x.astype(jnp.bfloat16), w_t.astype(jnp.bfloat16),
                preferred_element_type=jnp.float32) + b[None, :]
    mean = jnp.mean(y, axis=0, keepdims=True)
    var = jnp.mean((y - mean) ** 2, axis=0, keepdims=True)
    y_hat = (y - mean) * jax.lax.rsqrt(var + BN_EPS)
    return jnp.maximum(y_hat * gamma[None, :] + beta[None, :], 0.0)


if __name__ == "__main__":
    key = jax.random.PRNGKey(0)
    kx, kw, kb, kg, kbe = jax.random.split(key, 5)

    B = 8  # training-mode BatchNorm1d needs B > 1; B=8 matches the (8,128) f32 tile
    x = jax.random.normal(kx, (B, IN_DIM), dtype=jnp.float32)

    # Deterministic parameter init (PyTorch-Linear-like uniform bounds).
    bound = 1.0 / (IN_DIM ** 0.5)
    w_t = jax.random.uniform(kw, (IN_DIM, HIDDEN), minval=-bound, maxval=bound,
                             dtype=jnp.float32)                     # W^T
    b = jax.random.uniform(kb, (HIDDEN,), minval=-bound, maxval=bound,
                           dtype=jnp.float32)
    gamma = jnp.ones((HIDDEN,), jnp.float32) + 0.01 * jax.random.normal(kg, (HIDDEN,))
    beta = 0.01 * jax.random.normal(kbe, (HIDDEN,), dtype=jnp.float32)

    # One-time (init-time) parameter preparation — OUTSIDE the per-call hot path.
    w_t_bf16 = jax.block_until_ready(w_t.astype(jnp.bfloat16))
    gamma_beta = jax.block_until_ready(
        jnp.stack([gamma, beta]).astype(jnp.float32))               # (2, HIDDEN)

    out = text_encoder_forward(x, w_t_bf16, gamma_beta)
    out = jax.block_until_ready(out)

    ref = reference_forward(x, w_t, b, gamma, beta)
    assert out.shape == (B, HIDDEN)
    assert jnp.allclose(out, ref, atol=2e-3, rtol=2e-3), "mismatch vs reference"

    print("KERNEL_OK")
</pallas_src>

<mosaic_0001>
module attributes {stable_mosaic.version = 11 : i64} {
  func.func @encoder_kernel(%arg0: i32, %arg1: memref<8x1536xf32, #tpu.memory_space<vmem>>, %arg2: memref<1536x768xbf16, #tpu.memory_space<vmem>>, %arg3: memref<2x768xf32, #tpu.memory_space<vmem>>, %arg4: memref<8x768xf32, #tpu.memory_space<vmem>>) attributes {dimension_semantics = [#tpu.dimension_semantics<parallel>], iteration_bounds = array<i64: 1>, scalar_prefetch = 0 : i64, scratch_operands = 0 : i64, tpu.core_type = #tpu.core_type<tc>, window_params = [{pipeline_mode = #tpu.pipeline_mode<synchronous>, transform_indices = @transform_0, window_bounds = array<i64: 8, 1536>}, {transform_indices = @transform_1, window_bounds = array<i64: 1536, 768>}, {transform_indices = @transform_2, window_bounds = array<i64: 2, 768>}, {transform_indices = @transform_3, window_bounds = array<i64: 8, 768>}]} {
    %c0 = arith.constant 0 : index
    %c0_0 = arith.constant 0 : index
    %0 = vector.load %arg1[%c0, %c0_0] : memref<8x1536xf32, #tpu.memory_space<vmem>>, vector<8x1536xf32>
    %1 = arith.truncf %0 : vector<8x1536xf32> to vector<8x1536xbf16>
    %c0_1 = arith.constant 0 : index
    %c0_2 = arith.constant 0 : index
    %2 = vector.load %arg2[%c0_1, %c0_2] : memref<1536x768xbf16, #tpu.memory_space<vmem>>, vector<1536x768xbf16>
    %cst = arith.constant dense<0.000000e+00> : vector<8x768xf32>
    %3 = tpu.matmul %1, %2, %cst {dimension_numbers = #tpu.dot_dimension_numbers<[1], [0], [0], [1], [0, 0, 1, 1], [], []>} : vector<8x1536xbf16>, vector<1536x768xbf16>, vector<8x768xf32> -> vector<8x768xf32>
    %cst_3 = arith.constant dense<0.000000e+00> : vector<768xf32>
    %4 = vector.multi_reduction <add>, %3, %cst_3 [0] : vector<8x768xf32> to vector<768xf32>
    %5 = vector.shape_cast %4 : vector<768xf32> to vector<1x768xf32>
    %cst_4 = arith.constant 1.250000e-01 : f32
    %6 = vector.broadcast %cst_4 : f32 to vector<1x768xf32>
    %7 = arith.mulf %5, %6 : vector<1x768xf32>
    %8 = vector.broadcast %7 : vector<1x768xf32> to vector<8x768xf32>
    %9 = arith.subf %3, %8 : vector<8x768xf32>
    %10 = arith.mulf %9, %9 : vector<8x768xf32>
    %cst_5 = arith.constant dense<0.000000e+00> : vector<768xf32>
    %11 = vector.multi_reduction <add>, %10, %cst_5 [0] : vector<8x768xf32> to vector<768xf32>
    %12 = vector.shape_cast %11 : vector<768xf32> to vector<1x768xf32>
    %cst_6 = arith.constant 1.250000e-01 : f32
    %13 = vector.broadcast %cst_6 : f32 to vector<1x768xf32>
    %14 = arith.mulf %12, %13 : vector<1x768xf32>
    %c0_7 = arith.constant 0 : index
    %c0_8 = arith.constant 0 : index
    %15 = vector.load %arg3[%c0_7, %c0_8] : memref<2x768xf32, #tpu.memory_space<vmem>>, vector<1x768xf32>
    %cst_9 = arith.constant 9.99999974E-6 : f32
    %16 = vector.broadcast %cst_9 : f32 to vector<1x768xf32>
    %17 = arith.addf %14, %16 : vector<1x768xf32>
    %18 = math.rsqrt %17 : vector<1x768xf32>
    %19 = arith.mulf %15, %18 : vector<1x768xf32>
    %20 = vector.broadcast %19 : vector<1x768xf32> to vector<8x768xf32>
    %21 = arith.mulf %9, %20 : vector<8x768xf32>
    %c1 = arith.constant 1 : index
    %c0_10 = arith.constant 0 : index
    %22 = vector.load %arg3[%c1, %c0_10] : memref<2x768xf32, #tpu.memory_space<vmem>>, vector<1x768xf32>
    %23 = vector.broadcast %22 : vector<1x768xf32> to vector<8x768xf32>
    %24 = arith.addf %21, %23 : vector<8x768xf32>
    %cst_11 = arith.constant 0.000000e+00 : f32
    %25 = vector.broadcast %cst_11 : f32 to vector<8x768xf32>
    %26 = arith.maximumf %24, %25 : vector<8x768xf32>
    %c0_12 = arith.constant 0 : index
    %c0_13 = arith.constant 0 : index
    %27 = vector.load %arg4[%c0_12, %c0_13] : memref<8x768xf32, #tpu.memory_space<vmem>>, vector<8x768xf32>
    tpu.vector_store %arg4[%c0_12, %c0_13], %26 {strides = array<i32>} : memref<8x768xf32, #tpu.memory_space<vmem>>, vector<8x768xf32>,
    return
  }
  func.func @transform_0(%arg0: i32) -> (i32, i32) {
    %c0_i32 = arith.constant 0 : i32
    %c0_i32_0 = arith.constant 0 : i32
    %c0_i32_1 = arith.constant 0 : i32
    return %c0_i32, %c0_i32_0 : i32, i32
  }
  func.func @transform_1(%arg0: i32) -> (i32, i32) {
    %c0_i32 = arith.constant 0 : i32
    %c0_i32_0 = arith.constant 0 : i32
    return %c0_i32, %arg0 : i32, i32
  }
  func.func @transform_2(%arg0: i32) -> (i32, i32) {
    %c0_i32 = arith.constant 0 : i32
    %c0_i32_0 = arith.constant 0 : i32
    return %c0_i32, %arg0 : i32, i32
  }
  func.func @transform_3(%arg0: i32) -> (i32, i32) {
    %c0_i32 = arith.constant 0 : i32
    %c0_i32_0 = arith.constant 0 : i32
    return %c0_i32, %arg0 : i32, i32
  }
}

</mosaic_0001>

<llo_original>
// kernel: tpu_custom_call.1
$region0: #{tpu_custom_call.1}
  #allocation0 [shape = 'u32[]', space=smem, size = 0x4, offset = 0x4, fixed_abs, tag = 'smem constant byte address 0x4 - core index']
  #allocation1 [shape = 'u32[72,128]{1,0:T(1,128)}', space=vmem, size = 0x9000, scoped, tag = 'internal scratch']
  %s0 = inlined_call_operand.hbm [shape: f32[8,1536], index: 0, kind: input, shape index: {}]
  %s1 = inlined_call_operand.hbm [shape: bf16[1536,768], index: 1, kind: input, shape index: {}]
  %s2 = inlined_call_operand.hbm [shape: f32[2,768], index: 2, kind: input, shape index: {}]
  %s3 = inlined_call_operand.hbm [shape: f32[8,768], index: 3, kind: output, shape index: {}]
  %s4 = sld [smem:[#allocation0]]
  $region34: #{tpu_custom_call.1} parent=0
    _
  %s6 = ssub.s32 1, %s4
  %s7 = scalar_select 0, %s6, %s4
  $region1: #{tpu_custom_call.1} parent=0
    #allocation2 [shape = 'u8[49152]{0}', space=vmem, size = 0xc000, scoped, tag = 'input window, operand 0, single buffered']
    #allocation3 [shape = 's32[1]{0}', space=sflag, size = 0x4, scoped, tag = 'scoped memory for tpu_custom_call.1']
    #allocation4 [shape = 's32[1]{0}', space=sflag, size = 0x4, scoped, tag = 'scoped memory for tpu_custom_call.1']
    #allocation5 [shape = 'u8[2359296]{0}', space=vmem, size = 0x240000, scoped, tag = 'input window, operand 1, single buffered']
    #allocation6 [shape = 's32[1]{0}', space=sflag, size = 0x4, scoped, tag = 'scoped memory for tpu_custom_call.1']
    #allocation7 [shape = 'u8[6144]{0}', space=vmem, size = 0x1800, scoped, tag = 'input window, operand 2, single buffered']
    #allocation8 [shape = 'u8[24576]{0}', space=vmem, size = 0x6000, scoped, tag = 'output window, operand 0, single buffered']
    %8 = vsyncpa [#allocation3], 0
    %9 = vsyncpa [#allocation6], 0
    %10 = vsyncpa [#allocation4], 0
    // Predicated region
    $region2: #{tpu_custom_call.1} parent=1 // pred_check
      _
    $region3: #{tpu_custom_call.1} parent=1 // pred_check_branch
      %12 = sbr.rel (0) target = $region5
    $region4: #{tpu_custom_call.1} parent=1 // pred_region
      %14 = vsyncadd [#allocation3], 0
      %s16 = sshll.u32 %s0, 4
      %s17 = int_to_ptr.hbm [resolvable:$true] %s16
      %s18 = sshll.u32 [#allocation2], 4
      %s19 = int_to_ptr.vmem [resolvable:$true] %s18
      %21 = dma.hbm_to_vmem [thread:$0]  %s17, 1536, %s19, [#allocation3]
    $region5: #{tpu_custom_call.1} parent=1 // pred_fallthru
      _
    // Predicated region
    $region6: #{tpu_custom_call.1} parent=1 // pred_check
      _
    $region7: #{tpu_custom_call.1} parent=1 // pred_check_branch
      %23 = sbr.rel (0) target = $region9
    $region8: #{tpu_custom_call.1} parent=1 // pred_region
      %25 = vsyncadd [#allocation6], 0
      %s26 = sshll.u32 %s1, 4
      %s27 = int_to_ptr.hbm [resolvable:$true] %s26
      %s28 = sshll.u32 [#allocation5], 4
      %s29 = int_to_ptr.vmem [resolvable:$true] %s28
      %34 = dma.hbm_to_vmem [thread:$0]  %s27, 73728, %s29, [#allocation6], 384, 384, 24
    $region9: #{tpu_custom_call.1} parent=1 // pred_fallthru
      _
    // Predicated region
    $region10: #{tpu_custom_call.1} parent=1 // pred_check
      _
    $region11: #{tpu_custom_call.1} parent=1 // pred_check_branch
      %36 = sbr.rel (0) target = $region13
    $region12: #{tpu_custom_call.1} parent=1 // pred_region
      %38 = vsyncadd [#allocation6], 0
      %s40 = sshll.u32 %s2, 4
      %s41 = int_to_ptr.hbm [resolvable:$true] %s40
      %s42 = sshll.u32 [#allocation7], 4
      %s43 = int_to_ptr.vmem [resolvable:$true] %s42
      %45 = dma.hbm_to_vmem [thread:$0]  %s41, 192, %s43, [#allocation6]
    $region13: #{tpu_custom_call.1} parent=1 // pred_fallthru
      _
    // Predicated region
    $region14: #{tpu_custom_call.1} parent=1 // pred_check
      _
    $region15: #{tpu_custom_call.1} parent=1 // pred_check_branch
      %47 = sbr.rel (0) target = $region17
    $region16: #{tpu_custom_call.1} parent=1 // pred_region
      %49 = dma.done [#allocation3], 1536
    $region17: #{tpu_custom_call.1} parent=1 // pred_fallthru
      _
    // Predicated region
    $region18: #{tpu_custom_call.1} parent=1 // pred_check
      _
    $region19: #{tpu_custom_call.1} parent=1 // pred_check_branch
      %51 = sbr.rel (0) target = $region21
    $region20: #{tpu_custom_call.1} parent=1 // pred_region
      %53 = dma.done [#allocation6], 73728
    $region21: #{tpu_custom_call.1} parent=1 // pred_fallthru
      _
    // Predicated region
    $region22: #{tpu_custom_call.1} parent=1 // pred_check
      _
    $region23: #{tpu_custom_call.1} parent=1 // pred_check_branch
      %55 = sbr.rel (0) target = $region25
    $region24: #{tpu_custom_call.1} parent=1 // pred_region
      %57 = dma.done [#allocation6], 192
    $region25: #{tpu_custom_call.1} parent=1 // pred_fallthru
      _
    %v58 = vld [vmem:[#allocation2] sm:$0xff]
    %v59 = vld [vmem:[#allocation2 + $0x8] sm:$0xff]
    %v60 = vld [vmem:[#allocation2 + $0x10] sm:$0xff]
    %v61 = vld [vmem:[#allocation2 + $0x18] sm:$0xff]
    %v62 = vld [vmem:[#allocation2 + $0x20] sm:$0xff]
    %v63 = vld [vmem:[#allocation2 + $0x28] sm:$0xff]
    %v64 = vld [vmem:[#allocation2 + $0x30] sm:$0xff]
    %v65 = vld [vmem:[#allocation2 + $0x38] sm:$0xff]
    %v66 = vld [vmem:[#allocation2 + $0x40] sm:$0xff]
    %v67 = vld [vmem:[#allocation2 + $0x48] sm:$0xff]
    %v68 = vld [vmem:[#allocation2 + $0x50] sm:$0xff]
    %v69 = vld [vmem:[#allocation2 + $0x58] sm:$0xff]
    %v70 = vpack.c.bf16 %v58, %v58
    %v71 = vpack.c.bf16 %v59, %v59
    %v72 = vpack.c.bf16 %v60, %v60
    %v73 = vpack.c.bf16 %v61, %v61
    %v74 = vpack.c.bf16 %v62, %v62
    %v75 = vpack.c.bf16 %v63, %v63
    %v76 = vpack.c.bf16 %v64, %v64
    %v77 = vpack.c.bf16 %v65, %v65
    %v78 = vpack.c.bf16 %v66, %v66
    %v79 = vpack.c.bf16 %v67, %v67
    %v80 = vpack.c.bf16 %v68, %v68
    %v81 = vpack.c.bf16 %v69, %v69
    %v82 = vld [vmem:[#allocation5] sm:$0xff]
    %v83 = vld [vmem:[#allocation5 + $0x8] sm:$0xff]
    %v84 = vld [vmem:[#allocation5 + $0x10] sm:$0xff]
    %v85 = vld [vmem:[#allocation5 + $0x18] sm:$0xff]
    %v86 = vld [vmem:[#allocation5 + $0x20] sm:$0xff]
    %v87 = vld [vmem:[#allocation5 + $0x28] sm:$0xff]
    %v88 = vld [vmem:[#allocation5 + $0x30] sm:$0xff]
    %v89 = vld [vmem:[#allocation5 + $0x38] sm:$0xff]
    %v90 = vld [vmem:[#allocation5 + $0x40] sm:$0xff]
    %v91 = vld [vmem:[#allocation5 + $0x48] sm:$0xff]
    %v92 = vld [vmem:[#allocation5 + $0x50] sm:$0xff]
    %v93 = vld [vmem:[#allocation5 + $0x58] sm:$0xff]
    %v94 = vld [vmem:[#allocation5 + $0x60] sm:$0xff]
    %v95 = vld [vmem:[#allocation5 + $0x68] sm:$0xff]
    %v96 = vld [vmem:[#allocation5 + $0x70] sm:$0xff]
    %v97 = vld [vmem:[#allocation5 + $0x78] sm:$0xff]
    %v98 = vld [vmem:[#allocation5 + $0x80] sm:$0xff]
    %v99 = vld [vmem:[#allocation5 + $0x88] sm:$0xff]
    %v100 = vld [vmem:[#allocation5 + $0x90] sm:$0xff]
    %v101 = vld [vmem:[#allocation5 + $0x98] sm:$0xff]
    %v102 = vld [vmem:[#allocation5 + $0xa0] sm:$0xff]
    %v103 = vld [vmem:[#allocation5 + $0xa8] sm:$0xff]
    %v104 = vld [vmem:[#allocation5 + $0xb0] sm:$0xff]
    %v105 = vld [vmem:[#allocation5 + $0xb8] sm:$0xff]
    %v106 = vld [vmem:[#allocation5 + $0xc0] sm:$0xff]
    %v107 = vld [vmem:[#allocation5 + $0xc8] sm:$0xff]
    %v108 = vld [vmem:[#allocation5 + $0xd0] sm:$0xff]
    %v109 = vld [vmem:[#allocation5 + $0xd8] sm:$0xff]
    %v110 = vld [vmem:[#allocation5 + $0xe0] sm:$0xff]
    %v111 = vld [vmem:[#allocation5 + $0xe8] sm:$0xff]
    %v112 = vld [vmem:[#allocation5 + $0xf0] sm:$0xff]
    %v113 = vld [vmem:[#allocation5 + $0xf8] sm:$0xff]
    %v114 = vld [vmem:[#allocation5 + $0x100] sm:$0xff]
    %v115 = vld [vmem:[#allocation5 + $0x108] sm:$0xff]
    %v116 = vld [vmem:[#allocation5 + $0x110] sm:$0xff]
    %v117 = vld [vmem:[#allocation5 + $0x118] sm:$0xff]
    %v118 = vld [vmem:[#allocation5 + $0x120] sm:$0xff]
    %v119 = vld [vmem:[#allocation5 + $0x128] sm:$0xff]
    %v120 = vld [vmem:[#allocation5 + $0x130] sm:$0xff]
    %v121 = vld [vmem:[#allocation5 + $0x138] sm:$0xff]
    %v122 = vld [vmem:[#allocation5 + $0x140] sm:$0xff]
    %v123 = vld [vmem:[#allocation5 + $0x148] sm:$0xff]
    %v124 = vld [vmem:[#allocation5 + $0x150] sm:$0xff]
    %v125 = vld [vmem:[#allocation5 + $0x158] sm:$0xff]
    %v126 = vld [vmem:[#allocation5 + $0x160] sm:$0xff]
    %v127 = vld [vmem:[#allocation5 + $0x168] sm:$0xff]
    %v128 = vld [vmem:[#allocation5 + $0x170] sm:$0xff]
    %v129 = vld [vmem:[#allocation5 + $0x178] sm:$0xff]
    %v130 = vld [vmem:[#allocation5 + $0x180] sm:$0xff]
    %v131 = vld [vmem:[#allocation5 + $0x188] sm:$0xff]
    %v132 = vld [vmem:[#allocation5 + $0x190] sm:$0xff]
    %v133 = vld [vmem:[#allocation5 + $0x198] sm:$0xff]
    %v134 = vld [vmem:[#allocation5 + $0x1a0] sm:$0xff]
    %v135 = vld [vmem:[#allocation5 + $0x1a8] sm:$0xff]
    %v136 = vld [vmem:[#allocation5 + $0x1b0] sm:$0xff]
    %v137 = vld [vmem:[#allocation5 + $0x1b8] sm:$0xff]
    %v138 = vld [vmem:[#allocation5 + $0x1c0] sm:$0xff]
    %v139 = vld [vmem:[#allocation5 + $0x1c8] sm:$0xff]
    %v140 = vld [vmem:[#allocation5 + $0x1d0] sm:$0xff]
    %v141 = vld [vmem:[#allocation5 + $0x1d8] sm:$0xff]
    %v142 = vld [vmem:[#allocation5 + $0x1e0] sm:$0xff]
    %v143 = vld [vmem:[#allocation5 + $0x1e8] sm:$0xff]
    %v144 = vld [vmem:[#allocation5 + $0x1f0] sm:$0xff]
    %v145 = vld [vmem:[#allocation5 + $0x1f8] sm:$0xff]
    %v146 = vld [vmem:[#allocation5 + $0x200] sm:$0xff]
    %v147 = vld [vmem:[#allocation5 + $0x208] sm:$0xff]
    %v148 = vld [vmem:[#allocation5 + $0x210] sm:$0xff]
    %v149 = vld [vmem:[#allocation5 + $0x218] sm:$0xff]
    %v150 = vld [vmem:[#allocation5 + $0x220] sm:$0xff]
    %v151 = vld [vmem:[#allocation5 + $0x228] sm:$0xff]
    %v152 = vld [vmem:[#allocation5 + $0x230] sm:$0xff]
    %v153 = vld [vmem:[#allocation5 + $0x238] sm:$0xff]
    %v154 = vld [vmem:[#allocation5 + $0x240] sm:$0xff]
    %v155 = vld [vmem:[#allocation5 + $0x248] sm:$0xff]
    %v156 = vld [vmem:[#allocation5 + $0x250] sm:$0xff]
    %v157 = vld [vmem:[#allocation5 + $0x258] sm:$0xff]
    %v158 = vld [vmem:[#allocation5 + $0x260] sm:$0xff]
    %v159 = vld [vmem:[#allocation5 + $0x268] sm:$0xff]
    %v160 = vld [vmem:[#allocation5 + $0x270] sm:$0xff]
    %v161 = vld [vmem:[#allocation5 + $0x278] sm:$0xff]
    %v162 = vld [vmem:[#allocation5 + $0x280] sm:$0xff]
    %v163 = vld [vmem:[#allocation5 + $0x288] sm:$0xff]
    %v164 = vld [vmem:[#allocation5 + $0x290] sm:$0xff]
    %v165 = vld [vmem:[#allocation5 + $0x298] sm:$0xff]
    %v166 = vld [vmem:[#allocation5 + $0x2a0] sm:$0xff]
    %v167 = vld [vmem:[#allocation5 + $0x2a8] sm:$0xff]
    %v168 = vld [vmem:[#allocation5 + $0x2b0] sm:$0xff]
    %v169 = vld [vmem:[#allocation5 + $0x2b8] sm:$0xff]
    %v170 = vld [vmem:[#allocation5 + $0x2c0] sm:$0xff]
    %v171 = vld [vmem:[#allocation5 + $0x2c8] sm:$0xff]
    %v172 = vld [vmem:[#allocation5 + $0x2d0] sm:$0xff]
    %v173 = vld [vmem:[#allocation5 + $0x2d8] sm:$0xff]
    %v174 = vld [vmem:[#allocation5 + $0x2e0] sm:$0xff]
    %v175 = vld [vmem:[#allocation5 + $0x2e8] sm:$0xff]
    %v176 = vld [vmem:[#allocation5 + $0x2f0] sm:$0xff]
    %v177 = vld [vmem:[#allocation5 + $0x2f8] sm:$0xff]
    %v178 = vld [vmem:[#allocation5 + $0x300] sm:$0xff]
    %v179 = vld [vmem:[#allocation5 + $0x308] sm:$0xff]
    %v180 = vld [vmem:[#allocation5 + $0x310] sm:$0xff]
    %v181 = vld [vmem:[#allocation5 + $0x318] sm:$0xff]
    %v182 = vld [vmem:[#allocation5 + $0x320] sm:$0xff]
    %v183 = vld [vmem:[#allocation5 + $0x328] sm:$0xff]
    %v184 = vld [vmem:[#allocation5 + $0x330] sm:$0xff]
    %v185 = vld [vmem:[#allocation5 + $0x338] sm:$0xff]
    %v186 = vld [vmem:[#allocation5 + $0x340] sm:$0xff]
    %v187 = vld [vmem:[#allocation5 + $0x348] sm:$0xff]
    %v188 = vld [vmem:[#allocation5 + $0x350] sm:$0xff]
    %v189 = vld [vmem:[#allocation5 + $0x358] sm:$0xff]
    %v190 = vld [vmem:[#allocation5 + $0x360] sm:$0xff]
    %v191 = vld [vmem:[#allocation5 + $0x368] sm:$0xff]
    %v192 = vld [vmem:[#allocation5 + $0x370] sm:$0xff]
    %v193 = vld [vmem:[#allocation5 + $0x378] sm:$0xff]
    %v194 = vld [vmem:[#allocation5 + $0x380] sm:$0xff]
    %v195 = vld [vmem:[#allocation5 + $0x388] sm:$0xff]
    %v196 = vld [vmem:[#allocation5 + $0x390] sm:$0xff]
    %v197 = vld [vmem:[#allocation5 + $0x398] sm:$0xff]
    %v198 = vld [vmem:[#allocation5 + $0x3a0] sm:$0xff]
    %v199 = vld [vmem:[#allocation5 + $0x3a8] sm:$0xff]
    %v200 = vld [vmem:[#allocation5 + $0x3b0] sm:$0xff]
    %v201 = vld [vmem:[#allocation5 + $0x3b8] sm:$0xff]
    %v202 = vld [vmem:[#allocation5 + $0x3c0] sm:$0xff]
    %v203 = vld [vmem:[#allocation5 + $0x3c8] sm:$0xff]
    %v204 = vld [vmem:[#allocation5 + $0x3d0] sm:$0xff]
    %v205 = vld [vmem:[#allocation5 + $0x3d8] sm:$0xff]
    %v206 = vld [vmem:[#allocation5 + $0x3e0] sm:$0xff]
    %v207 = vld [vmem:[#allocation5 + $0x3e8] sm:$0xff]
    %v208 = vld [vmem:[#allocation5 + $0x3f0] sm:$0xff]
    %v209 = vld [vmem:[#allocation5 + $0x3f8] sm:$0xff]
    %v210 = vld [vmem:[#allocation5 + $0x400] sm:$0xff]
    %v211 = vld [vmem:[#allocation5 + $0x408] sm:$0xff]
    %v212 = vld [vmem:[#allocation5 + $0x410] sm:$0xff]
    %v213 = vld [vmem:[#allocation5 + $0x418] sm:$0xff]
    %v214 = vld [vmem:[#allocation5 + $0x420] sm:$0xff]
    %v215 = vld [vmem:[#allocation5 + $0x428] sm:$0xff]
    %v216 = vld [vmem:[#allocation5 + $0x430] sm:$0xff]
    %v217 = vld [vmem:[#allocation5 + $0x438] sm:$0xff]
    %v218 = vld [vmem:[#allocation5 + $0x440] sm:$0xff]
    %v219 = vld [vmem:[#allocation5 + $0x448] sm:$0xff]
    %v220 = vld [vmem:[#allocation5 + $0x450] sm:$0xff]
    %v221 = vld [vmem:[#allocation5 + $0x458] sm:$0xff]
    %v222 = vld [vmem:[#allocation5 + $0x460] sm:$0xff]
    %v223 = vld [vmem:[#allocation5 + $0x468] sm:$0xff]
    %v224 = vld [vmem:[#allocation5 + $0x470] sm:$0xff]
    %v225 = vld [vmem:[#allocation5 + $0x478] sm:$0xff]
    %v226 = vld [vmem:[#allocation5 + $0x480] sm:$0xff]
    %v227 = vld [vmem:[#allocation5 + $0x488] sm:$0xff]
    %v228 = vld [vmem:[#allocation5 + $0x490] sm:$0xff]
    %v229 = vld [vmem:[#allocation5 + $0x498] sm:$0xff]
    %v230 = vld [vmem:[#allocation5 + $0x4a0] sm:$0xff]
    %v231 = vld [vmem:[#allocation5 + $0x4a8] sm:$0xff]
    %v232 = vld [vmem:[#allocation5 + $0x4b0] sm:$0xff]
    %v233 = vld [vmem:[#allocation5 + $0x4b8] sm:$0xff]
    %v234 = vld [vmem:[#allocation5 + $0x4c0] sm:$0xff]
    %v235 = vld [vmem:[#allocation5 + $0x4c8] sm:$0xff]
    %v236 = vld [vmem:[#allocation5 + $0x4d0] sm:$0xff]
    %v237 = vld [vmem:[#allocation5 + $0x4d8] sm:$0xff]
    %v238 = vld [vmem:[#allocation5 + $0x4e0] sm:$0xff]
    %v239 = vld [vmem:[#allocation5 + $0x4e8] sm:$0xff]
    %v240 = vld [vmem:[#allocation5 + $0x4f0] sm:$0xff]
    %v241 = vld [vmem:[#allocation5 + $0x4f8] sm:$0xff]
    %v242 = vld [vmem:[#allocation5 + $0x500] sm:$0xff]
    %v243 = vld [vmem:[#allocation5 + $0x508] sm:$0xff]
    %v244 = vld [vmem:[#allocation5 + $0x510] sm:$0xff]
    %v245 = vld [vmem:[#allocation5 + $0x518] sm:$0xff]
    %v246 = vld [vmem:[#allocation5 + $0x520] sm:$0xff]
    %v247 = vld [vmem:[#allocation5 + $0x528] sm:$0xff]
    %v248 = vld [vmem:[#allocation5 + $0x530] sm:$0xff]
    %v249 = vld [vmem:[#allocation5 + $0x538] sm:$0xff]
    %v250 = vld [vmem:[#allocation5 + $0x540] sm:$0xff]
    %v251 = vld [vmem:[#allocation5 + $0x548] sm:$0xff]
    %v252 = vld [vmem:[#allocation5 + $0x550] sm:$0xff]
    %v253 = vld [vmem:[#allocation5 + $0x558] sm:$0xff]
    %v254 = vld [vmem:[#allocation5 + $0x560] sm:$0xff]
    %v255 = vld [vmem:[#allocation5 + $0x568] sm:$0xff]
    %v256 = vld [vmem:[#allocation5 + $0x570] sm:$0xff]
    %v257 = vld [vmem:[#allocation5 + $0x578] sm:$0xff]
    %v258 = vld [vmem:[#allocation5 + $0x580] sm:$0xff]
    %v259 = vld [vmem:[#allocation5 + $0x588] sm:$0xff]
    %v260 = vld [vmem:[#allocation5 + $0x590] sm:$0xff]
    %v261 = vld [vmem:[#allocation5 + $0x598] sm:$0xff]
    %v262 = vld [vmem:[#allocation5 + $0x5a0] sm:$0xff]
    %v263 = vld [vmem:[#allocation5 + $0x5a8] sm:$0xff]
    %v264 = vld [vmem:[#allocation5 + $0x5b0] sm:$0xff]
    %v265 = vld [vmem:[#allocation5 + $0x5b8] sm:$0xff]
    %v266 = vld [vmem:[#allocation5 + $0x5c0] sm:$0xff]
    %v267 = vld [vmem:[#allocation5 + $0x5c8] sm:$0xff]
    %v268 = vld [vmem:[#allocation5 + $0x5d0] sm:$0xff]
    %v269 = vld [vmem:[#allocation5 + $0x5d8] sm:$0xff]
    %v270 = vld [vmem:[#allocation5 + $0x5e0] sm:$0xff]
    %v271 = vld [vmem:[#allocation5 + $0x5e8] sm:$0xff]
    %v272 = vld [vmem:[#allocation5 + $0x5f0] sm:$0xff]
    %v273 = vld [vmem:[#allocation5 + $0x5f8] sm:$0xff]
    %v274 = vld [vmem:[#allocation5 + $0x600] sm:$0xff]
    %v275 = vld [vmem:[#allocation5 + $0x608] sm:$0xff]
    %v276 = vld [vmem:[#allocation5 + $0x610] sm:$0xff]
    %v277 = vld [vmem:[#allocation5 + $0x618] sm:$0xff]
    %v278 = vld [vmem:[#allocation5 + $0x620] sm:$0xff]
    %v279 = vld [vmem:[#allocation5 + $0x628] sm:$0xff]
    %v280 = vld [vmem:[#allocation5 + $0x630] sm:$0xff]
    %v281 = vld [vmem:[#allocation5 + $0x638] sm:$0xff]
    %v282 = vld [vmem:[#allocation5 + $0x640] sm:$0xff]
    %v283 = vld [vmem:[#allocation5 + $0x648] sm:$0xff]
    %v284 = vld [vmem:[#allocation5 + $0x650] sm:$0xff]
    %v285 = vld [vmem:[#allocation5 + $0x658] sm:$0xff]
    %v286 = vld [vmem:[#allocation5 + $0x660] sm:$0xff]
    %v287 = vld [vmem:[#allocation5 + $0x668] sm:$0xff]
    %v288 = vld [vmem:[#allocation5 + $0x670] sm:$0xff]
    %v289 = vld [vmem:[#allocation5 + $0x678] sm:$0xff]
    %v290 = vld [vmem:[#allocation5 + $0x680] sm:$0xff]
    %v291 = vld [vmem:[#allocation5 + $0x688] sm:$0xff]
    %v292 = vld [vmem:[#allocation5 + $0x690] sm:$0xff]
    %v293 = vld [vmem:[#allocation5 + $0x698] sm:$0xff]
    %v294 = vld [vmem:[#allocation5 + $0x6a0] sm:$0xff]
    %v295 = vld [vmem:[#allocation5 + $0x6a8] sm:$0xff]
    %v296 = vld [vmem:[#allocation5 + $0x6b0] sm:$0xff]
    %v297 = vld [vmem:[#allocation5 + $0x6b8] sm:$0xff]
    %v298 = vld [vmem:[#allocation5 + $0x6c0] sm:$0xff]
    %v299 = vld [vmem:[#allocation5 + $0x6c8] sm:$0xff]
    %v300 = vld [vmem:[#allocation5 + $0x6d0] sm:$0xff]
    %v301 = vld [vmem:[#allocation5 + $0x6d8] sm:$0xff]
    %v302 = vld [vmem:[#allocation5 + $0x6e0] sm:$0xff]
    %v303 = vld [vmem:[#allocation5 + $0x6e8] sm:$0xff]
    %v304 = vld [vmem:[#allocation5 + $0x6f0] sm:$0xff]
    %v305 = vld [vmem:[#allocation5 + $0x6f8] sm:$0xff]
    %v306 = vld [vmem:[#allocation5 + $0x700] sm:$0xff]
    %v307 = vld [vmem:[#allocation5 + $0x708] sm:$0xff]
    %v308 = vld [vmem:[#allocation5 + $0x710] sm:$0xff]
    %v309 = vld [vmem:[#allocation5 + $0x718] sm:$0xff]
    %v310 = vld [vmem:[#allocation5 + $0x720] sm:$0xff]
    %v311 = vld [vmem:[#allocation5 + $0x728] sm:$0xff]
    %v312 = vld [vmem:[#allocation5 + $0x730] sm:$0xff]
    %v313 = vld [vmem:[#allocation5 + $0x738] sm:$0xff]
    %v314 = vld [vmem:[#allocation5 + $0x740] sm:$0xff]
    %v315 = vld [vmem:[#allocation5 + $0x748] sm:$0xff]
    %v316 = vld [vmem:[#allocation5 + $0x750] sm:$0xff]
    %v317 = vld [vmem:[#allocation5 + $0x758] sm:$0xff]
    %v318 = vld [vmem:[#allocation5 + $0x760] sm:$0xff]
    %v319 = vld [vmem:[#allocation5 + $0x768] sm:$0xff]
    %v320 = vld [vmem:[#allocation5 + $0x770] sm:$0xff]
    %v321 = vld [vmem:[#allocation5 + $0x778] sm:$0xff]
    %v322 = vld [vmem:[#allocation5 + $0x780] sm:$0xff]
    %v323 = vld [vmem:[#allocation5 + $0x788] sm:$0xff]
    %v324 = vld [vmem:[#allocation5 + $0x790] sm:$0xff]
    %v325 = vld [vmem:[#allocation5 + $0x798] sm:$0xff]
    %v326 = vld [vmem:[#allocation5 + $0x7a0] sm:$0xff]
    %v327 = vld [vmem:[#allocation5 + $0x7a8] sm:$0xff]
    %v328 = vld [vmem:[#allocation5 + $0x7b0] sm:$0xff]
    %v329 = vld [vmem:[#allocation5 + $0x7b8] sm:$0xff]
    %v330 = vld [vmem:[#allocation5 + $0x7c0] sm:$0xff]
    %v331 = vld [vmem:[#allocation5 + $0x7c8] sm:$0xff]
    %v332 = vld [vmem:[#allocation5 + $0x7d0] sm:$0xff]
    %v333 = vld [vmem:[#allocation5 + $0x7d8] sm:$0xff]
    %v334 = vld [vmem:[#allocation5 + $0x7e0] sm:$0xff]
    %v335 = vld [vmem:[#allocation5 + $0x7e8] sm:$0xff]
    %v336 = vld [vmem:[#allocation5 + $0x7f0] sm:$0xff]
    %v337 = vld [vmem:[#allocation5 + $0x7f8] sm:$0xff]
    %v338 = vld [vmem:[#allocation5 + $0x800] sm:$0xff]
    %v339 = vld [vmem:[#allocation5 + $0x808] sm:$0xff]
    %v340 = vld [vmem:[#allocation5 + $0x810] sm:$0xff]
    %v341 = vld [vmem:[#allocation5 + $0x818] sm:$0xff]
    %v342 = vld [vmem:[#allocation5 + $0x820] sm:$0xff]
    %v343 = vld [vmem:[#allocation5 + $0x828] sm:$0xff]
    %v344 = vld [vmem:[#allocation5 + $0x830] sm:$0xff]
    %v345 = vld [vmem:[#allocation5 + $0x838] sm:$0xff]
    %v346 = vld [vmem:[#allocation5 + $0x840] sm:$0xff]
    %v347 = vld [vmem:[#allocation5 + $0x848] sm:$0xff]
    %v348 = vld [vmem:[#allocation5 + $0x850] sm:$0xff]
    %v349 = vld [vmem:[#allocation5 + $0x858] sm:$0xff]
    %v350 = vld [vmem:[#allocation5 + $0x860] sm:$0xff]
    %v351 = vld [vmem:[#allocation5 + $0x868] sm:$0xff]
    %v352 = vld [vmem:[#allocation5 + $0x870] sm:$0xff]
    %v353 = vld [vmem:[#allocation5 + $0x878] sm:$0xff]
    %v354 = vld [vmem:[#allocation5 + $0x880] sm:$0xff]
    %v355 = vld [vmem:[#allocation5 + $0x888] sm:$0xff]
    %v356 = vld [vmem:[#allocation5 + $0x890] sm:$0xff]
    %v357 = vld [vmem:[#allocation5 + $0x898] sm:$0xff]
    %v358 = vld [vmem:[#allocation5 + $0x8a0] sm:$0xff]
    %v359 = vld [vmem:[#allocation5 + $0x8a8] sm:$0xff]
    %v360 = vld [vmem:[#allocation5 + $0x8b0] sm:$0xff]
    %v361 = vld [vmem:[#allocation5 + $0x8b8] sm:$0xff]
    %v362 = vld [vmem:[#allocation5 + $0x8c0] sm:$0xff]
    %v363 = vld [vmem:[#allocation5 + $0x8c8] sm:$0xff]
    %v364 = vld [vmem:[#allocation5 + $0x8d0] sm:$0xff]
    %v365 = vld [vmem:[#allocation5 + $0x8d8] sm:$0xff]
    %v366 = vld [vmem:[#allocation5 + $0x8e0] sm:$0xff]
    %v367 = vld [vmem:[#allocation5 + $0x8e8] sm:$0xff]
    %v368 = vld [vmem:[#allocation5 + $0x8f0] sm:$0xff]
    %v369 = vld [vmem:[#allocation5 + $0x8f8] sm:$0xff]
    %v370 = vld [vmem:[#allocation5 + $0x900] sm:$0xff]
    %v371 = vld [vmem:[#allocation5 + $0x908] sm:$0xff]
    %v372 = vld [vmem:[#allocation5 + $0x910] sm:$0xff]
    %v373 = vld [vmem:[#allocation5 + $0x918] sm:$0xff]
    %v374 = vld [vmem:[#allocation5 + $0x920] sm:$0xff]
    %v375 = vld [vmem:[#allocation5 + $0x928] sm:$0xff]
    %v376 = vld [vmem:[#allocation5 + $0x930] sm:$0xff]
    %v377 = vld [vmem:[#allocation5 + $0x938] sm:$0xff]
    %v378 = vld [vmem:[#allocation5 + $0x940] sm:$0xff]
    %v379 = vld [vmem:[#allocation5 + $0x948] sm:$0xff]
    %v380 = vld [vmem:[#allocation5 + $0x950] sm:$0xff]
    %v381 = vld [vmem:[#allocation5 + $0x958] sm:$0xff]
    %v382 = vld [vmem:[#allocation5 + $0x960] sm:$0xff]
    %v383 = vld [vmem:[#allocation5 + $0x968] sm:$0xff]
    %v384 = vld [vmem:[#allocation5 + $0x970] sm:$0xff]
    %v385 = vld [vmem:[#allocation5 + $0x978] sm:$0xff]
    %v386 = vld [vmem:[#allocation5 + $0x980] sm:$0xff]
    %v387 = vld [vmem:[#allocation5 + $0x988] sm:$0xff]
    %v388 = vld [vmem:[#allocation5 + $0x990] sm:$0xff]
    %v389 = vld [vmem:[#allocation5 + $0x998] sm:$0xff]
    %v390 = vld [vmem:[#allocation5 + $0x9a0] sm:$0xff]
    %v391 = vld [vmem:[#allocation5 + $0x9a8] sm:$0xff]
    %v392 = vld [vmem:[#allocation5 + $0x9b0] sm:$0xff]
    %v393 = vld [vmem:[#allocation5 + $0x9b8] sm:$0xff]
    %v394 = vld [vmem:[#allocation5 + $0x9c0] sm:$0xff]
    %v395 = vld [vmem:[#allocation5 + $0x9c8] sm:$0xff]
    %v396 = vld [vmem:[#allocation5 + $0x9d0] sm:$0xff]
    %v397 = vld [vmem:[#allocation5 + $0x9d8] sm:$0xff]
    %v398 = vld [vmem:[#allocation5 + $0x9e0] sm:$0xff]
    %v399 = vld [vmem:[#allocation5 + $0x9e8] sm:$0xff]
    %v400 = vld [vmem:[#allocation5 + $0x9f0] sm:$0xff]
    %v401 = vld [vmem:[#allocation5 + $0x9f8] sm:$0xff]
    %v402 = vld [vmem:[#allocation5 + $0xa00] sm:$0xff]
    %v403 = vld [vmem:[#allocation5 + $0xa08] sm:$0xff]
    %v404 = vld [vmem:[#allocation5 + $0xa10] sm:$0xff]
    %v405 = vld [vmem:[#allocation5 + $0xa18] sm:$0xff]
    %v406 = vld [vmem:[#allocation5 + $0xa20] sm:$0xff]
    %v407 = vld [vmem:[#allocation5 + $0xa28] sm:$0xff]
    %v408 = vld [vmem:[#allocation5 + $0xa30] sm:$0xff]
    %v409 = vld [vmem:[#allocation5 + $0xa38] sm:$0xff]
    %v410 = vld [vmem:[#allocation5 + $0xa40] sm:$0xff]
    %v411 = vld [vmem:[#allocation5 + $0xa48] sm:$0xff]
    %v412 = vld [vmem:[#allocation5 + $0xa50] sm:$0xff]
    %v413 = vld [vmem:[#allocation5 + $0xa58] sm:$0xff]
    %v414 = vld [vmem:[#allocation5 + $0xa60] sm:$0xff]
    %v415 = vld [vmem:[#allocation5 + $0xa68] sm:$0xff]
    %v416 = vld [vmem:[#allocation5 + $0xa70] sm:$0xff]
    %v417 = vld [vmem:[#allocation5 + $0xa78] sm:$0xff]
    %v418 = vld [vmem:[#allocation5 + $0xa80] sm:$0xff]
    %v419 = vld [vmem:[#allocation5 + $0xa88] sm:$0xff]
    %v420 = vld [vmem:[#allocation5 + $0xa90] sm:$0xff]
    %v421 = vld [vmem:[#allocation5 + $0xa98] sm:$0xff]
    %v422 = vld [vmem:[#allocation5 + $0xaa0] sm:$0xff]
    %v423 = vld [vmem:[#allocation5 + $0xaa8] sm:$0xff]
    %v424 = vld [vmem:[#allocation5 + $0xab0] sm:$0xff]
    %v425 = vld [vmem:[#allocation5 + $0xab8] sm:$0xff]
    %v426 = vld [vmem:[#allocation5 + $0xac0] sm:$0xff]
    %v427 = vld [vmem:[#allocation5 + $0xac8] sm:$0xff]
    %v428 = vld [vmem:[#allocation5 + $0xad0] sm:$0xff]
    %v429 = vld [vmem:[#allocation5 + $0xad8] sm:$0xff]
    %v430 = vld [vmem:[#allocation5 + $0xae0] sm:$0xff]
    %v431 = vld [vmem:[#allocation5 + $0xae8] sm:$0xff]
    %v432 = vld [vmem:[#allocation5 + $0xaf0] sm:$0xff]
    %v433 = vld [vmem:[#allocation5 + $0xaf8] sm:$0xff]
    %v434 = vld [vmem:[#allocation5 + $0xb00] sm:$0xff]
    %v435 = vld [vmem:[#allocation5 + $0xb08] sm:$0xff]
    %v436 = vld [vmem:[#allocation5 + $0xb10] sm:$0xff]
    %v437 = vld [vmem:[#allocation5 + $0xb18] sm:$0xff]
    %v438 = vld [vmem:[#allocation5 + $0xb20] sm:$0xff]
    %v439 = vld [vmem:[#allocation5 + $0xb28] sm:$0xff]
    %v440 = vld [vmem:[#allocation5 + $0xb30] sm:$0xff]
    %v441 = vld [vmem:[#allocation5 + $0xb38] sm:$0xff]
    %v442 = vld [vmem:[#allocation5 + $0xb40] sm:$0xff]
    %v443 = vld [vmem:[#allocation5 + $0xb48] sm:$0xff]
    %v444 = vld [vmem:[#allocation5 + $0xb50] sm:$0xff]
    %v445 = vld [vmem:[#allocation5 + $0xb58] sm:$0xff]
    %v446 = vld [vmem:[#allocation5 + $0xb60] sm:$0xff]
    %v447 = vld [vmem:[#allocation5 + $0xb68] sm:$0xff]
    %v448 = vld [vmem:[#allocation5 + $0xb70] sm:$0xff]
    %v449 = vld [vmem:[#allocation5 + $0xb78] sm:$0xff]
    %v450 = vld [vmem:[#allocation5 + $0xb80] sm:$0xff]
    %v451 = vld [vmem:[#allocation5 + $0xb88] sm:$0xff]
    %v452 = vld [vmem:[#allocation5 + $0xb90] sm:$0xff]
    %v453 = vld [vmem:[#allocation5 + $0xb98] sm:$0xff]
    %v454 = vld [vmem:[#allocation5 + $0xba0] sm:$0xff]
    %v455 = vld [vmem:[#allocation5 + $0xba8] sm:$0xff]
    %v456 = vld [vmem:[#allocation5 + $0xbb0] sm:$0xff]
    %v457 = vld [vmem:[#allocation5 + $0xbb8] sm:$0xff]
    %v458 = vld [vmem:[#allocation5 + $0xbc0] sm:$0xff]
    %v459 = vld [vmem:[#allocation5 + $0xbc8] sm:$0xff]
    %v460 = vld [vmem:[#allocation5 + $0xbd0] sm:$0xff]
    %v461 = vld [vmem:[#allocation5 + $0xbd8] sm:$0xff]
    %v462 = vld [vmem:[#allocation5 + $0xbe0] sm:$0xff]
    %v463 = vld [vmem:[#allocation5 + $0xbe8] sm:$0xff]
    %v464 = vld [vmem:[#allocation5 + $0xbf0] sm:$0xff]
    %v465 = vld [vmem:[#allocation5 + $0xbf8] sm:$0xff]
    %v466 = vld [vmem:[#allocation5 + $0xc00] sm:$0xff]
    %v467 = vld [vmem:[#allocation5 + $0xc08] sm:$0xff]
    %v468 = vld [vmem:[#allocation5 + $0xc10] sm:$0xff]
    %v469 = vld [vmem:[#allocation5 + $0xc18] sm:$0xff]
    %v470 = vld [vmem:[#allocation5 + $0xc20] sm:$0xff]
    %v471 = vld [vmem:[#allocation5 + $0xc28] sm:$0xff]
    %v472 = vld [vmem:[#allocation5 + $0xc30] sm:$0xff]
    %v473 = vld [vmem:[#allocation5 + $0xc38] sm:$0xff]
    %v474 = vld [vmem:[#allocation5 + $0xc40] sm:$0xff]
    %v475 = vld [vmem:[#allocation5 + $0xc48] sm:$0xff]
    %v476 = vld [vmem:[#allocation5 + $0xc50] sm:$0xff]
    %v477 = vld [vmem:[#allocation5 + $0xc58] sm:$0xff]
    %v478 = vld [vmem:[#allocation5 + $0xc60] sm:$0xff]
    %v479 = vld [vmem:[#allocation5 + $0xc68] sm:$0xff]
    %v480 = vld [vmem:[#allocation5 + $0xc70] sm:$0xff]
    %v481 = vld [vmem:[#allocation5 + $0xc78] sm:$0xff]
    %v482 = vld [vmem:[#allocation5 + $0xc80] sm:$0xff]
    %v483 = vld [vmem:[#allocation5 + $0xc88] sm:$0xff]
    %v484 = vld [vmem:[#allocation5 + $0xc90] sm:$0xff]
    %v485 = vld [vmem:[#allocation5 + $0xc98] sm:$0xff]
    %v486 = vld [vmem:[#allocation5 + $0xca0] sm:$0xff]
    %v487 = vld [vmem:[#allocation5 + $0xca8] sm:$0xff]
    %v488 = vld [vmem:[#allocation5 + $0xcb0] sm:$0xff]
    %v489 = vld [vmem:[#allocation5 + $0xcb8] sm:$0xff]
    %v490 = vld [vmem:[#allocation5 + $0xcc0] sm:$0xff]
    %v491 = vld [vmem:[#allocation5 + $0xcc8] sm:$0xff]
    %v492 = vld [vmem:[#allocation5 + $0xcd0] sm:$0xff]
    %v493 = vld [vmem:[#allocation5 + $0xcd8] sm:$0xff]
    %v494 = vld [vmem:[#allocation5 + $0xce0] sm:$0xff]
    %v495 = vld [vmem:[#allocation5 + $0xce8] sm:$0xff]
    %v496 = vld [vmem:[#allocation5 + $0xcf0] sm:$0xff]
    %v497 = vld [vmem:[#allocation5 + $0xcf8] sm:$0xff]
    %v498 = vld [vmem:[#allocation5 + $0xd00] sm:$0xff]
    %v499 = vld [vmem:[#allocation5 + $0xd08] sm:$0xff]
    %v500 = vld [vmem:[#allocation5 + $0xd10] sm:$0xff]
    %v501 = vld [vmem:[#allocation5 + $0xd18] sm:$0xff]
    %v502 = vld [vmem:[#allocation5 + $0xd20] sm:$0xff]
    %v503 = vld [vmem:[#allocation5 + $0xd28] sm:$0xff]
    %v504 = vld [vmem:[#allocation5 + $0xd30] sm:$0xff]
    %v505 = vld [vmem:[#allocation5 + $0xd38] sm:$0xff]
    %v506 = vld [vmem:[#allocation5 + $0xd40] sm:$0xff]
    %v507 = vld [vmem:[#allocation5 + $0xd48] sm:$0xff]
    %v508 = vld [vmem:[#allocation5 + $0xd50] sm:$0xff]
    %v509 = vld [vmem:[#allocation5 + $0xd58] sm:$0xff]
    %v510 = vld [vmem:[#allocation5 + $0xd60] sm:$0xff]
    %v511 = vld [vmem:[#allocation5 + $0xd68] sm:$0xff]
    %v512 = vld [vmem:[#allocation5 + $0xd70] sm:$0xff]
    %v513 = vld [vmem:[#allocation5 + $0xd78] sm:$0xff]
    %v514 = vld [vmem:[#allocation5 + $0xd80] sm:$0xff]
    %v515 = vld [vmem:[#allocation5 + $0xd88] sm:$0xff]
    %v516 = vld [vmem:[#allocation5 + $0xd90] sm:$0xff]
    %v517 = vld [vmem:[#allocation5 + $0xd98] sm:$0xff]
    %v518 = vld [vmem:[#allocation5 + $0xda0] sm:$0xff]
    %v519 = vld [vmem:[#allocation5 + $0xda8] sm:$0xff]
    %v520 = vld [vmem:[#allocation5 + $0xdb0] sm:$0xff]
    %v521 = vld [vmem:[#allocation5 + $0xdb8] sm:$0xff]
    %v522 = vld [vmem:[#allocation5 + $0xdc0] sm:$0xff]
    %v523 = vld [vmem:[#allocation5 + $0xdc8] sm:$0xff]
    %v524 = vld [vmem:[#allocation5 + $0xdd0] sm:$0xff]
    %v525 = vld [vmem:[#allocation5 + $0xdd8] sm:$0xff]
    %v526 = vld [vmem:[#allocation5 + $0xde0] sm:$0xff]
    %v527 = vld [vmem:[#allocation5 + $0xde8] sm:$0xff]
    %v528 = vld [vmem:[#allocation5 + $0xdf0] sm:$0xff]
    %v529 = vld [vmem:[#allocation5 + $0xdf8] sm:$0xff]
    %v530 = vld [vmem:[#allocation5 + $0xe00] sm:$0xff]
    %v531 = vld [vmem:[#allocation5 + $0xe08] sm:$0xff]
    %v532 = vld [vmem:[#allocation5 + $0xe10] sm:$0xff]
    %v533 = vld [vmem:[#allocation5 + $0xe18] sm:$0xff]
    %v534 = vld [vmem:[#allocation5 + $0xe20] sm:$0xff]
    %v535 = vld [vmem:[#allocation5 + $0xe28] sm:$0xff]
    %v536 = vld [vmem:[#allocation5 + $0xe30] sm:$0xff]
    %v537 = vld [vmem:[#allocation5 + $0xe38] sm:$0xff]
    %v538 = vld [vmem:[#allocation5 + $0xe40] sm:$0xff]
    %v539 = vld [vmem:[#allocation5 + $0xe48] sm:$0xff]
    %v540 = vld [vmem:[#allocation5 + $0xe50] sm:$0xff]
    %v541 = vld [vmem:[#allocation5 + $0xe58] sm:$0xff]
    %v542 = vld [vmem:[#allocation5 + $0xe60] sm:$0xff]
    %v543 = vld [vmem:[#allocation5 + $0xe68] sm:$0xff]
    %v544 = vld [vmem:[#allocation5 + $0xe70] sm:$0xff]
    %v545 = vld [vmem:[#allocation5 + $0xe78] sm:$0xff]
    %v546 = vld [vmem:[#allocation5 + $0xe80] sm:$0xff]
    %v547 = vld [vmem:[#allocation5 + $0xe88] sm:$0xff]
    %v548 = vld [vmem:[#allocation5 + $0xe90] sm:$0xff]
    %v549 = vld [vmem:[#allocation5 + $0xe98] sm:$0xff]
    %v550 = vld [vmem:[#allocation5 + $0xea0] sm:$0xff]
    %v551 = vld [vmem:[#allocation5 + $0xea8] sm:$0xff]
    %v552 = vld [vmem:[#allocation5 + $0xeb0] sm:$0xff]
    %v553 = vld [vmem:[#allocation5 + $0xeb8] sm:$0xff]
    %v554 = vld [vmem:[#allocation5 + $0xec0] sm:$0xff]
    %v555 = vld [vmem:[#allocation5 + $0xec8] sm:$0xff]
    %v556 = vld [vmem:[#allocation5 + $0xed0] sm:$0xff]
    %v557 = vld [vmem:[#allocation5 + $0xed8] sm:$0xff]
    %v558 = vld [vmem:[#allocation5 + $0xee0] sm:$0xff]
    %v559 = vld [vmem:[#allocation5 + $0xee8] sm:$0xff]
    %v560 = vld [vmem:[#allocation5 + $0xef0] sm:$0xff]
    %v561 = vld [vmem:[#allocation5 + $0xef8] sm:$0xff]
    %v562 = vld [vmem:[#allocation5 + $0xf00] sm:$0xff]
    %v563 = vld [vmem:[#allocation5 + $0xf08] sm:$0xff]
    %v564 = vld [vmem:[#allocation5 + $0xf10] sm:$0xff]
    %v565 = vld [vmem:[#allocation5 + $0xf18] sm:$0xff]
    %v566 = vld [vmem:[#allocation5 + $0xf20] sm:$0xff]
    %v567 = vld [vmem:[#allocation5 + $0xf28] sm:$0xff]
    %v568 = vld [vmem:[#allocation5 + $0xf30] sm:$0xff]
    %v569 = vld [vmem:[#allocation5 + $0xf38] sm:$0xff]
    %v570 = vld [vmem:[#allocation5 + $0xf40] sm:$0xff]
    %v571 = vld [vmem:[#allocation5 + $0xf48] sm:$0xff]
    %v572 = vld [vmem:[#allocation5 + $0xf50] sm:$0xff]
    %v573 = vld [vmem:[#allocation5 + $0xf58] sm:$0xff]
    %v574 = vld [vmem:[#allocation5 + $0xf60] sm:$0xff]
    %v575 = vld [vmem:[#allocation5 + $0xf68] sm:$0xff]
    %v576 = vld [vmem:[#allocation5 + $0xf70] sm:$0xff]
    %v577 = vld [vmem:[#allocation5 + $0xf78] sm:$0xff]
    %v578 = vld [vmem:[#allocation5 + $0xf80] sm:$0xff]
    %v579 = vld [vmem:[#allocation5 + $0xf88] sm:$0xff]
    %v580 = vld [vmem:[#allocation5 + $0xf90] sm:$0xff]
    %v581 = vld [vmem:[#allocation5 + $0xf98] sm:$0xff]
    %v582 = vld [vmem:[#allocation5 + $0xfa0] sm:$0xff]
    %v583 = vld [vmem:[#allocation5 + $0xfa8] sm:$0xff]
    %v584 = vld [vmem:[#allocation5 + $0xfb0] sm:$0xff]
    %v585 = vld [vmem:[#allocation5 + $0xfb8] sm:$0xff]
    %v586 = vld [vmem:[#allocation5 + $0xfc0] sm:$0xff]
    %v587 = vld [vmem:[#allocation5 + $0xfc8] sm:$0xff]
    %v588 = vld [vmem:[#allocation5 + $0xfd0] sm:$0xff]
    %v589 = vld [vmem:[#allocation5 + $0xfd8] sm:$0xff]
    %v590 = vld [vmem:[#allocation5 + $0xfe0] sm:$0xff]
    %v591 = vld [vmem:[#allocation5 + $0xfe8] sm:$0xff]
    %v592 = vld [vmem:[#allocation5 + $0xff0] sm:$0xff]
    %v593 = vld [vmem:[#allocation5 + $0xff8] sm:$0xff]
    %v594 = vld [vmem:[#allocation5 + $0x1000] sm:$0xff]
    %v595 = vld [vmem:[#allocation5 + $0x1008] sm:$0xff]
    %v596 = vld [vmem:[#allocation5 + $0x1010] sm:$0xff]
    %v597 = vld [vmem:[#allocation5 + $0x1018] sm:$0xff]
    %v598 = vld [vmem:[#allocation5 + $0x1020] sm:$0xff]
    %v599 = vld [vmem:[#allocation5 + $0x1028] sm:$0xff]
    %v600 = vld [vmem:[#allocation5 + $0x1030] sm:$0xff]
    %v601 = vld [vmem:[#allocation5 + $0x1038] sm:$0xff]
    %v602 = vld [vmem:[#allocation5 + $0x1040] sm:$0xff]
    %v603 = vld [vmem:[#allocation5 + $0x1048] sm:$0xff]
    %v604 = vld [vmem:[#allocation5 + $0x1050] sm:$0xff]
    %v605 = vld [vmem:[#allocation5 + $0x1058] sm:$0xff]
    %v606 = vld [vmem:[#allocation5 + $0x1060] sm:$0xff]
    %v607 = vld [vmem:[#allocation5 + $0x1068] sm:$0xff]
    %v608 = vld [vmem:[#allocation5 + $0x1070] sm:$0xff]
    %v609 = vld [vmem:[#allocation5 + $0x1078] sm:$0xff]
    %v610 = vld [vmem:[#allocation5 + $0x1080] sm:$0xff]
    %v611 = vld [vmem:[#allocation5 + $0x1088] sm:$0xff]
    %v612 = vld [vmem:[#allocation5 + $0x1090] sm:$0xff]
    %v613 = vld [vmem:[#allocation5 + $0x1098] sm:$0xff]
    %v614 = vld [vmem:[#allocation5 + $0x10a0] sm:$0xff]
    %v615 = vld [vmem:[#allocation5 + $0x10a8] sm:$0xff]
    %v616 = vld [vmem:[#allocation5 + $0x10b0] sm:$0xff]
    %v617 = vld [vmem:[#allocation5 + $0x10b8] sm:$0xff]
    %v618 = vld [vmem:[#allocation5 + $0x10c0] sm:$0xff]
    %v619 = vld [vmem:[#allocation5 + $0x10c8] sm:$0xff]
    %v620 = vld [vmem:[#allocation5 + $0x10d0] sm:$0xff]
    %v621 = vld [vmem:[#allocation5 + $0x10d8] sm:$0xff]
    %v622 = vld [vmem:[#allocation5 + $0x10e0] sm:$0xff]
    %v623 = vld [vmem:[#allocation5 + $0x10e8] sm:$0xff]
    %v624 = vld [vmem:[#allocation5 + $0x10f0] sm:$0xff]
    %v625 = vld [vmem:[#allocation5 + $0x10f8] sm:$0xff]
    %v626 = vld [vmem:[#allocation5 + $0x1100] sm:$0xff]
    %v627 = vld [vmem:[#allocation5 + $0x1108] sm:$0xff]
    %v628 = vld [vmem:[#allocation5 + $0x1110] sm:$0xff]
    %v629 = vld [vmem:[#allocation5 + $0x1118] sm:$0xff]
    %v630 = vld [vmem:[#allocation5 + $0x1120] sm:$0xff]
    %v631 = vld [vmem:[#allocation5 + $0x1128] sm:$0xff]
    %v632 = vld [vmem:[#allocation5 + $0x1130] sm:$0xff]
    %v633 = vld [vmem:[#allocation5 + $0x1138] sm:$0xff]
    %v634 = vld [vmem:[#allocation5 + $0x1140] sm:$0xff]
    %v635 = vld [vmem:[#allocation5 + $0x1148] sm:$0xff]
    %v636 = vld [vmem:[#allocation5 + $0x1150] sm:$0xff]
    %v637 = vld [vmem:[#allocation5 + $0x1158] sm:$0xff]
    %v638 = vld [vmem:[#allocation5 + $0x1160] sm:$0xff]
    %v639 = vld [vmem:[#allocation5 + $0x1168] sm:$0xff]
    %v640 = vld [vmem:[#allocation5 + $0x1170] sm:$0xff]
    %v641 = vld [vmem:[#allocation5 + $0x1178] sm:$0xff]
    %v642 = vld [vmem:[#allocation5 + $0x1180] sm:$0xff]
    %v643 = vld [vmem:[#allocation5 + $0x1188] sm:$0xff]
    %v644 = vld [vmem:[#allocation5 + $0x1190] sm:$0xff]
    %v645 = vld [vmem:[#allocation5 + $0x1198] sm:$0xff]
    %v646 = vld [vmem:[#allocation5 + $0x11a0] sm:$0xff]
    %v647 = vld [vmem:[#allocation5 + $0x11a8] sm:$0xff]
    %v648 = vld [vmem:[#allocation5 + $0x11b0] sm:$0xff]
    %v649 = vld [vmem:[#allocation5 + $0x11b8] sm:$0xff]
    %v650 = vld [vmem:[#allocation5 + $0x11c0] sm:$0xff]
    %v651 = vld [vmem:[#allocation5 + $0x11c8] sm:$0xff]
    %v652 = vld [vmem:[#allocation5 + $0x11d0] sm:$0xff]
    %v653 = vld [vmem:[#allocation5 + $0x11d8] sm:$0xff]
    %v654 = vld [vmem:[#allocation5 + $0x11e0] sm:$0xff]
    %v655 = vld [vmem:[#allocation5 + $0x11e8] sm:$0xff]
    %v656 = vld [vmem:[#allocation5 + $0x11f0] sm:$0xff]
    %v657 = vld [vmem:[#allocation5 + $0x11f8] sm:$0xff]
    %v1234 = vunpack.c.l.b16 %v82
    %v1235 = vunpack.c.h.b16 %v82
    %v1236 = vunpack.c.l.b16 %v83
    %v1237 = vunpack.c.h.b16 %v83
    %v1238 = vunpack.c.l.b16 %v84
    %v1239 = vunpack.c.h.b16 %v84
    %v1240 = vunpack.c.l.b16 %v85
    %v1241 = vunpack.c.h.b16 %v85
    %v1242 = vunpack.c.l.b16 %v86
    %v1243 = vunpack.c.h.b16 %v86
    %v1244 = vunpack.c.l.b16 %v87
    %v1245 = vunpack.c.h.b16 %v87
    %v1246 = vunpack.c.l.b16 %v88
    %v1247 = vunpack.c.h.b16 %v88
    %v1248 = vunpack.c.l.b16 %v89
    %v1249 = vunpack.c.h.b16 %v89
    %v1250 = vunpack.c.l.b16 %v90
    %v1251 = vunpack.c.h.b16 %v90
    %v1252 = vunpack.c.l.b16 %v91
    %v1253 = vunpack.c.h.b16 %v91
    %v1254 = vunpack.c.l.b16 %v92
    %v1255 = vunpack.c.h.b16 %v92
    %v1256 = vunpack.c.l.b16 %v93
    %v1257 = vunpack.c.h.b16 %v93
    %v1258 = vunpack.c.l.b16 %v94
    %v1259 = vunpack.c.h.b16 %v94
    %v1260 = vunpack.c.l.b16 %v95
    %v1261 = vunpack.c.h.b16 %v95
    %v1262 = vunpack.c.l.b16 %v96
    %v1263 = vunpack.c.h.b16 %v96
    %v1264 = vunpack.c.l.b16 %v97
    %v1265 = vunpack.c.h.b16 %v97
    %v1266 = vunpack.c.l.b16 %v98
    %v1267 = vunpack.c.h.b16 %v98
    %v1268 = vunpack.c.l.b16 %v99
    %v1269 = vunpack.c.h.b16 %v99
    %v1270 = vunpack.c.l.b16 %v100
    %v1271 = vunpack.c.h.b16 %v100
    %v1272 = vunpack.c.l.b16 %v101
    %v1273 = vunpack.c.h.b16 %v101
    %v1274 = vunpack.c.l.b16 %v102
    %v1275 = vunpack.c.h.b16 %v102
    %v1276 = vunpack.c.l.b16 %v103
    %v1277 = vunpack.c.h.b16 %v103
    %v1278 = vunpack.c.l.b16 %v104
    %v1279 = vunpack.c.h.b16 %v104
    %v1280 = vunpack.c.l.b16 %v105
    %v1281 = vunpack.c.h.b16 %v105
    %v1282 = vunpack.c.l.b16 %v106
    %v1283 = vunpack.c.h.b16 %v106
    %v1284 = vunpack.c.l.b16 %v107
    %v1285 = vunpack.c.h.b16 %v107
    %v1286 = vunpack.c.l.b16 %v108
    %v1287 = vunpack.c.h.b16 %v108
    %v1288 = vunpack.c.l.b16 %v109
    %v1289 = vunpack.c.h.b16 %v109
    %v1290 = vunpack.c.l.b16 %v110
    %v1291 = vunpack.c.h.b16 %v110
    %v1292 = vunpack.c.l.b16 %v111
    %v1293 = vunpack.c.h.b16 %v111
    %v1294 = vunpack.c.l.b16 %v112
    %v1295 = vunpack.c.h.b16 %v112
    %v1296 = vunpack.c.l.b16 %v113
    %v1297 = vunpack.c.h.b16 %v113
    %v1298 = vunpack.c.l.b16 %v114
    %v1299 = vunpack.c.h.b16 %v114
    %v1300 = vunpack.c.l.b16 %v115
    %v1301 = vunpack.c.h.b16 %v115
    %v1302 = vunpack.c.l.b16 %v116
    %v1303 = vunpack.c.h.b16 %v116
    %v1304 = vunpack.c.l.b16 %v117
    %v1305 = vunpack.c.h.b16 %v117
    %v1306 = vunpack.c.l.b16 %v118
    %v1307 = vunpack.c.h.b16 %v118
    %v1308 = vunpack.c.l.b16 %v119
    %v1309 = vunpack.c.h.b16 %v119
    %v1310 = vunpack.c.l.b16 %v120
    %v1311 = vunpack.c.h.b16 %v120
    %v1312 = vunpack.c.l.b16 %v121
    %v1313 = vunpack.c.h.b16 %v121
    %v1314 = vunpack.c.l.b16 %v122
    %v1315 = vunpack.c.h.b16 %v122
    %v1316 = vunpack.c.l.b16 %v123
    %v1317 = vunpack.c.h.b16 %v123
    %v1318 = vunpack.c.l.b16 %v124
    %v1319 = vunpack.c.h.b16 %v124
    %v1320 = vunpack.c.l.b16 %v125
    %v1321 = vunpack.c.h.b16 %v125
    %v1322 = vunpack.c.l.b16 %v126
    %v1323 = vunpack.c.h.b16 %v126
    %v1324 = vunpack.c.l.b16 %v127
    %v1325 = vunpack.c.h.b16 %v127
    %v1326 = vunpack.c.l.b16 %v128
    %v1327 = vunpack.c.h.b16 %v128
    %v1328 = vunpack.c.l.b16 %v129
    %v1329 = vunpack.c.h.b16 %v129
    %v1330 = vunpack.c.l.b16 %v130
    %v1331 = vunpack.c.h.b16 %v130
    %v1332 = vunpack.c.l.b16 %v131
    %v1333 = vunpack.c.h.b16 %v131
    %v1334 = vunpack.c.l.b16 %v132
    %v1335 = vunpack.c.h.b16 %v132
    %v1336 = vunpack.c.l.b16 %v133
    %v1337 = vunpack.c.h.b16 %v133
    %v1338 = vunpack.c.l.b16 %v134
    %v1339 = vunpack.c.h.b16 %v134
    %v1340 = vunpack.c.l.b16 %v135
    %v1341 = vunpack.c.h.b16 %v135
    %v1342 = vunpack.c.l.b16 %v136
    %v1343 = vunpack.c.h.b16 %v136
    %v1344 = vunpack.c.l.b16 %v137
    %v1345 = vunpack.c.h.b16 %v137
    %v1346 = vunpack.c.l.b16 %v138
    %v1347 = vunpack.c.h.b16 %v138
    %v1348 = vunpack.c.l.b16 %v139
    %v1349 = vunpack.c.h.b16 %v139
    %v1350 = vunpack.c.l.b16 %v140
    %v1351 = vunpack.c.h.b16 %v140
    %v1352 = vunpack.c.l.b16 %v141
    %v1353 = vunpack.c.h.b16 %v141
    %v1354 = vunpack.c.l.b16 %v142
    %v1355 = vunpack.c.h.b16 %v142
    %v1356 = vunpack.c.l.b16 %v143
    %v1357 = vunpack.c.h.b16 %v143
    %v1358 = vunpack.c.l.b16 %v144
    %v1359 = vunpack.c.h.b16 %v144
    %v1360 = vunpack.c.l.b16 %v145
    %v1361 = vunpack.c.h.b16 %v145
    %v1362 = vunpack.c.l.b16 %v146
    %v1363 = vunpack.c.h.b16 %v146
    %v1364 = vunpack.c.l.b16 %v147
    %v1365 = vunpack.c.h.b16 %v147
    %v1366 = vunpack.c.l.b16 %v148
    %v1367 = vunpack.c.h.b16 %v148
    %v1368 = vunpack.c.l.b16 %v149
    %v1369 = vunpack.c.h.b16 %v149
    %v1370 = vunpack.c.l.b16 %v150
    %v1371 = vunpack.c.h.b16 %v150
    %v1372 = vunpack.c.l.b16 %v151
    %v1373 = vunpack.c.h.b16 %v151
    %v1374 = vunpack.c.l.b16 %v152
    %v1375 = vunpack.c.h.b16 %v152
    %v1376 = vunpack.c.l.b16 %v153
    %v1377 = vunpack.c.h.b16 %v153
    %v1378 = vunpack.c.l.b16 %v154
    %v1379 = vunpack.c.h.b16 %v154
    %v1380 = vunpack.c.l.b16 %v155
    %v1381 = vunpack.c.h.b16 %v155
    %v1382 = vunpack.c.l.b16 %v156
    %v1383 = vunpack.c.h.b16 %v156
    %v1384 = vunpack.c.l.b16 %v157
    %v1385 = vunpack.c.h.b16 %v157
    %v1386 = vunpack.c.l.b16 %v158
    %v1387 = vunpack.c.h.b16 %v158
    %v1388 = vunpack.c.l.b16 %v159
    %v1389 = vunpack.c.h.b16 %v159
    %v1390 = vunpack.c.l.b16 %v160
    %v1391 = vunpack.c.h.b16 %v160
    %v1392 = vunpack.c.l.b16 %v161
    %v1393 = vunpack.c.h.b16 %v161
    %v1394 = vunpack.c.l.b16 %v162
    %v1395 = vunpack.c.h.b16 %v162
    %v1396 = vunpack.c.l.b16 %v163
    %v1397 = vunpack.c.h.b16 %v163
    %v1398 = vunpack.c.l.b16 %v164
    %v1399 = vunpack.c.h.b16 %v164
    %v1400 = vunpack.c.l.b16 %v165
    %v1401 = vunpack.c.h.b16 %v165
    %v1402 = vunpack.c.l.b16 %v166
    %v1403 = vunpack.c.h.b16 %v166
    %v1404 = vunpack.c.l.b16 %v167
    %v1405 = vunpack.c.h.b16 %v167
    %v1406 = vunpack.c.l.b16 %v168
    %v1407 = vunpack.c.h.b16 %v168
    %v1408 = vunpack.c.l.b16 %v169
    %v1409 = vunpack.c.h.b16 %v169
    %v1410 = vunpack.c.l.b16 %v170
    %v1411 = vunpack.c.h.b16 %v170
    %v1412 = vunpack.c.l.b16 %v171
    %v1413 = vunpack.c.h.b16 %v171
    %v1414 = vunpack.c.l.b16 %v172
    %v1415 = vunpack.c.h.b16 %v172
    %v1416 = vunpack.c.l.b16 %v173
    %v1417 = vunpack.c.h.b16 %v173
    %v1418 = vunpack.c.l.b16 %v174
    %v1419 = vunpack.c.h.b16 %v174
    %v1420 = vunpack.c.l.b16 %v175
    %v1421 = vunpack.c.h.b16 %v175
    %v1422 = vunpack.c.l.b16 %v176
    %v1423 = vunpack.c.h.b16 %v176
    %v1424 = vunpack.c.l.b16 %v177
    %v1425 = vunpack.c.h.b16 %v177
    %v1426 = vunpack.c.l.b16 %v178
    %v1427 = vunpack.c.h.b16 %v178
    %v1428 = vunpack.c.l.b16 %v179
    %v1429 = vunpack.c.h.b16 %v179
    %v1430 = vunpack.c.l.b16 %v180
    %v1431 = vunpack.c.h.b16 %v180
    %v1432 = vunpack.c.l.b16 %v181
    %v1433 = vunpack.c.h.b16 %v181
    %v1434 = vunpack.c.l.b16 %v182
    %v1435 = vunpack.c.h.b16 %v182
    %v1436 = vunpack.c.l.b16 %v183
    %v1437 = vunpack.c.h.b16 %v183
    %v1438 = vunpack.c.l.b16 %v184
    %v1439 = vunpack.c.h.b16 %v184
    %v1440 = vunpack.c.l.b16 %v185
    %v1441 = vunpack.c.h.b16 %v185
    %v1442 = vunpack.c.l.b16 %v186
    %v1443 = vunpack.c.h.b16 %v186
    %v1444 = vunpack.c.l.b16 %v187
    %v1445 = vunpack.c.h.b16 %v187
    %v1446 = vunpack.c.l.b16 %v188
    %v1447 = vunpack.c.h.b16 %v188
    %v1448 = vunpack.c.l.b16 %v189
    %v1449 = vunpack.c.h.b16 %v189
    %v1450 = vunpack.c.l.b16 %v190
    %v1451 = vunpack.c.h.b16 %v190
    %v1452 = vunpack.c.l.b16 %v191
    %v1453 = vunpack.c.h.b16 %v191
    %v1454 = vunpack.c.l.b16 %v192
    %v1455 = vunpack.c.h.b16 %v192
    %v1456 = vunpack.c.l.b16 %v193
    %v1457 = vunpack.c.h.b16 %v193
    %v1458 = vunpack.c.l.b16 %v194
    %v1459 = vunpack.c.h.b16 %v194
    %v1460 = vunpack.c.l.b16 %v195
    %v1461 = vunpack.c.h.b16 %v195
    %v1462 = vunpack.c.l.b16 %v196
    %v1463 = vunpack.c.h.b16 %v196
    %v1464 = vunpack.c.l.b16 %v197
    %v1465 = vunpack.c.h.b16 %v197
    %v1466 = vunpack.c.l.b16 %v198
    %v1467 = vunpack.c.h.b16 %v198
    %v1468 = vunpack.c.l.b16 %v199
    %v1469 = vunpack.c.h.b16 %v199
    %v1470 = vunpack.c.l.b16 %v200
    %v1471 = vunpack.c.h.b16 %v200
    %v1472 = vunpack.c.l.b16 %v201
    %v1473 = vunpack.c.h.b16 %v201
    %v1474 = vunpack.c.l.b16 %v202
    %v1475 = vunpack.c.h.b16 %v202
    %v1476 = vunpack.c.l.b16 %v203
    %v1477 = vunpack.c.h.b16 %v203
    %v1478 = vunpack.c.l.b16 %v204
    %v1479 = vunpack.c.h.b16 %v204
    %v1480 = vunpack.c.l.b16 %v205
    %v1481 = vunpack.c.h.b16 %v205
    %v1482 = vunpack.c.l.b16 %v206
    %v1483 = vunpack.c.h.b16 %v206
    %v1484 = vunpack.c.l.b16 %v207
    %v1485 = vunpack.c.h.b16 %v207
    %v1486 = vunpack.c.l.b16 %v208
    %v1487 = vunpack.c.h.b16 %v208
    %v1488 = vunpack.c.l.b16 %v209
    %v1489 = vunpack.c.h.b16 %v209
    %v1490 = vunpack.c.l.b16 %v210
    %v1491 = vunpack.c.h.b16 %v210
    %v1492 = vunpack.c.l.b16 %v211
    %v1493 = vunpack.c.h.b16 %v211
    %v1494 = vunpack.c.l.b16 %v212
    %v1495 = vunpack.c.h.b16 %v212
    %v1496 = vunpack.c.l.b16 %v213
    %v1497 = vunpack.c.h.b16 %v213
    %v1498 = vunpack.c.l.b16 %v214
    %v1499 = vunpack.c.h.b16 %v214
    %v1500 = vunpack.c.l.b16 %v215
    %v1501 = vunpack.c.h.b16 %v215
    %v1502 = vunpack.c.l.b16 %v216
    %v1503 = vunpack.c.h.b16 %v216
    %v1504 = vunpack.c.l.b16 %v217
    %v1505 = vunpack.c.h.b16 %v217
    %v1506 = vunpack.c.l.b16 %v218
    %v1507 = vunpack.c.h.b16 %v218
    %v1508 = vunpack.c.l.b16 %v219
    %v1509 = vunpack.c.h.b16 %v219
    %v1510 = vunpack.c.l.b16 %v220
    %v1511 = vunpack.c.h.b16 %v220
    %v1512 = vunpack.c.l.b16 %v221
    %v1513 = vunpack.c.h.b16 %v221
    %v1514 = vunpack.c.l.b16 %v222
    %v1515 = vunpack.c.h.b16 %v222
    %v1516 = vunpack.c.l.b16 %v223
    %v1517 = vunpack.c.h.b16 %v223
    %v1518 = vunpack.c.l.b16 %v224
    %v1519 = vunpack.c.h.b16 %v224
    %v1520 = vunpack.c.l.b16 %v225
    %v1521 = vunpack.c.h.b16 %v225
    %v1522 = vunpack.c.l.b16 %v226
    %v1523 = vunpack.c.h.b16 %v226
    %v1524 = vunpack.c.l.b16 %v227
    %v1525 = vunpack.c.h.b16 %v227
    %v1526 = vunpack.c.l.b16 %v228
    %v1527 = vunpack.c.h.b16 %v228
    %v1528 = vunpack.c.l.b16 %v229
    %v1529 = vunpack.c.h.b16 %v229
    %v1530 = vunpack.c.l.b16 %v230
    %v1531 = vunpack.c.h.b16 %v230
    %v1532 = vunpack.c.l.b16 %v231
    %v1533 = vunpack.c.h.b16 %v231
    %v1534 = vunpack.c.l.b16 %v232
    %v1535 = vunpack.c.h.b16 %v232
    %v1536 = vunpack.c.l.b16 %v233
    %v1537 = vunpack.c.h.b16 %v233
    %v1538 = vunpack.c.l.b16 %v234
    %v1539 = vunpack.c.h.b16 %v234
    %v1540 = vunpack.c.l.b16 %v235
    %v1541 = vunpack.c.h.b16 %v235
    %v1542 = vunpack.c.l.b16 %v236
    %v1543 = vunpack.c.h.b16 %v236
    %v1544 = vunpack.c.l.b16 %v237
    %v1545 = vunpack.c.h.b16 %v237
    %v1546 = vunpack.c.l.b16 %v238
    %v1547 = vunpack.c.h.b16 %v238
    %v1548 = vunpack.c.l.b16 %v239
    %v1549 = vunpack.c.h.b16 %v239
    %v1550 = vunpack.c.l.b16 %v240
    %v1551 = vunpack.c.h.b16 %v240
    %v1552 = vunpack.c.l.b16 %v241
    %v1553 = vunpack.c.h.b16 %v241
    %v1554 = vunpack.c.l.b16 %v242
    %v1555 = vunpack.c.h.b16 %v242
    %v1556 = vunpack.c.l.b16 %v243
    %v1557 = vunpack.c.h.b16 %v243
    %v1558 = vunpack.c.l.b16 %v244
    %v1559 = vunpack.c.h.b16 %v244
    %v1560 = vunpack.c.l.b16 %v245
    %v1561 = vunpack.c.h.b16 %v245
    %v1562 = vunpack.c.l.b16 %v246
    %v1563 = vunpack.c.h.b16 %v246
    %v1564 = vunpack.c.l.b16 %v247
    %v1565 = vunpack.c.h.b16 %v247
    %v1566 = vunpack.c.l.b16 %v248
    %v1567 = vunpack.c.h.b16 %v248
    %v1568 = vunpack.c.l.b16 %v249
    %v1569 = vunpack.c.h.b16 %v249
    %v1570 = vunpack.c.l.b16 %v250
    %v1571 = vunpack.c.h.b16 %v250
    %v1572 = vunpack.c.l.b16 %v251
    %v1573 = vunpack.c.h.b16 %v251
    %v1574 = vunpack.c.l.b16 %v252
    %v1575 = vunpack.c.h.b16 %v252
    %v1576 = vunpack.c.l.b16 %v253
    %v1577 = vunpack.c.h.b16 %v253
    %v1578 = vunpack.c.l.b16 %v254
    %v1579 = vunpack.c.h.b16 %v254
    %v1580 = vunpack.c.l.b16 %v255
    %v1581 = vunpack.c.h.b16 %v255
    %v1582 = vunpack.c.l.b16 %v256
    %v1583 = vunpack.c.h.b16 %v256
    %v1584 = vunpack.c.l.b16 %v257
    %v1585 = vunpack.c.h.b16 %v257
    %v1586 = vunpack.c.l.b16 %v258
    %v1587 = vunpack.c.h.b16 %v258
    %v1588 = vunpack.c.l.b16 %v259
    %v1589 = vunpack.c.h.b16 %v259
    %v1590 = vunpack.c.l.b16 %v260
    %v1591 = vunpack.c.h.b16 %v260
    %v1592 = vunpack.c.l.b16 %v261
    %v1593 = vunpack.c.h.b16 %v261
    %v1594 = vunpack.c.l.b16 %v262
    %v1595 = vunpack.c.h.b16 %v262
    %v1596 = vunpack.c.l.b16 %v263
    %v1597 = vunpack.c.h.b16 %v263
    %v1598 = vunpack.c.l.b16 %v264
    %v1599 = vunpack.c.h.b16 %v264
    %v1600 = vunpack.c.l.b16 %v265
    %v1601 = vunpack.c.h.b16 %v265
    %v1602 = vunpack.c.l.b16 %v266
    %v1603 = vunpack.c.h.b16 %v266
    %v1604 = vunpack.c.l.b16 %v267
    %v1605 = vunpack.c.h.b16 %v267
    %v1606 = vunpack.c.l.b16 %v268
    %v1607 = vunpack.c.h.b16 %v268
    %v1608 = vunpack.c.l.b16 %v269
    %v1609 = vunpack.c.h.b16 %v269
    %v1610 = vunpack.c.l.b16 %v270
    %v1611 = vunpack.c.h.b16 %v270
    %v1612 = vunpack.c.l.b16 %v271
    %v1613 = vunpack.c.h.b16 %v271
    %v1614 = vunpack.c.l.b16 %v272
    %v1615 = vunpack.c.h.b16 %v272
    %v1616 = vunpack.c.l.b16 %v273
    %v1617 = vunpack.c.h.b16 %v273
    %v1618 = vunpack.c.l.b16 %v274
    %v1619 = vunpack.c.h.b16 %v274
    %v1620 = vunpack.c.l.b16 %v275
    %v1621 = vunpack.c.h.b16 %v275
    %v1622 = vunpack.c.l.b16 %v276
    %v1623 = vunpack.c.h.b16 %v276
    %v1624 = vunpack.c.l.b16 %v277
    %v1625 = vunpack.c.h.b16 %v277
    %v1626 = vunpack.c.l.b16 %v278
    %v1627 = vunpack.c.h.b16 %v278
    %v1628 = vunpack.c.l.b16 %v279
    %v1629 = vunpack.c.h.b16 %v279
    %v1630 = vunpack.c.l.b16 %v280
    %v1631 = vunpack.c.h.b16 %v280
    %v1632 = vunpack.c.l.b16 %v281
    %v1633 = vunpack.c.h.b16 %v281
    %v1634 = vunpack.c.l.b16 %v282
    %v1635 = vunpack.c.h.b16 %v282
    %v1636 = vunpack.c.l.b16 %v283
    %v1637 = vunpack.c.h.b16 %v283
    %v1638 = vunpack.c.l.b16 %v284
    %v1639 = vunpack.c.h.b16 %v284
    %v1640 = vunpack.c.l.b16 %v285
    %v1641 = vunpack.c.h.b16 %v285
    %v1642 = vunpack.c.l.b16 %v286
    %v1643 = vunpack.c.h.b16 %v286
    %v1644 = vunpack.c.l.b16 %v287
    %v1645 = vunpack.c.h.b16 %v287
    %v1646 = vunpack.c.l.b16 %v288
    %v1647 = vunpack.c.h.b16 %v288
    %v1648 = vunpack.c.l.b16 %v289
    %v1649 = vunpack.c.h.b16 %v289
    %v1650 = vunpack.c.l.b16 %v290
    %v1651 = vunpack.c.h.b16 %v290
    %v1652 = vunpack.c.l.b16 %v291
    %v1653 = vunpack.c.h.b16 %v291
    %v1654 = vunpack.c.l.b16 %v292
    %v1655 = vunpack.c.h.b16 %v292
    %v1656 = vunpack.c.l.b16 %v293
    %v1657 = vunpack.c.h.b16 %v293
    %v1658 = vunpack.c.l.b16 %v294
    %v1659 = vunpack.c.h.b16 %v294
    %v1660 = vunpack.c.l.b16 %v295
    %v1661 = vunpack.c.h.b16 %v295
    %v1662 = vunpack.c.l.b16 %v296
    %v1663 = vunpack.c.h.b16 %v296
    %v1664 = vunpack.c.l.b16 %v297
    %v1665 = vunpack.c.h.b16 %v297
    %v1666 = vunpack.c.l.b16 %v298
    %v1667 = vunpack.c.h.b16 %v298
    %v1668 = vunpack.c.l.b16 %v299
    %v1669 = vunpack.c.h.b16 %v299
    %v1670 = vunpack.c.l.b16 %v300
    %v1671 = vunpack.c.h.b16 %v300
    %v1672 = vunpack.c.l.b16 %v301
    %v1673 = vunpack.c.h.b16 %v301
    %v1674 = vunpack.c.l.b16 %v302
    %v1675 = vunpack.c.h.b16 %v302
    %v1676 = vunpack.c.l.b16 %v303
    %v1677 = vunpack.c.h.b16 %v303
    %v1678 = vunpack.c.l.b16 %v304
    %v1679 = vunpack.c.h.b16 %v304
    %v1680 = vunpack.c.l.b16 %v305
    %v1681 = vunpack.c.h.b16 %v305
    %v1682 = vunpack.c.l.b16 %v306
    %v1683 = vunpack.c.h.b16 %v306
    %v1684 = vunpack.c.l.b16 %v307
    %v1685 = vunpack.c.h.b16 %v307
    %v1686 = vunpack.c.l.b16 %v308
    %v1687 = vunpack.c.h.b16 %v308
    %v1688 = vunpack.c.l.b16 %v309
    %v1689 = vunpack.c.h.b16 %v309
    %v1690 = vunpack.c.l.b16 %v310
    %v1691 = vunpack.c.h.b16 %v310
    %v1692 = vunpack.c.l.b16 %v311
    %v1693 = vunpack.c.h.b16 %v311
    %v1694 = vunpack.c.l.b16 %v312
    %v1695 = vunpack.c.h.b16 %v312
    %v1696 = vunpack.c.l.b16 %v313
    %v1697 = vunpack.c.h.b16 %v313
    %v1698 = vunpack.c.l.b16 %v314
    %v1699 = vunpack.c.h.b16 %v314
    %v1700 = vunpack.c.l.b16 %v315
    %v1701 = vunpack.c.h.b16 %v315
    %v1702 = vunpack.c.l.b16 %v316
    %v1703 = vunpack.c.h.b16 %v316
    %v1704 = vunpack.c.l.b16 %v317
    %v1705 = vunpack.c.h.b16 %v317
    %v1706 = vunpack.c.l.b16 %v318
    %v1707 = vunpack.c.h.b16 %v318
    %v1708 = vunpack.c.l.b16 %v319
    %v1709 = vunpack.c.h.b16 %v319
    %v1710 = vunpack.c.l.b16 %v320
    %v1711 = vunpack.c.h.b16 %v320
    %v1712 = vunpack.c.l.b16 %v321
    %v1713 = vunpack.c.h.b16 %v321
    %v1714 = vunpack.c.l.b16 %v322
    %v1715 = vunpack.c.h.b16 %v322
    %v1716 = vunpack.c.l.b16 %v323
    %v1717 = vunpack.c.h.b16 %v323
    %v1718 = vunpack.c.l.b16 %v324
    %v1719 = vunpack.c.h.b16 %v324
    %v1720 = vunpack.c.l.b16 %v325
    %v1721 = vunpack.c.h.b16 %v325
    %v1722 = vunpack.c.l.b16 %v326
    %v1723 = vunpack.c.h.b16 %v326
    %v1724 = vunpack.c.l.b16 %v327
    %v1725 = vunpack.c.h.b16 %v327
    %v1726 = vunpack.c.l.b16 %v328
    %v1727 = vunpack.c.h.b16 %v328
    %v1728 = vunpack.c.l.b16 %v329
    %v1729 = vunpack.c.h.b16 %v329
    %v1730 = vunpack.c.l.b16 %v330
    %v1731 = vunpack.c.h.b16 %v330
    %v1732 = vunpack.c.l.b16 %v331
    %v1733 = vunpack.c.h.b16 %v331
    %v1734 = vunpack.c.l.b16 %v332
    %v1735 = vunpack.c.h.b16 %v332
    %v1736 = vunpack.c.l.b16 %v333
    %v1737 = vunpack.c.h.b16 %v333
    %v1738 = vunpack.c.l.b16 %v334
    %v1739 = vunpack.c.h.b16 %v334
    %v1740 = vunpack.c.l.b16 %v335
    %v1741 = vunpack.c.h.b16 %v335
    %v1742 = vunpack.c.l.b16 %v336
    %v1743 = vunpack.c.h.b16 %v336
    %v1744 = vunpack.c.l.b16 %v337
    %v1745 = vunpack.c.h.b16 %v337
    %v1746 = vunpack.c.l.b16 %v338
    %v1747 = vunpack.c.h.b16 %v338
    %v1748 = vunpack.c.l.b16 %v339
    %v1749 = vunpack.c.h.b16 %v339
    %v1750 = vunpack.c.l.b16 %v340
    %v1751 = vunpack.c.h.b16 %v340
    %v1752 = vunpack.c.l.b16 %v341
    %v1753 = vunpack.c.h.b16 %v341
    %v1754 = vunpack.c.l.b16 %v342
    %v1755 = vunpack.c.h.b16 %v342
    %v1756 = vunpack.c.l.b16 %v343
    %v1757 = vunpack.c.h.b16 %v343
    %v1758 = vunpack.c.l.b16 %v344
    %v1759 = vunpack.c.h.b16 %v344
    %v1760 = vunpack.c.l.b16 %v345
    %v1761 = vunpack.c.h.b16 %v345
    %v1762 = vunpack.c.l.b16 %v346
    %v1763 = vunpack.c.h.b16 %v346
    %v1764 = vunpack.c.l.b16 %v347
    %v1765 = vunpack.c.h.b16 %v347
    %v1766 = vunpack.c.l.b16 %v348
    %v1767 = vunpack.c.h.b16 %v348
    %v1768 = vunpack.c.l.b16 %v349
    %v1769 = vunpack.c.h.b16 %v349
    %v1770 = vunpack.c.l.b16 %v350
    %v1771 = vunpack.c.h.b16 %v350
    %v1772 = vunpack.c.l.b16 %v351
    %v1773 = vunpack.c.h.b16 %v351
    %v1774 = vunpack.c.l.b16 %v352
    %v1775 = vunpack.c.h.b16 %v352
    %v1776 = vunpack.c.l.b16 %v353
    %v1777 = vunpack.c.h.b16 %v353
    %v1778 = vunpack.c.l.b16 %v354
    %v1779 = vunpack.c.h.b16 %v354
    %v1780 = vunpack.c.l.b16 %v355
    %v1781 = vunpack.c.h.b16 %v355
    %v1782 = vunpack.c.l.b16 %v356
    %v1783 = vunpack.c.h.b16 %v356
    %v1784 = vunpack.c.l.b16 %v357
    %v1785 = vunpack.c.h.b16 %v357
    %v1786 = vunpack.c.l.b16 %v358
    %v1787 = vunpack.c.h.b16 %v358
    %v1788 = vunpack.c.l.b16 %v359
    %v1789 = vunpack.c.h.b16 %v359
    %v1790 = vunpack.c.l.b16 %v360
    %v1791 = vunpack.c.h.b16 %v360
    %v1792 = vunpack.c.l.b16 %v361
    %v1793 = vunpack.c.h.b16 %v361
    %v1794 = vunpack.c.l.b16 %v362
    %v1795 = vunpack.c.h.b16 %v362
    %v1796 = vunpack.c.l.b16 %v363
    %v1797 = vunpack.c.h.b16 %v363
    %v1798 = vunpack.c.l.b16 %v364
    %v1799 = vunpack.c.h.b16 %v364
    %v1800 = vunpack.c.l.b16 %v365
    %v1801 = vunpack.c.h.b16 %v365
    %v1802 = vunpack.c.l.b16 %v366
    %v1803 = vunpack.c.h.b16 %v366
    %v1804 = vunpack.c.l.b16 %v367
    %v1805 = vunpack.c.h.b16 %v367
    %v1806 = vunpack.c.l.b16 %v368
    %v1807 = vunpack.c.h.b16 %v368
    %v1808 = vunpack.c.l.b16 %v369
    %v1809 = vunpack.c.h.b16 %v369
    %v1810 = vunpack.c.l.b16 %v370
    %v1811 = vunpack.c.h.b16 %v370
    %v1812 = vunpack.c.l.b16 %v371
    %v1813 = vunpack.c.h.b16 %v371
    %v1814 = vunpack.c.l.b16 %v372
    %v1815 = vunpack.c.h.b16 %v372
    %v1816 = vunpack.c.l.b16 %v373
    %v1817 = vunpack.c.h.b16 %v373
    %v1818 = vunpack.c.l.b16 %v374
    %v1819 = vunpack.c.h.b16 %v374
    %v1820 = vunpack.c.l.b16 %v375
    %v1821 = vunpack.c.h.b16 %v375
    %v1822 = vunpack.c.l.b16 %v376
    %v1823 = vunpack.c.h.b16 %v376
    %v1824 = vunpack.c.l.b16 %v377
    %v1825 = vunpack.c.h.b16 %v377
    %v1826 = vunpack.c.l.b16 %v378
    %v1827 = vunpack.c.h.b16 %v378
    %v1828 = vunpack.c.l.b16 %v379
    %v1829 = vunpack.c.h.b16 %v379
    %v1830 = vunpack.c.l.b16 %v380
    %v1831 = vunpack.c.h.b16 %v380
    %v1832 = vunpack.c.l.b16 %v381
    %v1833 = vunpack.c.h.b16 %v381
    %v1834 = vunpack.c.l.b16 %v382
    %v1835 = vunpack.c.h.b16 %v382
    %v1836 = vunpack.c.l.b16 %v383
    %v1837 = vunpack.c.h.b16 %v383
    %v1838 = vunpack.c.l.b16 %v384
    %v1839 = vunpack.c.h.b16 %v384
    %v1840 = vunpack.c.l.b16 %v385
    %v1841 = vunpack.c.h.b16 %v385
    %v1842 = vunpack.c.l.b16 %v386
    %v1843 = vunpack.c.h.b16 %v386
    %v1844 = vunpack.c.l.b16 %v387
    %v1845 = vunpack.c.h.b16 %v387
    %v1846 = vunpack.c.l.b16 %v388
    %v1847 = vunpack.c.h.b16 %v388
    %v1848 = vunpack.c.l.b16 %v389
    %v1849 = vunpack.c.h.b16 %v389
    %v1850 = vunpack.c.l.b16 %v390
    %v1851 = vunpack.c.h.b16 %v390
    %v1852 = vunpack.c.l.b16 %v391
    %v1853 = vunpack.c.h.b16 %v391
    %v1854 = vunpack.c.l.b16 %v392
    %v1855 = vunpack.c.h.b16 %v392
    %v1856 = vunpack.c.l.b16 %v393
    %v1857 = vunpack.c.h.b16 %v393
    %v1858 = vunpack.c.l.b16 %v394
    %v1859 = vunpack.c.h.b16 %v394
    %v1860 = vunpack.c.l.b16 %v395
    %v1861 = vunpack.c.h.b16 %v395
    %v1862 = vunpack.c.l.b16 %v396
    %v1863 = vunpack.c.h.b16 %v396
    %v1864 = vunpack.c.l.b16 %v397
    %v1865 = vunpack.c.h.b16 %v397
    %v1866 = vunpack.c.l.b16 %v398
    %v1867 = vunpack.c.h.b16 %v398
    %v1868 = vunpack.c.l.b16 %v399
    %v1869 = vunpack.c.h.b16 %v399
    %v1870 = vunpack.c.l.b16 %v400
    %v1871 = vunpack.c.h.b16 %v400
    %v1872 = vunpack.c.l.b16 %v401
    %v1873 = vunpack.c.h.b16 %v401
    %v1874 = vunpack.c.l.b16 %v402
    %v1875 = vunpack.c.h.b16 %v402
    %v1876 = vunpack.c.l.b16 %v403
    %v1877 = vunpack.c.h.b16 %v403
    %v1878 = vunpack.c.l.b16 %v404
    %v1879 = vunpack.c.h.b16 %v404
    %v1880 = vunpack.c.l.b16 %v405
    %v1881 = vunpack.c.h.b16 %v405
    %v1882 = vunpack.c.l.b16 %v406
    %v1883 = vunpack.c.h.b16 %v406
    %v1884 = vunpack.c.l.b16 %v407
    %v1885 = vunpack.c.h.b16 %v407
    %v1886 = vunpack.c.l.b16 %v408
    %v1887 = vunpack.c.h.b16 %v408
    %v1888 = vunpack.c.l.b16 %v409
    %v1889 = vunpack.c.h.b16 %v409
    %v1890 = vunpack.c.l.b16 %v410
    %v1891 = vunpack.c.h.b16 %v410
    %v1892 = vunpack.c.l.b16 %v411
    %v1893 = vunpack.c.h.b16 %v411
    %v1894 = vunpack.c.l.b16 %v412
    %v1895 = vunpack.c.h.b16 %v412
    %v1896 = vunpack.c.l.b16 %v413
    %v1897 = vunpack.c.h.b16 %v413
    %v1898 = vunpack.c.l.b16 %v414
    %v1899 = vunpack.c.h.b16 %v414
    %v1900 = vunpack.c.l.b16 %v415
    %v1901 = vunpack.c.h.b16 %v415
    %v1902 = vunpack.c.l.b16 %v416
    %v1903 = vunpack.c.h.b16 %v416
    %v1904 = vunpack.c.l.b16 %v417
    %v1905 = vunpack.c.h.b16 %v417
    %v1906 = vunpack.c.l.b16 %v418
    %v1907 = vunpack.c.h.b16 %v418
    %v1908 = vunpack.c.l.b16 %v419
    %v1909 = vunpack.c.h.b16 %v419
    %v1910 = vunpack.c.l.b16 %v420
    %v1911 = vunpack.c.h.b16 %v420
    %v1912 = vunpack.c.l.b16 %v421
    %v1913 = vunpack.c.h.b16 %v421
    %v1914 = vunpack.c.l.b16 %v422
    %v1915 = vunpack.c.h.b16 %v422
    %v1916 = vunpack.c.l.b16 %v423
    %v1917 = vunpack.c.h.b16 %v423
    %v1918 = vunpack.c.l.b16 %v424
    %v1919 = vunpack.c.h.b16 %v424
    %v1920 = vunpack.c.l.b16 %v425
    %v1921 = vunpack.c.h.b16 %v425
    %v1922 = vunpack.c.l.b16 %v426
    %v1923 = vunpack.c.h.b16 %v426
    %v1924 = vunpack.c.l.b16 %v427
    %v1925 = vunpack.c.h.b16 %v427
    %v1926 = vunpack.c.l.b16 %v428
    %v1927 = vunpack.c.h.b16 %v428
    %v1928 = vunpack.c.l.b16 %v429
    %v1929 = vunpack.c.h.b16 %v429
    %v1930 = vunpack.c.l.b16 %v430
    %v1931 = vunpack.c.h.b16 %v430
    %v1932 = vunpack.c.l.b16 %v431
    %v1933 = vunpack.c.h.b16 %v431
    %v1934 = vunpack.c.l.b16 %v432
    %v1935 = vunpack.c.h.b16 %v432
    %v1936 = vunpack.c.l.b16 %v433
    %v1937 = vunpack.c.h.b16 %v433
    %v1938 = vunpack.c.l.b16 %v434
    %v1939 = vunpack.c.h.b16 %v434
    %v1940 = vunpack.c.l.b16 %v435
    %v1941 = vunpack.c.h.b16 %v435
    %v1942 = vunpack.c.l.b16 %v436
    %v1943 = vunpack.c.h.b16 %v436
    %v1944 = vunpack.c.l.b16 %v437
    %v1945 = vunpack.c.h.b16 %v437
    %v1946 = vunpack.c.l.b16 %v438
    %v1947 = vunpack.c.h.b16 %v438
    %v1948 = vunpack.c.l.b16 %v439
    %v1949 = vunpack.c.h.b16 %v439
    %v1950 = vunpack.c.l.b16 %v440
    %v1951 = vunpack.c.h.b16 %v440
    %v1952 = vunpack.c.l.b16 %v441
    %v1953 = vunpack.c.h.b16 %v441
    %v1954 = vunpack.c.l.b16 %v442
    %v1955 = vunpack.c.h.b16 %v442
    %v1956 = vunpack.c.l.b16 %v443
    %v1957 = vunpack.c.h.b16 %v443
    %v1958 = vunpack.c.l.b16 %v444
    %v1959 = vunpack.c.h.b16 %v444
    %v1960 = vunpack.c.l.b16 %v445
    %v1961 = vunpack.c.h.b16 %v445
    %v1962 = vunpack.c.l.b16 %v446
    %v1963 = vunpack.c.h.b16 %v446
    %v1964 = vunpack.c.l.b16 %v447
    %v1965 = vunpack.c.h.b16 %v447
    %v1966 = vunpack.c.l.b16 %v448
    %v1967 = vunpack.c.h.b16 %v448
    %v1968 = vunpack.c.l.b16 %v449
    %v1969 = vunpack.c.h.b16 %v449
    %v1970 = vunpack.c.l.b16 %v450
    %v1971 = vunpack.c.h.b16 %v450
    %v1972 = vunpack.c.l.b16 %v451
    %v1973 = vunpack.c.h.b16 %v451
    %v1974 = vunpack.c.l.b16 %v452
    %v1975 = vunpack.c.h.b16 %v452
    %v1976 = vunpack.c.l.b16 %v453
    %v1977 = vunpack.c.h.b16 %v453
    %v1978 = vunpack.c.l.b16 %v454
    %v1979 = vunpack.c.h.b16 %v454
    %v1980 = vunpack.c.l.b16 %v455
    %v1981 = vunpack.c.h.b16 %v455
    %v1982 = vunpack.c.l.b16 %v456
    %v1983 = vunpack.c.h.b16 %v456
    %v1984 = vunpack.c.l.b16 %v457
    %v1985 = vunpack.c.h.b16 %v457
    %v1986 = vunpack.c.l.b16 %v458
    %v1987 = vunpack.c.h.b16 %v458
    %v1988 = vunpack.c.l.b16 %v459
    %v1989 = vunpack.c.h.b16 %v459
    %v1990 = vunpack.c.l.b16 %v460
    %v1991 = vunpack.c.h.b16 %v460
    %v1992 = vunpack.c.l.b16 %v461
    %v1993 = vunpack.c.h.b16 %v461
    %v1994 = vunpack.c.l.b16 %v462
    %v1995 = vunpack.c.h.b16 %v462
    %v1996 = vunpack.c.l.b16 %v463
    %v1997 = vunpack.c.h.b16 %v463
    %v1998 = vunpack.c.l.b16 %v464
    %v1999 = vunpack.c.h.b16 %v464
    %v2000 = vunpack.c.l.b16 %v465
    %v2001 = vunpack.c.h.b16 %v465
    %v2002 = vunpack.c.l.b16 %v466
    %v2003 = vunpack.c.h.b16 %v466
    %v2004 = vunpack.c.l.b16 %v467
    %v2005 = vunpack.c.h.b16 %v467
    %v2006 = vunpack.c.l.b16 %v468
    %v2007 = vunpack.c.h.b16 %v468
    %v2008 = vunpack.c.l.b16 %v469
    %v2009 = vunpack.c.h.b16 %v469
    %v2010 = vunpack.c.l.b16 %v470
    %v2011 = vunpack.c.h.b16 %v470
    %v2012 = vunpack.c.l.b16 %v471
    %v2013 = vunpack.c.h.b16 %v471
    %v2014 = vunpack.c.l.b16 %v472
    %v2015 = vunpack.c.h.b16 %v472
    %v2016 = vunpack.c.l.b16 %v473
    %v2017 = vunpack.c.h.b16 %v473
    %v2018 = vunpack.c.l.b16 %v474
    %v2019 = vunpack.c.h.b16 %v474
    %v2020 = vunpack.c.l.b16 %v475
    %v2021 = vunpack.c.h.b16 %v475
    %v2022 = vunpack.c.l.b16 %v476
    %v2023 = vunpack.c.h.b16 %v476
    %v2024 = vunpack.c.l.b16 %v477
    %v2025 = vunpack.c.h.b16 %v477
    %v2026 = vunpack.c.l.b16 %v478
    %v2027 = vunpack.c.h.b16 %v478
    %v2028 = vunpack.c.l.b16 %v479
    %v2029 = vunpack.c.h.b16 %v479
    %v2030 = vunpack.c.l.b16 %v480
    %v2031 = vunpack.c.h.b16 %v480
    %v2032 = vunpack.c.l.b16 %v481
    %v2033 = vunpack.c.h.b16 %v481
    %v2034 = vunpack.c.l.b16 %v482
    %v2035 = vunpack.c.h.b16 %v482
    %v2036 = vunpack.c.l.b16 %v483
    %v2037 = vunpack.c.h.b16 %v483
    %v2038 = vunpack.c.l.b16 %v484
    %v2039 = vunpack.c.h.b16 %v484
    %v2040 = vunpack.c.l.b16 %v485
    %v2041 = vunpack.c.h.b16 %v485
    %v2042 = vunpack.c.l.b16 %v486
    %v2043 = vunpack.c.h.b16 %v486
    %v2044 = vunpack.c.l.b16 %v487
    %v2045 = vunpack.c.h.b16 %v487
    %v2046 = vunpack.c.l.b16 %v488
    %v2047 = vunpack.c.h.b16 %v488
    %v2048 = vunpack.c.l.b16 %v489
    %v2049 = vunpack.c.h.b16 %v489
    %v2050 = vunpack.c.l.b16 %v490
    %v2051 = vunpack.c.h.b16 %v490
    %v2052 = vunpack.c.l.b16 %v491
    %v2053 = vunpack.c.h.b16 %v491
    %v2054 = vunpack.c.l.b16 %v492
    %v2055 = vunpack.c.h.b16 %v492
    %v2056 = vunpack.c.l.b16 %v493
    %v2057 = vunpack.c.h.b16 %v493
    %v2058 = vunpack.c.l.b16 %v494
    %v2059 = vunpack.c.h.b16 %v494
    %v2060 = vunpack.c.l.b16 %v495
    %v2061 = vunpack.c.h.b16 %v495
    %v2062 = vunpack.c.l.b16 %v496
    %v2063 = vunpack.c.h.b16 %v496
    %v2064 = vunpack.c.l.b16 %v497
    %v2065 = vunpack.c.h.b16 %v497
    %v2066 = vunpack.c.l.b16 %v498
    %v2067 = vunpack.c.h.b16 %v498
    %v2068 = vunpack.c.l.b16 %v499
    %v2069 = vunpack.c.h.b16 %v499
    %v2070 = vunpack.c.l.b16 %v500
    %v2071 = vunpack.c.h.b16 %v500
    %v2072 = vunpack.c.l.b16 %v501
    %v2073 = vunpack.c.h.b16 %v501
    %v2074 = vunpack.c.l.b16 %v502
    %v2075 = vunpack.c.h.b16 %v502
    %v2076 = vunpack.c.l.b16 %v503
    %v2077 = vunpack.c.h.b16 %v503
    %v2078 = vunpack.c.l.b16 %v504
    %v2079 = vunpack.c.h.b16 %v504
    %v2080 = vunpack.c.l.b16 %v505
    %v2081 = vunpack.c.h.b16 %v505
    %v2082 = vunpack.c.l.b16 %v506
    %v2083 = vunpack.c.h.b16 %v506
    %v2084 = vunpack.c.l.b16 %v507
    %v2085 = vunpack.c.h.b16 %v507
    %v2086 = vunpack.c.l.b16 %v508
    %v2087 = vunpack.c.h.b16 %v508
    %v2088 = vunpack.c.l.b16 %v509
    %v2089 = vunpack.c.h.b16 %v509
    %v2090 = vunpack.c.l.b16 %v510
    %v2091 = vunpack.c.h.b16 %v510
    %v2092 = vunpack.c.l.b16 %v511
    %v2093 = vunpack.c.h.b16 %v511
    %v2094 = vunpack.c.l.b16 %v512
    %v2095 = vunpack.c.h.b16 %v512
    %v2096 = vunpack.c.l.b16 %v513
    %v2097 = vunpack.c.h.b16 %v513
    %v2098 = vunpack.c.l.b16 %v514
    %v2099 = vunpack.c.h.b16 %v514
    %v2100 = vunpack.c.l.b16 %v515
    %v2101 = vunpack.c.h.b16 %v515
    %v2102 = vunpack.c.l.b16 %v516
    %v2103 = vunpack.c.h.b16 %v516
    %v2104 = vunpack.c.l.b16 %v517
    %v2105 = vunpack.c.h.b16 %v517
    %v2106 = vunpack.c.l.b16 %v518
    %v2107 = vunpack.c.h.b16 %v518
    %v2108 = vunpack.c.l.b16 %v519
    %v2109 = vunpack.c.h.b16 %v519
    %v2110 = vunpack.c.l.b16 %v520
    %v2111 = vunpack.c.h.b16 %v520
    %v2112 = vunpack.c.l.b16 %v521
    %v2113 = vunpack.c.h.b16 %v521
    %v2114 = vunpack.c.l.b16 %v522
    %v2115 = vunpack.c.h.b16 %v522
    %v2116 = vunpack.c.l.b16 %v523
    %v2117 = vunpack.c.h.b16 %v523
    %v2118 = vunpack.c.l.b16 %v524
    %v2119 = vunpack.c.h.b16 %v524
    %v2120 = vunpack.c.l.b16 %v525
    %v2121 = vunpack.c.h.b16 %v525
    %v2122 = vunpack.c.l.b16 %v526
    %v2123 = vunpack.c.h.b16 %v526
    %v2124 = vunpack.c.l.b16 %v527
    %v2125 = vunpack.c.h.b16 %v527
    %v2126 = vunpack.c.l.b16 %v528
    %v2127 = vunpack.c.h.b16 %v528
    %v2128 = vunpack.c.l.b16 %v529
    %v2129 = vunpack.c.h.b16 %v529
    %v2130 = vunpack.c.l.b16 %v530
    %v2131 = vunpack.c.h.b16 %v530
    %v2132 = vunpack.c.l.b16 %v531
    %v2133 = vunpack.c.h.b16 %v531
    %v2134 = vunpack.c.l.b16 %v532
    %v2135 = vunpack.c.h.b16 %v532
    %v2136 = vunpack.c.l.b16 %v533
    %v2137 = vunpack.c.h.b16 %v533
    %v2138 = vunpack.c.l.b16 %v534
    %v2139 = vunpack.c.h.b16 %v534
    %v2140 = vunpack.c.l.b16 %v535
    %v2141 = vunpack.c.h.b16 %v535
    %v2142 = vunpack.c.l.b16 %v536
    %v2143 = vunpack.c.h.b16 %v536
    %v2144 = vunpack.c.l.b16 %v537
    %v2145 = vunpack.c.h.b16 %v537
    %v2146 = vunpack.c.l.b16 %v538
    %v2147 = vunpack.c.h.b16 %v538
    %v2148 = vunpack.c.l.b16 %v539
    %v2149 = vunpack.c.h.b16 %v539
    %v2150 = vunpack.c.l.b16 %v540
    %v2151 = vunpack.c.h.b16 %v540
    %v2152 = vunpack.c.l.b16 %v541
    %v2153 = vunpack.c.h.b16 %v541
    %v2154 = vunpack.c.l.b16 %v542
    %v2155 = vunpack.c.h.b16 %v542
    %v2156 = vunpack.c.l.b16 %v543
    %v2157 = vunpack.c.h.b16 %v543
    %v2158 = vunpack.c.l.b16 %v544
    %v2159 = vunpack.c.h.b16 %v544
    %v2160 = vunpack.c.l.b16 %v545
    %v2161 = vunpack.c.h.b16 %v545
    %v2162 = vunpack.c.l.b16 %v546
    %v2163 = vunpack.c.h.b16 %v546
    %v2164 = vunpack.c.l.b16 %v547
    %v2165 = vunpack.c.h.b16 %v547
    %v2166 = vunpack.c.l.b16 %v548
    %v2167 = vunpack.c.h.b16 %v548
    %v2168 = vunpack.c.l.b16 %v549
    %v2169 = vunpack.c.h.b16 %v549
    %v2170 = vunpack.c.l.b16 %v550
    %v2171 = vunpack.c.h.b16 %v550
    %v2172 = vunpack.c.l.b16 %v551
    %v2173 = vunpack.c.h.b16 %v551
    %v2174 = vunpack.c.l.b16 %v552
    %v2175 = vunpack.c.h.b16 %v552
    %v2176 = vunpack.c.l.b16 %v553
    %v2177 = vunpack.c.h.b16 %v553
    %v2178 = vunpack.c.l.b16 %v554
    %v2179 = vunpack.c.h.b16 %v554
    %v2180 = vunpack.c.l.b16 %v555
    %v2181 = vunpack.c.h.b16 %v555
    %v2182 = vunpack.c.l.b16 %v556
    %v2183 = vunpack.c.h.b16 %v556
    %v2184 = vunpack.c.l.b16 %v557
    %v2185 = vunpack.c.h.b16 %v557
    %v2186 = vunpack.c.l.b16 %v558
    %v2187 = vunpack.c.h.b16 %v558
    %v2188 = vunpack.c.l.b16 %v559
    %v2189 = vunpack.c.h.b16 %v559
    %v2190 = vunpack.c.l.b16 %v560
    %v2191 = vunpack.c.h.b16 %v560
    %v2192 = vunpack.c.l.b16 %v561
    %v2193 = vunpack.c.h.b16 %v561
    %v2194 = vunpack.c.l.b16 %v562
    %v2195 = vunpack.c.h.b16 %v562
    %v2196 = vunpack.c.l.b16 %v563
    %v2197 = vunpack.c.h.b16 %v563
    %v2198 = vunpack.c.l.b16 %v564
    %v2199 = vunpack.c.h.b16 %v564
    %v2200 = vunpack.c.l.b16 %v565
    %v2201 = vunpack.c.h.b16 %v565
    %v2202 = vunpack.c.l.b16 %v566
    %v2203 = vunpack.c.h.b16 %v566
    %v2204 = vunpack.c.l.b16 %v567
    %v2205 = vunpack.c.h.b16 %v567
    %v2206 = vunpack.c.l.b16 %v568
    %v2207 = vunpack.c.h.b16 %v568
    %v2208 = vunpack.c.l.b16 %v569
    %v2209 = vunpack.c.h.b16 %v569
    %v2210 = vunpack.c.l.b16 %v570
    %v2211 = vunpack.c.h.b16 %v570
    %v2212 = vunpack.c.l.b16 %v571
    %v2213 = vunpack.c.h.b16 %v571
    %v2214 = vunpack.c.l.b16 %v572
    %v2215 = vunpack.c.h.b16 %v572
    %v2216 = vunpack.c.l.b16 %v573
    %v2217 = vunpack.c.h.b16 %v573
    %v2218 = vunpack.c.l.b16 %v574
    %v2219 = vunpack.c.h.b16 %v574
    %v2220 = vunpack.c.l.b16 %v575
    %v2221 = vunpack.c.h.b16 %v575
    %v2222 = vunpack.c.l.b16 %v576
    %v2223 = vunpack.c.h.b16 %v576
    %v2224 = vunpack.c.l.b16 %v577
    %v2225 = vunpack.c.h.b16 %v577
    %v2226 = vunpack.c.l.b16 %v578
    %v2227 = vunpack.c.h.b16 %v578
    %v2228 = vunpack.c.l.b16 %v579
    %v2229 = vunpack.c.h.b16 %v579
    %v2230 = vunpack.c.l.b16 %v580
    %v2231 = vunpack.c.h.b16 %v580
    %v2232 = vunpack.c.l.b16 %v581
    %v2233 = vunpack.c.h.b16 %v581
    %v2234 = vunpack.c.l.b16 %v582
    %v2235 = vunpack.c.h.b16 %v582
    %v2236 = vunpack.c.l.b16 %v583
    %v2237 = vunpack.c.h.b16 %v583
    %v2238 = vunpack.c.l.b16 %v584
    %v2239 = vunpack.c.h.b16 %v584
    %v2240 = vunpack.c.l.b16 %v585
    %v2241 = vunpack.c.h.b16 %v585
    %v2242 = vunpack.c.l.b16 %v586
    %v2243 = vunpack.c.h.b16 %v586
    %v2244 = vunpack.c.l.b16 %v587
    %v2245 = vunpack.c.h.b16 %v587
    %v2246 = vunpack.c.l.b16 %v588
    %v2247 = vunpack.c.h.b16 %v588
    %v2248 = vunpack.c.l.b16 %v589
    %v2249 = vunpack.c.h.b16 %v589
    %v2250 = vunpack.c.l.b16 %v590
    %v2251 = vunpack.c.h.b16 %v590
    %v2252 = vunpack.c.l.b16 %v591
    %v2253 = vunpack.c.h.b16 %v591
    %v2254 = vunpack.c.l.b16 %v592
    %v2255 = vunpack.c.h.b16 %v592
    %v2256 = vunpack.c.l.b16 %v593
    %v2257 = vunpack.c.h.b16 %v593
    %v2258 = vunpack.c.l.b16 %v594
    %v2259 = vunpack.c.h.b16 %v594
    %v2260 = vunpack.c.l.b16 %v595
    %v2261 = vunpack.c.h.b16 %v595
    %v2262 = vunpack.c.l.b16 %v596
    %v2263 = vunpack.c.h.b16 %v596
    %v2264 = vunpack.c.l.b16 %v597
    %v2265 = vunpack.c.h.b16 %v597
    %v2266 = vunpack.c.l.b16 %v598
    %v2267 = vunpack.c.h.b16 %v598
    %v2268 = vunpack.c.l.b16 %v599
    %v2269 = vunpack.c.h.b16 %v599
    %v2270 = vunpack.c.l.b16 %v600
    %v2271 = vunpack.c.h.b16 %v600
    %v2272 = vunpack.c.l.b16 %v601
    %v2273 = vunpack.c.h.b16 %v601
    %v2274 = vunpack.c.l.b16 %v602
    %v2275 = vunpack.c.h.b16 %v602
    %v2276 = vunpack.c.l.b16 %v603
    %v2277 = vunpack.c.h.b16 %v603
    %v2278 = vunpack.c.l.b16 %v604
    %v2279 = vunpack.c.h.b16 %v604
    %v2280 = vunpack.c.l.b16 %v605
    %v2281 = vunpack.c.h.b16 %v605
    %v2282 = vunpack.c.l.b16 %v606
    %v2283 = vunpack.c.h.b16 %v606
    %v2284 = vunpack.c.l.b16 %v607
    %v2285 = vunpack.c.h.b16 %v607
    %v2286 = vunpack.c.l.b16 %v608
    %v2287 = vunpack.c.h.b16 %v608
    %v2288 = vunpack.c.l.b16 %v609
    %v2289 = vunpack.c.h.b16 %v609
    %v2290 = vunpack.c.l.b16 %v610
    %v2291 = vunpack.c.h.b16 %v610
    %v2292 = vunpack.c.l.b16 %v611
    %v2293 = vunpack.c.h.b16 %v611
    %v2294 = vunpack.c.l.b16 %v612
    %v2295 = vunpack.c.h.b16 %v612
    %v2296 = vunpack.c.l.b16 %v613
    %v2297 = vunpack.c.h.b16 %v613
    %v2298 = vunpack.c.l.b16 %v614
    %v2299 = vunpack.c.h.b16 %v614
    %v2300 = vunpack.c.l.b16 %v615
    %v2301 = vunpack.c.h.b16 %v615
    %v2302 = vunpack.c.l.b16 %v616
    %v2303 = vunpack.c.h.b16 %v616
    %v2304 = vunpack.c.l.b16 %v617
    %v2305 = vunpack.c.h.b16 %v617
    %v2306 = vunpack.c.l.b16 %v618
    %v2307 = vunpack.c.h.b16 %v618
    %v2308 = vunpack.c.l.b16 %v619
    %v2309 = vunpack.c.h.b16 %v619
    %v2310 = vunpack.c.l.b16 %v620
    %v2311 = vunpack.c.h.b16 %v620
    %v2312 = vunpack.c.l.b16 %v621
    %v2313 = vunpack.c.h.b16 %v621
    %v2314 = vunpack.c.l.b16 %v622
    %v2315 = vunpack.c.h.b16 %v622
    %v2316 = vunpack.c.l.b16 %v623
    %v2317 = vunpack.c.h.b16 %v623
    %v2318 = vunpack.c.l.b16 %v624
    %v2319 = vunpack.c.h.b16 %v624
    %v2320 = vunpack.c.l.b16 %v625
    %v2321 = vunpack.c.h.b16 %v625
    %v2322 = vunpack.c.l.b16 %v626
    %v2323 = vunpack.c.h.b16 %v626
    %v2324 = vunpack.c.l.b16 %v627
    %v2325 = vunpack.c.h.b16 %v627
    %v2326 = vunpack.c.l.b16 %v628
    %v2327 = vunpack.c.h.b16 %v628
    %v2328 = vunpack.c.l.b16 %v629
    %v2329 = vunpack.c.h.b16 %v629
    %v2330 = vunpack.c.l.b16 %v630
    %v2331 = vunpack.c.h.b16 %v630
    %v2332 = vunpack.c.l.b16 %v631
    %v2333 = vunpack.c.h.b16 %v631
    %v2334 = vunpack.c.l.b16 %v632
    %v2335 = vunpack.c.h.b16 %v632
    %v2336 = vunpack.c.l.b16 %v633
    %v2337 = vunpack.c.h.b16 %v633
    %v2338 = vunpack.c.l.b16 %v634
    %v2339 = vunpack.c.h.b16 %v634
    %v2340 = vunpack.c.l.b16 %v635
    %v2341 = vunpack.c.h.b16 %v635
    %v2342 = vunpack.c.l.b16 %v636
    %v2343 = vunpack.c.h.b16 %v636
    %v2344 = vunpack.c.l.b16 %v637
    %v2345 = vunpack.c.h.b16 %v637
    %v2346 = vunpack.c.l.b16 %v638
    %v2347 = vunpack.c.h.b16 %v638
    %v2348 = vunpack.c.l.b16 %v639
    %v2349 = vunpack.c.h.b16 %v639
    %v2350 = vunpack.c.l.b16 %v640
    %v2351 = vunpack.c.h.b16 %v640
    %v2352 = vunpack.c.l.b16 %v641
    %v2353 = vunpack.c.h.b16 %v641
    %v2354 = vunpack.c.l.b16 %v642
    %v2355 = vunpack.c.h.b16 %v642
    %v2356 = vunpack.c.l.b16 %v643
    %v2357 = vunpack.c.h.b16 %v643
    %v2358 = vunpack.c.l.b16 %v644
    %v2359 = vunpack.c.h.b16 %v644
    %v2360 = vunpack.c.l.b16 %v645
    %v2361 = vunpack.c.h.b16 %v645
    %v2362 = vunpack.c.l.b16 %v646
    %v2363 = vunpack.c.h.b16 %v646
    %v2364 = vunpack.c.l.b16 %v647
    %v2365 = vunpack.c.h.b16 %v647
    %v2366 = vunpack.c.l.b16 %v648
    %v2367 = vunpack.c.h.b16 %v648
    %v2368 = vunpack.c.l.b16 %v649
    %v2369 = vunpack.c.h.b16 %v649
    %v2370 = vunpack.c.l.b16 %v650
    %v2371 = vunpack.c.h.b16 %v650
    %v2372 = vunpack.c.l.b16 %v651
    %v2373 = vunpack.c.h.b16 %v651
    %v2374 = vunpack.c.l.b16 %v652
    %v2375 = vunpack.c.h.b16 %v652
    %v2376 = vunpack.c.l.b16 %v653
    %v2377 = vunpack.c.h.b16 %v653
    %v2378 = vunpack.c.l.b16 %v654
    %v2379 = vunpack.c.h.b16 %v654
    %v2380 = vunpack.c.l.b16 %v655
    %v2381 = vunpack.c.h.b16 %v655
    %v2382 = vunpack.c.l.b16 %v656
    %v2383 = vunpack.c.h.b16 %v656
    %v2384 = vunpack.c.l.b16 %v657
    %v2385 = vunpack.c.h.b16 %v657
    %v2386 = vpack.c.b16 %v1240, %v1234
    %v2387 = vpack.c.b16 %v1241, %v1235
    %v2388 = vpack.c.b16 %v1242, %v1236
    %v2389 = vpack.c.b16 %v1243, %v1237
    %v2390 = vpack.c.b16 %v1244, %v1238
    %v2391 = vpack.c.b16 %v1245, %v1239
    %v2392 = vpack.c.b16 %v1252, %v1246
    %v2393 = vpack.c.b16 %v1253, %v1247
    %v2394 = vpack.c.b16 %v1254, %v1248
    %v2395 = vpack.c.b16 %v1255, %v1249
    %v2396 = vpack.c.b16 %v1256, %v1250
    %v2397 = vpack.c.b16 %v1257, %v1251
    %v2398 = vpack.c.b16 %v1264, %v1258
    %v2399 = vpack.c.b16 %v1265, %v1259
    %v2400 = vpack.c.b16 %v1266, %v1260
    %v2401 = vpack.c.b16 %v1267, %v1261
    %v2402 = vpack.c.b16 %v1268, %v1262
    %v2403 = vpack.c.b16 %v1269, %v1263
    %v2404 = vpack.c.b16 %v1276, %v1270
    %v2405 = vpack.c.b16 %v1277, %v1271
    %v2406 = vpack.c.b16 %v1278, %v1272
    %v2407 = vpack.c.b16 %v1279, %v1273
    %v2408 = vpack.c.b16 %v1280, %v1274
    %v2409 = vpack.c.b16 %v1281, %v1275
    %v2410 = vpack.c.b16 %v1288, %v1282
    %v2411 = vpack.c.b16 %v1289, %v1283
    %v2412 = vpack.c.b16 %v1290, %v1284
    %v2413 = vpack.c.b16 %v1291, %v1285
    %v2414 = vpack.c.b16 %v1292, %v1286
    %v2415 = vpack.c.b16 %v1293, %v1287
    %v2416 = vpack.c.b16 %v1300, %v1294
    %v2417 = vpack.c.b16 %v1301, %v1295
    %v2418 = vpack.c.b16 %v1302, %v1296
    %v2419 = vpack.c.b16 %v1303, %v1297
    %v2420 = vpack.c.b16 %v1304, %v1298
    %v2421 = vpack.c.b16 %v1305, %v1299
    %v2422 = vpack.c.b16 %v1312, %v1306
    %v2423 = vpack.c.b16 %v1313, %v1307
    %v2424 = vpack.c.b16 %v1314, %v1308
    %v2425 = vpack.c.b16 %v1315, %v1309
    %v2426 = vpack.c.b16 %v1316, %v1310
    %v2427 = vpack.c.b16 %v1317, %v1311
    %v2428 = vpack.c.b16 %v1324, %v1318
    %v2429 = vpack.c.b16 %v1325, %v1319
    %v2430 = vpack.c.b16 %v1326, %v1320
    %v2431 = vpack.c.b16 %v1327, %v1321
    %v2432 = vpack.c.b16 %v1328, %v1322
    %v2433 = vpack.c.b16 %v1329, %v1323
    %v2434 = vpack.c.b16 %v1336, %v1330
    %v2435 = vpack.c.b16 %v1337, %v1331
    %v2436 = vpack.c.b16 %v1338, %v1332
    %v2437 = vpack.c.b16 %v1339, %v1333
    %v2438 = vpack.c.b16 %v1340, %v1334
    %v2439 = vpack.c.b16 %v1341, %v1335
    %v2440 = vpack.c.b16 %v1348, %v1342
    %v2441 = vpack.c.b16 %v1349, %v1343
    %v2442 = vpack.c.b16 %v1350, %v1344
    %v2443 = vpack.c.b16 %v1351, %v1345
    %v2444 = vpack.c.b16 %v1352, %v1346
    %v2445 = vpack.c.b16 %v1353, %v1347
    %v2446 = vpack.c.b16 %v1360, %v1354
    %v2447 = vpack.c.b16 %v1361, %v1355
    %v2448 = vpack.c.b16 %v1362, %v1356
    %v2449 = vpack.c.b16 %v1363, %v1357
    %v2450 = vpack.c.b16 %v1364, %v1358
    %v2451 = vpack.c.b16 %v1365, %v1359
    %v2452 = vpack.c.b16 %v1372, %v1366
    %v2453 = vpack.c.b16 %v1373, %v1367
    %v2454 = vpack.c.b16 %v1374, %v1368
    %v2455 = vpack.c.b16 %v1375, %v1369
    %v2456 = vpack.c.b16 %v1376, %v1370
    %v2457 = vpack.c.b16 %v1377, %v1371
    %v2458 = vpack.c.b16 %v1384, %v1378
    %v2459 = vpack.c.b16 %v1385, %v1379
    %v2460 = vpack.c.b16 %v1386, %v1380
    %v2461 = vpack.c.b16 %v1387, %v1381
    %v2462 = vpack.c.b16 %v1388, %v1382
    %v2463 = vpack.c.b16 %v1389, %v1383
    %v2464 = vpack.c.b16 %v1396, %v1390
    %v2465 = vpack.c.b16 %v1397, %v1391
    %v2466 = vpack.c.b16 %v1398, %v1392
    %v2467 = vpack.c.b16 %v1399, %v1393
    %v2468 = vpack.c.b16 %v1400, %v1394
    %v2469 = vpack.c.b16 %v1401, %v1395
    %v2470 = vpack.c.b16 %v1408, %v1402
    %v2471 = vpack.c.b16 %v1409, %v1403
    %v2472 = vpack.c.b16 %v1410, %v1404
    %v2473 = vpack.c.b16 %v1411, %v1405
    %v2474 = vpack.c.b16 %v1412, %v1406
    %v2475 = vpack.c.b16 %v1413, %v1407
    %v2476 = vpack.c.b16 %v1420, %v1414
    %v2477 = vpack.c.b16 %v1421, %v1415
    %v2478 = vpack.c.b16 %v1422, %v1416
    %v2479 = vpack.c.b16 %v1423, %v1417
    %v2480 = vpack.c.b16 %v1424, %v1418
    %v2481 = vpack.c.b16 %v1425, %v1419
    %v2482 = vpack.c.b16 %v1432, %v1426
    %v2483 = vpack.c.b16 %v1433, %v1427
    %v2484 = vpack.c.b16 %v1434, %v1428
    %v2485 = vpack.c.b16 %v1435, %v1429
    %v2486 = vpack.c.b16 %v1436, %v1430
    %v2487 = vpack.c.b16 %v1437, %v1431
    %v2488 = vpack.c.b16 %v1444, %v1438
    %v2489 = vpack.c.b16 %v1445, %v1439
    %v2490 = vpack.c.b16 %v1446, %v1440
    %v2491 = vpack.c.b16 %v1447, %v1441
    %v2492 = vpack.c.b16 %v1448, %v1442
    %v2493 = vpack.c.b16 %v1449, %v1443
    %v2494 = vpack.c.b16 %v1456, %v1450
    %v2495 = vpack.c.b16 %v1457, %v1451
    %v2496 = vpack.c.b16 %v1458, %v1452
    %v2497 = vpack.c.b16 %v1459, %v1453
    %v2498 = vpack.c.b16 %v1460, %v1454
    %v2499 = vpack.c.b16 %v1461, %v1455
    %v2500 = vpack.c.b16 %v1468, %v1462
    %v2501 = vpack.c.b16 %v1469, %v1463
    %v2502 = vpack.c.b16 %v1470, %v1464
    %v2503 = vpack.c.b16 %v1471, %v1465
    %v2504 = vpack.c.b16 %v1472, %v1466
    %v2505 = vpack.c.b16 %v1473, %v1467
    %v2506 = vpack.c.b16 %v1480, %v1474
    %v2507 = vpack.c.b16 %v1481, %v1475
    %v2508 = vpack.c.b16 %v1482, %v1476
    %v2509 = vpack.c.b16 %v1483, %v1477
    %v2510 = vpack.c.b16 %v1484, %v1478
    %v2511 = vpack.c.b16 %v1485, %v1479
    %v2512 = vpack.c.b16 %v1492, %v1486
    %v2513 = vpack.c.b16 %v1493, %v1487
    %v2514 = vpack.c.b16 %v1494, %v1488
    %v2515 = vpack.c.b16 %v1495, %v1489
    %v2516 = vpack.c.b16 %v1496, %v1490
    %v2517 = vpack.c.b16 %v1497, %v1491
    %v2518 = vpack.c.b16 %v1504, %v1498
    %v2519 = vpack.c.b16 %v1505, %v1499
    %v2520 = vpack.c.b16 %v1506, %v1500
    %v2521 = vpack.c.b16 %v1507, %v1501
    %v2522 = vpack.c.b16 %v1508, %v1502
    %v2523 = vpack.c.b16 %v1509, %v1503
    %v2524 = vpack.c.b16 %v1516, %v1510
    %v2525 = vpack.c.b16 %v1517, %v1511
    %v2526 = vpack.c.b16 %v1518, %v1512
    %v2527 = vpack.c.b16 %v1519, %v1513
    %v2528 = vpack.c.b16 %v1520, %v1514
    %v2529 = vpack.c.b16 %v1521, %v1515
    %v2530 = vpack.c.b16 %v1528, %v1522
    %v2531 = vpack.c.b16 %v1529, %v1523
    %v2532 = vpack.c.b16 %v1530, %v1524
    %v2533 = vpack.c.b16 %v1531, %v1525
    %v2534 = vpack.c.b16 %v1532, %v1526
    %v2535 = vpack.c.b16 %v1533, %v1527
    %v2536 = vpack.c.b16 %v1540, %v1534
    %v2537 = vpack.c.b16 %v1541, %v1535
    %v2538 = vpack.c.b16 %v1542, %v1536
    %v2539 = vpack.c.b16 %v1543, %v1537
    %v2540 = vpack.c.b16 %v1544, %v1538
    %v2541 = vpack.c.b16 %v1545, %v1539
    %v2542 = vpack.c.b16 %v1552, %v1546
    %v2543 = vpack.c.b16 %v1553, %v1547
    %v2544 = vpack.c.b16 %v1554, %v1548
    %v2545 = vpack.c.b16 %v1555, %v1549
    %v2546 = vpack.c.b16 %v1556, %v1550
    %v2547 = vpack.c.b16 %v1557, %v1551
    %v2548 = vpack.c.b16 %v1564, %v1558
    %v2549 = vpack.c.b16 %v1565, %v1559
    %v2550 = vpack.c.b16 %v1566, %v1560
    %v2551 = vpack.c.b16 %v1567, %v1561
    %v2552 = vpack.c.b16 %v1568, %v1562
    %v2553 = vpack.c.b16 %v1569, %v1563
    %v2554 = vpack.c.b16 %v1576, %v1570
    %v2555 = vpack.c.b16 %v1577, %v1571
    %v2556 = vpack.c.b16 %v1578, %v1572
    %v2557 = vpack.c.b16 %v1579, %v1573
    %v2558 = vpack.c.b16 %v1580, %v1574
    %v2559 = vpack.c.b16 %v1581, %v1575
    %v2560 = vpack.c.b16 %v1588, %v1582
    %v2561 = vpack.c.b16 %v1589, %v1583
    %v2562 = vpack.c.b16 %v1590, %v1584
    %v2563 = vpack.c.b16 %v1591, %v1585
    %v2564 = vpack.c.b16 %v1592, %v1586
    %v2565 = vpack.c.b16 %v1593, %v1587
    %v2566 = vpack.c.b16 %v1600, %v1594
    %v2567 = vpack.c.b16 %v1601, %v1595
    %v2568 = vpack.c.b16 %v1602, %v1596
    %v2569 = vpack.c.b16 %v1603, %v1597
    %v2570 = vpack.c.b16 %v1604, %v1598
    %v2571 = vpack.c.b16 %v1605, %v1599
    %v2572 = vpack.c.b16 %v1612, %v1606
    %v2573 = vpack.c.b16 %v1613, %v1607
    %v2574 = vpack.c.b16 %v1614, %v1608
    %v2575 = vpack.c.b16 %v1615, %v1609
    %v2576 = vpack.c.b16 %v1616, %v1610
    %v2577 = vpack.c.b16 %v1617, %v1611
    %v2578 = vpack.c.b16 %v1624, %v1618
    %v2579 = vpack.c.b16 %v1625, %v1619
    %v2580 = vpack.c.b16 %v1626, %v1620
    %v2581 = vpack.c.b16 %v1627, %v1621
    %v2582 = vpack.c.b16 %v1628, %v1622
    %v2583 = vpack.c.b16 %v1629, %v1623
    %v2584 = vpack.c.b16 %v1636, %v1630
    %v2585 = vpack.c.b16 %v1637, %v1631
    %v2586 = vpack.c.b16 %v1638, %v1632
    %v2587 = vpack.c.b16 %v1639, %v1633
    %v2588 = vpack.c.b16 %v1640, %v1634
    %v2589 = vpack.c.b16 %v1641, %v1635
    %v2590 = vpack.c.b16 %v1648, %v1642
    %v2591 = vpack.c.b16 %v1649, %v1643
    %v2592 = vpack.c.b16 %v1650, %v1644
    %v2593 = vpack.c.b16 %v1651, %v1645
    %v2594 = vpack.c.b16 %v1652, %v1646
    %v2595 = vpack.c.b16 %v1653, %v1647
    %v2596 = vpack.c.b16 %v1660, %v1654
    %v2597 = vpack.c.b16 %v1661, %v1655
    %v2598 = vpack.c.b16 %v1662, %v1656
    %v2599 = vpack.c.b16 %v1663, %v1657
    %v2600 = vpack.c.b16 %v1664, %v1658
    %v2601 = vpack.c.b16 %v1665, %v1659
    %v2602 = vpack.c.b16 %v1672, %v1666
    %v2603 = vpack.c.b16 %v1673, %v1667
    %v2604 = vpack.c.b16 %v1674, %v1668
    %v2605 = vpack.c.b16 %v1675, %v1669
    %v2606 = vpack.c.b16 %v1676, %v1670
    %v2607 = vpack.c.b16 %v1677, %v1671
    %v2608 = vpack.c.b16 %v1684, %v1678
    %v2609 = vpack.c.b16 %v1685, %v1679
    %v2610 = vpack.c.b16 %v1686, %v1680
    %v2611 = vpack.c.b16 %v1687, %v1681
    %v2612 = vpack.c.b16 %v1688, %v1682
    %v2613 = vpack.c.b16 %v1689, %v1683
    %v2614 = vpack.c.b16 %v1696, %v1690
    %v2615 = vpack.c.b16 %v1697, %v1691
    %v2616 = vpack.c.b16 %v1698, %v1692
    %v2617 = vpack.c.b16 %v1699, %v1693
    %v2618 = vpack.c.b16 %v1700, %v1694
    %v2619 = vpack.c.b16 %v1701, %v1695
    %v2620 = vpack.c.b16 %v1708, %v1702
    %v2621 = vpack.c.b16 %v1709, %v1703
    %v2622 = vpack.c.b16 %v1710, %v1704
    %v2623 = vpack.c.b16 %v1711, %v1705
    %v2624 = vpack.c.b16 %v1712, %v1706
    %v2625 = vpack.c.b16 %v1713, %v1707
    %v2626 = vpack.c.b16 %v1720, %v1714
    %v2627 = vpack.c.b16 %v1721, %v1715
    %v2628 = vpack.c.b16 %v1722, %v1716
    %v2629 = vpack.c.b16 %v1723, %v1717
    %v2630 = vpack.c.b16 %v1724, %v1718
    %v2631 = vpack.c.b16 %v1725, %v1719
    %v2632 = vpack.c.b16 %v1732, %v1726
    %v2633 = vpack.c.b16 %v1733, %v1727
    %v2634 = vpack.c.b16 %v1734, %v1728
    %v2635 = vpack.c.b16 %v1735, %v1729
    %v2636 = vpack.c.b16 %v1736, %v1730
    %v2637 = vpack.c.b16 %v1737, %v1731
    %v2638 = vpack.c.b16 %v1744, %v1738
    %v2639 = vpack.c.b16 %v1745, %v1739
    %v2640 = vpack.c.b16 %v1746, %v1740
    %v2641 = vpack.c.b16 %v1747, %v1741
    %v2642 = vpack.c.b16 %v1748, %v1742
    %v2643 = vpack.c.b16 %v1749, %v1743
    %v2644 = vpack.c.b16 %v1756, %v1750
    %v2645 = vpack.c.b16 %v1757, %v1751
    %v2646 = vpack.c.b16 %v1758, %v1752
    %v2647 = vpack.c.b16 %v1759, %v1753
    %v2648 = vpack.c.b16 %v1760, %v1754
    %v2649 = vpack.c.b16 %v1761, %v1755
    %v2650 = vpack.c.b16 %v1768, %v1762
    %v2651 = vpack.c.b16 %v1769, %v1763
    %v2652 = vpack.c.b16 %v1770, %v1764
    %v2653 = vpack.c.b16 %v1771, %v1765
    %v2654 = vpack.c.b16 %v1772, %v1766
    %v2655 = vpack.c.b16 %v1773, %v1767
    %v2656 = vpack.c.b16 %v1780, %v1774
    %v2657 = vpack.c.b16 %v1781, %v1775
    %v2658 = vpack.c.b16 %v1782, %v1776
    %v2659 = vpack.c.b16 %v1783, %v1777
    %v2660 = vpack.c.b16 %v1784, %v1778
    %v2661 = vpack.c.b16 %v1785, %v1779
    %v2662 = vpack.c.b16 %v1792, %v1786
    %v2663 = vpack.c.b16 %v1793, %v1787
    %v2664 = vpack.c.b16 %v1794, %v1788
    %v2665 = vpack.c.b16 %v1795, %v1789
    %v2666 = vpack.c.b16 %v1796, %v1790
    %v2667 = vpack.c.b16 %v1797, %v1791
    %v2668 = vpack.c.b16 %v1804, %v1798
    %v2669 = vpack.c.b16 %v1805, %v1799
    %v2670 = vpack.c.b16 %v1806, %v1800
    %v2671 = vpack.c.b16 %v1807, %v1801
    %v2672 = vpack.c.b16 %v1808, %v1802
    %v2673 = vpack.c.b16 %v1809, %v1803
    %v2674 = vpack.c.b16 %v1816, %v1810
    %v2675 = vpack.c.b16 %v1817, %v1811
    %v2676 = vpack.c.b16 %v1818, %v1812
    %v2677 = vpack.c.b16 %v1819, %v1813
    %v2678 = vpack.c.b16 %v1820, %v1814
    %v2679 = vpack.c.b16 %v1821, %v1815
    %v2680 = vpack.c.b16 %v1828, %v1822
    %v2681 = vpack.c.b16 %v1829, %v1823
    %v2682 = vpack.c.b16 %v1830, %v1824
    %v2683 = vpack.c.b16 %v1831, %v1825
    %v2684 = vpack.c.b16 %v1832, %v1826
    %v2685 = vpack.c.b16 %v1833, %v1827
    %v2686 = vpack.c.b16 %v1840, %v1834
    %v2687 = vpack.c.b16 %v1841, %v1835
    %v2688 = vpack.c.b16 %v1842, %v1836
    %v2689 = vpack.c.b16 %v1843, %v1837
    %v2690 = vpack.c.b16 %v1844, %v1838
    %v2691 = vpack.c.b16 %v1845, %v1839
    %v2692 = vpack.c.b16 %v1852, %v1846
    %v2693 = vpack.c.b16 %v1853, %v1847
    %v2694 = vpack.c.b16 %v1854, %v1848
    %v2695 = vpack.c.b16 %v1855, %v1849
    %v2696 = vpack.c.b16 %v1856, %v1850
    %v2697 = vpack.c.b16 %v1857, %v1851
    %v2698 = vpack.c.b16 %v1864, %v1858
    %v2699 = vpack.c.b16 %v1865, %v1859
    %v2700 = vpack.c.b16 %v1866, %v1860
    %v2701 = vpack.c.b16 %v1867, %v1861
    %v2702 = vpack.c.b16 %v1868, %v1862
    %v2703 = vpack.c.b16 %v1869, %v1863
    %v2704 = vpack.c.b16 %v1876, %v1870
    %v2705 = vpack.c.b16 %v1877, %v1871
    %v2706 = vpack.c.b16 %v1878, %v1872
    %v2707 = vpack.c.b16 %v1879, %v1873
    %v2708 = vpack.c.b16 %v1880, %v1874
    %v2709 = vpack.c.b16 %v1881, %v1875
    %v2710 = vpack.c.b16 %v1888, %v1882
    %v2711 = vpack.c.b16 %v1889, %v1883
    %v2712 = vpack.c.b16 %v1890, %v1884
    %v2713 = vpack.c.b16 %v1891, %v1885
    %v2714 = vpack.c.b16 %v1892, %v1886
    %v2715 = vpack.c.b16 %v1893, %v1887
    %v2716 = vpack.c.b16 %v1900, %v1894
    %v2717 = vpack.c.b16 %v1901, %v1895
    %v2718 = vpack.c.b16 %v1902, %v1896
    %v2719 = vpack.c.b16 %v1903, %v1897
    %v2720 = vpack.c.b16 %v1904, %v1898
    %v2721 = vpack.c.b16 %v1905, %v1899
    %v2722 = vpack.c.b16 %v1912, %v1906
    %v2723 = vpack.c.b16 %v1913, %v1907
    %v2724 = vpack.c.b16 %v1914, %v1908
    %v2725 = vpack.c.b16 %v1915, %v1909
    %v2726 = vpack.c.b16 %v1916, %v1910
    %v2727 = vpack.c.b16 %v1917, %v1911
    %v2728 = vpack.c.b16 %v1924, %v1918
    %v2729 = vpack.c.b16 %v1925, %v1919
    %v2730 = vpack.c.b16 %v1926, %v1920
    %v2731 = vpack.c.b16 %v1927, %v1921
    %v2732 = vpack.c.b16 %v1928, %v1922
    %v2733 = vpack.c.b16 %v1929, %v1923
    %v2734 = vpack.c.b16 %v1936, %v1930
    %v2735 = vpack.c.b16 %v1937, %v1931
    %v2736 = vpack.c.b16 %v1938, %v1932
    %v2737 = vpack.c.b16 %v1939, %v1933
    %v2738 = vpack.c.b16 %v1940, %v1934
    %v2739 = vpack.c.b16 %v1941, %v1935
    %v2740 = vpack.c.b16 %v1948, %v1942
    %v2741 = vpack.c.b16 %v1949, %v1943
    %v2742 = vpack.c.b16 %v1950, %v1944
    %v2743 = vpack.c.b16 %v1951, %v1945
    %v2744 = vpack.c.b16 %v1952, %v1946
    %v2745 = vpack.c.b16 %v1953, %v1947
    %v2746 = vpack.c.b16 %v1960, %v1954
    %v2747 = vpack.c.b16 %v1961, %v1955
    %v2748 = vpack.c.b16 %v1962, %v1956
    %v2749 = vpack.c.b16 %v1963, %v1957
    %v2750 = vpack.c.b16 %v1964, %v1958
    %v2751 = vpack.c.b16 %v1965, %v1959
    %v2752 = vpack.c.b16 %v1972, %v1966
    %v2753 = vpack.c.b16 %v1973, %v1967
    %v2754 = vpack.c.b16 %v1974, %v1968
    %v2755 = vpack.c.b16 %v1975, %v1969
    %v2756 = vpack.c.b16 %v1976, %v1970
    %v2757 = vpack.c.b16 %v1977, %v1971
    %v2758 = vpack.c.b16 %v1984, %v1978
    %v2759 = vpack.c.b16 %v1985, %v1979
    %v2760 = vpack.c.b16 %v1986, %v1980
    %v2761 = vpack.c.b16 %v1987, %v1981
    %v2762 = vpack.c.b16 %v1988, %v1982
    %v2763 = vpack.c.b16 %v1989, %v1983
    %v2764 = vpack.c.b16 %v1996, %v1990
    %v2765 = vpack.c.b16 %v1997, %v1991
    %v2766 = vpack.c.b16 %v1998, %v1992
    %v2767 = vpack.c.b16 %v1999, %v1993
    %v2768 = vpack.c.b16 %v2000, %v1994
    %v2769 = vpack.c.b16 %v2001, %v1995
    %v2770 = vpack.c.b16 %v2008, %v2002
    %v2771 = vpack.c.b16 %v2009, %v2003
    %v2772 = vpack.c.b16 %v2010, %v2004
    %v2773 = vpack.c.b16 %v2011, %v2005
    %v2774 = vpack.c.b16 %v2012, %v2006
    %v2775 = vpack.c.b16 %v2013, %v2007
    %v2776 = vpack.c.b16 %v2020, %v2014
    %v2777 = vpack.c.b16 %v2021, %v2015
    %v2778 = vpack.c.b16 %v2022, %v2016
    %v2779 = vpack.c.b16 %v2023, %v2017
    %v2780 = vpack.c.b16 %v2024, %v2018
    %v2781 = vpack.c.b16 %v2025, %v2019
    %v2782 = vpack.c.b16 %v2032, %v2026
    %v2783 = vpack.c.b16 %v2033, %v2027
    %v2784 = vpack.c.b16 %v2034, %v2028
    %v2785 = vpack.c.b16 %v2035, %v2029
    %v2786 = vpack.c.b16 %v2036, %v2030
    %v2787 = vpack.c.b16 %v2037, %v2031
    %v2788 = vpack.c.b16 %v2044, %v2038
    %v2789 = vpack.c.b16 %v2045, %v2039
    %v2790 = vpack.c.b16 %v2046, %v2040
    %v2791 = vpack.c.b16 %v2047, %v2041
    %v2792 = vpack.c.b16 %v2048, %v2042
    %v2793 = vpack.c.b16 %v2049, %v2043
    %v2794 = vpack.c.b16 %v2056, %v2050
    %v2795 = vpack.c.b16 %v2057, %v2051
    %v2796 = vpack.c.b16 %v2058, %v2052
    %v2797 = vpack.c.b16 %v2059, %v2053
    %v2798 = vpack.c.b16 %v2060, %v2054
    %v2799 = vpack.c.b16 %v2061, %v2055
    %v2800 = vpack.c.b16 %v2068, %v2062
    %v2801 = vpack.c.b16 %v2069, %v2063
    %v2802 = vpack.c.b16 %v2070, %v2064
    %v2803 = vpack.c.b16 %v2071, %v2065
    %v2804 = vpack.c.b16 %v2072, %v2066
    %v2805 = vpack.c.b16 %v2073, %v2067
    %v2806 = vpack.c.b16 %v2080, %v2074
    %v2807 = vpack.c.b16 %v2081, %v2075
    %v2808 = vpack.c.b16 %v2082, %v2076
    %v2809 = vpack.c.b16 %v2083, %v2077
    %v2810 = vpack.c.b16 %v2084, %v2078
    %v2811 = vpack.c.b16 %v2085, %v2079
    %v2812 = vpack.c.b16 %v2092, %v2086
    %v2813 = vpack.c.b16 %v2093, %v2087
    %v2814 = vpack.c.b16 %v2094, %v2088
    %v2815 = vpack.c.b16 %v2095, %v2089
    %v2816 = vpack.c.b16 %v2096, %v2090
    %v2817 = vpack.c.b16 %v2097, %v2091
    %v2818 = vpack.c.b16 %v2104, %v2098
    %v2819 = vpack.c.b16 %v2105, %v2099
    %v2820 = vpack.c.b16 %v2106, %v2100
    %v2821 = vpack.c.b16 %v2107, %v2101
    %v2822 = vpack.c.b16 %v2108, %v2102
    %v2823 = vpack.c.b16 %v2109, %v2103
    %v2824 = vpack.c.b16 %v2116, %v2110
    %v2825 = vpack.c.b16 %v2117, %v2111
    %v2826 = vpack.c.b16 %v2118, %v2112
    %v2827 = vpack.c.b16 %v2119, %v2113
    %v2828 = vpack.c.b16 %v2120, %v2114
    %v2829 = vpack.c.b16 %v2121, %v2115
    %v2830 = vpack.c.b16 %v2128, %v2122
    %v2831 = vpack.c.b16 %v2129, %v2123
    %v2832 = vpack.c.b16 %v2130, %v2124
    %v2833 = vpack.c.b16 %v2131, %v2125
    %v2834 = vpack.c.b16 %v2132, %v2126
    %v2835 = vpack.c.b16 %v2133, %v2127
    %v2836 = vpack.c.b16 %v2140, %v2134
    %v2837 = vpack.c.b16 %v2141, %v2135
    %v2838 = vpack.c.b16 %v2142, %v2136
    %v2839 = vpack.c.b16 %v2143, %v2137
    %v2840 = vpack.c.b16 %v2144, %v2138
    %v2841 = vpack.c.b16 %v2145, %v2139
    %v2842 = vpack.c.b16 %v2152, %v2146
    %v2843 = vpack.c.b16 %v2153, %v2147
    %v2844 = vpack.c.b16 %v2154, %v2148
    %v2845 = vpack.c.b16 %v2155, %v2149
    %v2846 = vpack.c.b16 %v2156, %v2150
    %v2847 = vpack.c.b16 %v2157, %v2151
    %v2848 = vpack.c.b16 %v2164, %v2158
    %v2849 = vpack.c.b16 %v2165, %v2159
    %v2850 = vpack.c.b16 %v2166, %v2160
    %v2851 = vpack.c.b16 %v2167, %v2161
    %v2852 = vpack.c.b16 %v2168, %v2162
    %v2853 = vpack.c.b16 %v2169, %v2163
    %v2854 = vpack.c.b16 %v2176, %v2170
    %v2855 = vpack.c.b16 %v2177, %v2171
    %v2856 = vpack.c.b16 %v2178, %v2172
    %v2857 = vpack.c.b16 %v2179, %v2173
    %v2858 = vpack.c.b16 %v2180, %v2174
    %v2859 = vpack.c.b16 %v2181, %v2175
    %v2860 = vpack.c.b16 %v2188, %v2182
    %v2861 = vpack.c.b16 %v2189, %v2183
    %v2862 = vpack.c.b16 %v2190, %v2184
    %v2863 = vpack.c.b16 %v2191, %v2185
    %v2864 = vpack.c.b16 %v2192, %v2186
    %v2865 = vpack.c.b16 %v2193, %v2187
    %v2866 = vpack.c.b16 %v2200, %v2194
    %v2867 = vpack.c.b16 %v2201, %v2195
    %v2868 = vpack.c.b16 %v2202, %v2196
    %v2869 = vpack.c.b16 %v2203, %v2197
    %v2870 = vpack.c.b16 %v2204, %v2198
    %v2871 = vpack.c.b16 %v2205, %v2199
    %v2872 = vpack.c.b16 %v2212, %v2206
    %v2873 = vpack.c.b16 %v2213, %v2207
    %v2874 = vpack.c.b16 %v2214, %v2208
    %v2875 = vpack.c.b16 %v2215, %v2209
    %v2876 = vpack.c.b16 %v2216, %v2210
    %v2877 = vpack.c.b16 %v2217, %v2211
    %v2878 = vpack.c.b16 %v2224, %v2218
    %v2879 = vpack.c.b16 %v2225, %v2219
    %v2880 = vpack.c.b16 %v2226, %v2220
    %v2881 = vpack.c.b16 %v2227, %v2221
    %v2882 = vpack.c.b16 %v2228, %v2222
    %v2883 = vpack.c.b16 %v2229, %v2223
    %v2884 = vpack.c.b16 %v2236, %v2230
    %v2885 = vpack.c.b16 %v2237, %v2231
    %v2886 = vpack.c.b16 %v2238, %v2232
    %v2887 = vpack.c.b16 %v2239, %v2233
    %v2888 = vpack.c.b16 %v2240, %v2234
    %v2889 = vpack.c.b16 %v2241, %v2235
    %v2890 = vpack.c.b16 %v2248, %v2242
    %v2891 = vpack.c.b16 %v2249, %v2243
    %v2892 = vpack.c.b16 %v2250, %v2244
    %v2893 = vpack.c.b16 %v2251, %v2245
    %v2894 = vpack.c.b16 %v2252, %v2246
    %v2895 = vpack.c.b16 %v2253, %v2247
    %v2896 = vpack.c.b16 %v2260, %v2254
    %v2897 = vpack.c.b16 %v2261, %v2255
    %v2898 = vpack.c.b16 %v2262, %v2256
    %v2899 = vpack.c.b16 %v2263, %v2257
    %v2900 = vpack.c.b16 %v2264, %v2258
    %v2901 = vpack.c.b16 %v2265, %v2259
    %v2902 = vpack.c.b16 %v2272, %v2266
    %v2903 = vpack.c.b16 %v2273, %v2267
    %v2904 = vpack.c.b16 %v2274, %v2268
    %v2905 = vpack.c.b16 %v2275, %v2269
    %v2906 = vpack.c.b16 %v2276, %v2270
    %v2907 = vpack.c.b16 %v2277, %v2271
    %v2908 = vpack.c.b16 %v2284, %v2278
    %v2909 = vpack.c.b16 %v2285, %v2279
    %v2910 = vpack.c.b16 %v2286, %v2280
    %v2911 = vpack.c.b16 %v2287, %v2281
    %v2912 = vpack.c.b16 %v2288, %v2282
    %v2913 = vpack.c.b16 %v2289, %v2283
    %v2914 = vpack.c.b16 %v2296, %v2290
    %v2915 = vpack.c.b16 %v2297, %v2291
    %v2916 = vpack.c.b16 %v2298, %v2292
    %v2917 = vpack.c.b16 %v2299, %v2293
    %v2918 = vpack.c.b16 %v2300, %v2294
    %v2919 = vpack.c.b16 %v2301, %v2295
    %v2920 = vpack.c.b16 %v2308, %v2302
    %v2921 = vpack.c.b16 %v2309, %v2303
    %v2922 = vpack.c.b16 %v2310, %v2304
    %v2923 = vpack.c.b16 %v2311, %v2305
    %v2924 = vpack.c.b16 %v2312, %v2306
    %v2925 = vpack.c.b16 %v2313, %v2307
    %v2926 = vpack.c.b16 %v2320, %v2314
    %v2927 = vpack.c.b16 %v2321, %v2315
    %v2928 = vpack.c.b16 %v2322, %v2316
    %v2929 = vpack.c.b16 %v2323, %v2317
    %v2930 = vpack.c.b16 %v2324, %v2318
    %v2931 = vpack.c.b16 %v2325, %v2319
    %v2932 = vpack.c.b16 %v2332, %v2326
    %v2933 = vpack.c.b16 %v2333, %v2327
    %v2934 = vpack.c.b16 %v2334, %v2328
    %v2935 = vpack.c.b16 %v2335, %v2329
    %v2936 = vpack.c.b16 %v2336, %v2330
    %v2937 = vpack.c.b16 %v2337, %v2331
    %v2938 = vpack.c.b16 %v2344, %v2338
    %v2939 = vpack.c.b16 %v2345, %v2339
    %v2940 = vpack.c.b16 %v2346, %v2340
    %v2941 = vpack.c.b16 %v2347, %v2341
    %v2942 = vpack.c.b16 %v2348, %v2342
    %v2943 = vpack.c.b16 %v2349, %v2343
    %v2944 = vpack.c.b16 %v2356, %v2350
    %v2945 = vpack.c.b16 %v2357, %v2351
    %v2946 = vpack.c.b16 %v2358, %v2352
    %v2947 = vpack.c.b16 %v2359, %v2353
    %v2948 = vpack.c.b16 %v2360, %v2354
    %v2949 = vpack.c.b16 %v2361, %v2355
    %v2950 = vpack.c.b16 %v2368, %v2362
    %v2951 = vpack.c.b16 %v2369, %v2363
    %v2952 = vpack.c.b16 %v2370, %v2364
    %v2953 = vpack.c.b16 %v2371, %v2365
    %v2954 = vpack.c.b16 %v2372, %v2366
    %v2955 = vpack.c.b16 %v2373, %v2367
    %v2956 = vpack.c.b16 %v2380, %v2374
    %v2957 = vpack.c.b16 %v2381, %v2375
    %v2958 = vpack.c.b16 %v2382, %v2376
    %v2959 = vpack.c.b16 %v2383, %v2377
    %v2960 = vpack.c.b16 %v2384, %v2378
    %v2961 = vpack.c.b16 %v2385, %v2379
    %3538 = vmatpush.bf16.msra.mxu0 %v2428
    %3539 = vmatpush.bf16.msra.mxu0 %v2422
    %3540 = vmatpush.bf16.msra.mxu0 %v2416
    %3541 = vmatpush.bf16.msra.mxu0 %v2410
    %3542 = vmatpush.bf16.msra.mxu0 %v2404
    %3543 = vmatpush.bf16.msra.mxu0 %v2398
    %3544 = vmatpush.bf16.msra.mxu0 %v2392
    %3545 = vmatpush.bf16.msra.mxu0 %v2386
    %3546 = vmatmul.bf16.gmra.mxu0 %v70
    %v3547 = vpop.f32.mrf.mxu0
    %v3548 = vadd.f32 0.0, %v3547
    %v3549 = vpop.f32.mrf.mxu0
    %3550 = vdwg.mxu0
    %3551 = vmatpush.bf16.msra.mxu0 %v2476
    %3552 = vmatpush.bf16.msra.mxu0 %v2470
    %3553 = vmatpush.bf16.msra.mxu0 %v2464
    %3554 = vmatpush.bf16.msra.mxu0 %v2458
    %3555 = vmatpush.bf16.msra.mxu0 %v2452
    %3556 = vmatpush.bf16.msra.mxu0 %v2446
    %3557 = vmatpush.bf16.msra.mxu0 %v2440
    %3558 = vmatpush.bf16.msra.mxu0 %v2434
    %3559 = vmatmul.bf16.gmra.mxu0 %v71
    %v3560 = vpop.f32.mrf.mxu0
    %v3561 = vadd.f32 %v3548, %v3560
    %v3562 = vpop.f32.mrf.mxu0
    %3563 = vdwg.mxu0
    %3564 = vmatpush.bf16.msra.mxu0 %v2524
    %3565 = vmatpush.bf16.msra.mxu0 %v2518
    %3566 = vmatpush.bf16.msra.mxu0 %v2512
    %3567 = vmatpush.bf16.msra.mxu0 %v2506
    %3568 = vmatpush.bf16.msra.mxu0 %v2500
    %3569 = vmatpush.bf16.msra.mxu0 %v2494
    %3570 = vmatpush.bf16.msra.mxu0 %v2488
    %3571 = vmatpush.bf16.msra.mxu0 %v2482
    %3572 = vmatmul.bf16.gmra.mxu0 %v72
    %v3573 = vpop.f32.mrf.mxu0
    %v3574 = vadd.f32 %v3561, %v3573
    %v3575 = vpop.f32.mrf.mxu0
    %3576 = vdwg.mxu0
    %3577 = vmatpush.bf16.msra.mxu0 %v2572
    %3578 = vmatpush.bf16.msra.mxu0 %v2566
    %3579 = vmatpush.bf16.msra.mxu0 %v2560
    %3580 = vmatpush.bf16.msra.mxu0 %v2554
    %3581 = vmatpush.bf16.msra.mxu0 %v2548
    %3582 = vmatpush.bf16.msra.mxu0 %v2542
    %3583 = vmatpush.bf16.msra.mxu0 %v2536
    %3584 = vmatpush.bf16.msra.mxu0 %v2530
    %3585 = vmatmul.bf16.gmra.mxu0 %v73
    %v3586 = vpop.f32.mrf.mxu0
    %v3587 = vadd.f32 %v3574, %v3586
    %v3588 = vpop.f32.mrf.mxu0
    %3589 = vdwg.mxu0
    %3590 = vmatpush.bf16.msra.mxu0 %v2620
    %3591 = vmatpush.bf16.msra.mxu0 %v2614
    %3592 = vmatpush.bf16.msra.mxu0 %v2608
    %3593 = vmatpush.bf16.msra.mxu0 %v2602
    %3594 = vmatpush.bf16.msra.mxu0 %v2596
    %3595 = vmatpush.bf16.msra.mxu0 %v2590
    %3596 = vmatpush.bf16.msra.mxu0 %v2584
    %3597 = vmatpush.bf16.msra.mxu0 %v2578
    %3598 = vmatmul.bf16.gmra.mxu0 %v74
    %v3599 = vpop.f32.mrf.mxu0
    %v3600 = vadd.f32 %v3587, %v3599
    %v3601 = vpop.f32.mrf.mxu0
    %3602 = vdwg.mxu0
    %3603 = vmatpush.bf16.msra.mxu0 %v2668
    %3604 = vmatpush.bf16.msra.mxu0 %v2662
    %3605 = vmatpush.bf16.msra.mxu0 %v2656
    %3606 = vmatpush.bf16.msra.mxu0 %v2650
    %3607 = vmatpush.bf16.msra.mxu0 %v2644
    %3608 = vmatpush.bf16.msra.mxu0 %v2638
    %3609 = vmatpush.bf16.msra.mxu0 %v2632
    %3610 = vmatpush.bf16.msra.mxu0 %v2626
    %3611 = vmatmul.bf16.gmra.mxu0 %v75
    %v3612 = vpop.f32.mrf.mxu0
    %v3613 = vadd.f32 %v3600, %v3612
    %v3614 = vpop.f32.mrf.mxu0
    %3615 = vdwg.mxu0
    %3616 = vmatpush.bf16.msra.mxu0 %v2716
    %3617 = vmatpush.bf16.msra.mxu0 %v2710
    %3618 = vmatpush.bf16.msra.mxu0 %v2704
    %3619 = vmatpush.bf16.msra.mxu0 %v2698
    %3620 = vmatpush.bf16.msra.mxu0 %v2692
    %3621 = vmatpush.bf16.msra.mxu0 %v2686
    %3622 = vmatpush.bf16.msra.mxu0 %v2680
    %3623 = vmatpush.bf16.msra.mxu0 %v2674
    %3624 = vmatmul.bf16.gmra.mxu0 %v76
    %v3625 = vpop.f32.mrf.mxu0
    %v3626 = vadd.f32 %v3613, %v3625
    %v3627 = vpop.f32.mrf.mxu0
    %3628 = vdwg.mxu0
    %3629 = vmatpush.bf16.msra.mxu0 %v2764
    %3630 = vmatpush.bf16.msra.mxu0 %v2758
    %3631 = vmatpush.bf16.msra.mxu0 %v2752
    %3632 = vmatpush.bf16.msra.mxu0 %v2746
    %3633 = vmatpush.bf16.msra.mxu0 %v2740
    %3634 = vmatpush.bf16.msra.mxu0 %v2734
    %3635 = vmatpush.bf16.msra.mxu0 %v2728
    %3636 = vmatpush.bf16.msra.mxu0 %v2722
    %3637 = vmatmul.bf16.gmra.mxu0 %v77
    %v3638 = vpop.f32.mrf.mxu0
    %v3639 = vadd.f32 %v3626, %v3638
    %v3640 = vpop.f32.mrf.mxu0
    %3641 = vdwg.mxu0
    %3642 = vmatpush.bf16.msra.mxu0 %v2812
    %3643 = vmatpush.bf16.msra.mxu0 %v2806
    %3644 = vmatpush.bf16.msra.mxu0 %v2800
    %3645 = vmatpush.bf16.msra.mxu0 %v2794
    %3646 = vmatpush.bf16.msra.mxu0 %v2788
    %3647 = vmatpush.bf16.msra.mxu0 %v2782
    %3648 = vmatpush.bf16.msra.mxu0 %v2776
    %3649 = vmatpush.bf16.msra.mxu0 %v2770
    %3650 = vmatmul.bf16.gmra.mxu0 %v78
    %v3651 = vpop.f32.mrf.mxu0
    %v3652 = vadd.f32 %v3639, %v3651
    %v3653 = vpop.f32.mrf.mxu0
    %3654 = vdwg.mxu0
    %3655 = vmatpush.bf16.msra.mxu0 %v2860
    %3656 = vmatpush.bf16.msra.mxu0 %v2854
    %3657 = vmatpush.bf16.msra.mxu0 %v2848
    %3658 = vmatpush.bf16.msra.mxu0 %v2842
    %3659 = vmatpush.bf16.msra.mxu0 %v2836
    %3660 = vmatpush.bf16.msra.mxu0 %v2830
    %3661 = vmatpush.bf16.msra.mxu0 %v2824
    %3662 = vmatpush.bf16.msra.mxu0 %v2818
    %3663 = vmatmul.bf16.gmra.mxu0 %v79
    %v3664 = vpop.f32.mrf.mxu0
    %v3665 = vadd.f32 %v3652, %v3664
    %v3666 = vpop.f32.mrf.mxu0
    %3667 = vdwg.mxu0
    %3668 = vmatpush.bf16.msra.mxu0 %v2908
    %3669 = vmatpush.bf16.msra.mxu0 %v2902
    %3670 = vmatpush.bf16.msra.mxu0 %v2896
    %3671 = vmatpush.bf16.msra.mxu0 %v2890
    %3672 = vmatpush.bf16.msra.mxu0 %v2884
    %3673 = vmatpush.bf16.msra.mxu0 %v2878
    %3674 = vmatpush.bf16.msra.mxu0 %v2872
    %3675 = vmatpush.bf16.msra.mxu0 %v2866
    %3676 = vmatmul.bf16.gmra.mxu0 %v80
    %v3677 = vpop.f32.mrf.mxu0
    %v3678 = vadd.f32 %v3665, %v3677
    %v3679 = vpop.f32.mrf.mxu0
    %3680 = vdwg.mxu0
    %3681 = vmatpush.bf16.msra.mxu0 %v2956
    %3682 = vmatpush.bf16.msra.mxu0 %v2950
    %3683 = vmatpush.bf16.msra.mxu0 %v2944
    %3684 = vmatpush.bf16.msra.mxu0 %v2938
    %3685 = vmatpush.bf16.msra.mxu0 %v2932
    %3686 = vmatpush.bf16.msra.mxu0 %v2926
    %3687 = vmatpush.bf16.msra.mxu0 %v2920
    %3688 = vmatpush.bf16.msra.mxu0 %v2914
    %3689 = vmatmul.bf16.gmra.mxu0 %v81
    %v3690 = vpop.f32.mrf.mxu0
    %v3691 = vadd.f32 %v3678, %v3690
    %v3692 = vpop.f32.mrf.mxu0
    %3693 = vdwg.mxu0
    %3694 = vmatpush.bf16.msra.mxu0 %v2429
    %3695 = vmatpush.bf16.msra.mxu0 %v2423
    %3696 = vmatpush.bf16.msra.mxu0 %v2417
    %3697 = vmatpush.bf16.msra.mxu0 %v2411
    %3698 = vmatpush.bf16.msra.mxu0 %v2405
    %3699 = vmatpush.bf16.msra.mxu0 %v2399
    %3700 = vmatpush.bf16.msra.mxu0 %v2393
    %3701 = vmatpush.bf16.msra.mxu0 %v2387
    %3702 = vmatmul.bf16.gmra.mxu0 %v70
    %v3703 = vpop.f32.mrf.mxu0
    %v3704 = vadd.f32 0.0, %v3703
    %v3705 = vpop.f32.mrf.mxu0
    %3706 = vdwg.mxu0
    %3707 = vmatpush.bf16.msra.mxu0 %v2477
    %3708 = vmatpush.bf16.msra.mxu0 %v2471
    %3709 = vmatpush.bf16.msra.mxu0 %v2465
    %3710 = vmatpush.bf16.msra.mxu0 %v2459
    %3711 = vmatpush.bf16.msra.mxu0 %v2453
    %3712 = vmatpush.bf16.msra.mxu0 %v2447
    %3713 = vmatpush.bf16.msra.mxu0 %v2441
    %3714 = vmatpush.bf16.msra.mxu0 %v2435
    %3715 = vmatmul.bf16.gmra.mxu0 %v71
    %v3716 = vpop.f32.mrf.mxu0
    %v3717 = vadd.f32 %v3704, %v3716
    %v3718 = vpop.f32.mrf.mxu0
    %3719 = vdwg.mxu0
    %3720 = vmatpush.bf16.msra.mxu0 %v2525
    %3721 = vmatpush.bf16.msra.mxu0 %v2519
    %3722 = vmatpush.bf16.msra.mxu0 %v2513
    %3723 = vmatpush.bf16.msra.mxu0 %v2507
    %3724 = vmatpush.bf16.msra.mxu0 %v2501
    %3725 = vmatpush.bf16.msra.mxu0 %v2495
    %3726 = vmatpush.bf16.msra.mxu0 %v2489
    %3727 = vmatpush.bf16.msra.mxu0 %v2483
    %3728 = vmatmul.bf16.gmra.mxu0 %v72
    %v3729 = vpop.f32.mrf.mxu0
    %v3730 = vadd.f32 %v3717, %v3729
    %v3731 = vpop.f32.mrf.mxu0
    %3732 = vdwg.mxu0
    %3733 = vmatpush.bf16.msra.mxu0 %v2573
    %3734 = vmatpush.bf16.msra.mxu0 %v2567
    %3735 = vmatpush.bf16.msra.mxu0 %v2561
    %3736 = vmatpush.bf16.msra.mxu0 %v2555
    %3737 = vmatpush.bf16.msra.mxu0 %v2549
    %3738 = vmatpush.bf16.msra.mxu0 %v2543
    %3739 = vmatpush.bf16.msra.mxu0 %v2537
    %3740 = vmatpush.bf16.msra.mxu0 %v2531
    %3741 = vmatmul.bf16.gmra.mxu0 %v73
    %v3742 = vpop.f32.mrf.mxu0
    %v3743 = vadd.f32 %v3730, %v3742
    %v3744 = vpop.f32.mrf.mxu0
    %3745 = vdwg.mxu0
    %3746 = vmatpush.bf16.msra.mxu0 %v2621
    %3747 = vmatpush.bf16.msra.mxu0 %v2615
    %3748 = vmatpush.bf16.msra.mxu0 %v2609
    %3749 = vmatpush.bf16.msra.mxu0 %v2603
    %3750 = vmatpush.bf16.msra.mxu0 %v2597
    %3751 = vmatpush.bf16.msra.mxu0 %v2591
    %3752 = vmatpush.bf16.msra.mxu0 %v2585
    %3753 = vmatpush.bf16.msra.mxu0 %v2579
    %3754 = vmatmul.bf16.gmra.mxu0 %v74
    %v3755 = vpop.f32.mrf.mxu0
    %v3756 = vadd.f32 %v3743, %v3755
    %v3757 = vpop.f32.mrf.mxu0
    %3758 = vdwg.mxu0
    %3759 = vmatpush.bf16.msra.mxu0 %v2669
    %3760 = vmatpush.bf16.msra.mxu0 %v2663
    %3761 = vmatpush.bf16.msra.mxu0 %v2657
    %3762 = vmatpush.bf16.msra.mxu0 %v2651
    %3763 = vmatpush.bf16.msra.mxu0 %v2645
    %3764 = vmatpush.bf16.msra.mxu0 %v2639
    %3765 = vmatpush.bf16.msra.mxu0 %v2633
    %3766 = vmatpush.bf16.msra.mxu0 %v2627
    %3767 = vmatmul.bf16.gmra.mxu0 %v75
    %v3768 = vpop.f32.mrf.mxu0
    %v3769 = vadd.f32 %v3756, %v3768
    %v3770 = vpop.f32.mrf.mxu0
    %3771 = vdwg.mxu0
    %3772 = vmatpush.bf16.msra.mxu0 %v2717
    %3773 = vmatpush.bf16.msra.mxu0 %v2711
    %3774 = vmatpush.bf16.msra.mxu0 %v2705
    %3775 = vmatpush.bf16.msra.mxu0 %v2699
    %3776 = vmatpush.bf16.msra.mxu0 %v2693
    %3777 = vmatpush.bf16.msra.mxu0 %v2687
    %3778 = vmatpush.bf16.msra.mxu0 %v2681
    %3779 = vmatpush.bf16.msra.mxu0 %v2675
    %3780 = vmatmul.bf16.gmra.mxu0 %v76
    %v3781 = vpop.f32.mrf.mxu0
    %v3782 = vadd.f32 %v3769, %v3781
    %v3783 = vpop.f32.mrf.mxu0
    %3784 = vdwg.mxu0
    %3785 = vmatpush.bf16.msra.mxu0 %v2765
    %3786 = vmatpush.bf16.msra.mxu0 %v2759
    %3787 = vmatpush.bf16.msra.mxu0 %v2753
    %3788 = vmatpush.bf16.msra.mxu0 %v2747
    %3789 = vmatpush.bf16.msra.mxu0 %v2741
    %3790 = vmatpush.bf16.msra.mxu0 %v2735
    %3791 = vmatpush.bf16.msra.mxu0 %v2729
    %3792 = vmatpush.bf16.msra.mxu0 %v2723
    %3793 = vmatmul.bf16.gmra.mxu0 %v77
    %v3794 = vpop.f32.mrf.mxu0
    %v3795 = vadd.f32 %v3782, %v3794
    %v3796 = vpop.f32.mrf.mxu0
    %3797 = vdwg.mxu0
    %3798 = vmatpush.bf16.msra.mxu0 %v2813
    %3799 = vmatpush.bf16.msra.mxu0 %v2807
    %3800 = vmatpush.bf16.msra.mxu0 %v2801
    %3801 = vmatpush.bf16.msra.mxu0 %v2795
    %3802 = vmatpush.bf16.msra.mxu0 %v2789
    %3803 = vmatpush.bf16.msra.mxu0 %v2783
    %3804 = vmatpush.bf16.msra.mxu0 %v2777
    %3805 = vmatpush.bf16.msra.mxu0 %v2771
    %3806 = vmatmul.bf16.gmra.mxu0 %v78
    %v3807 = vpop.f32.mrf.mxu0
    %v3808 = vadd.f32 %v3795, %v3807
    %v3809 = vpop.f32.mrf.mxu0
    %3810 = vdwg.mxu0
    %3811 = vmatpush.bf16.msra.mxu0 %v2861
    %3812 = vmatpush.bf16.msra.mxu0 %v2855
    %3813 = vmatpush.bf16.msra.mxu0 %v2849
    %3814 = vmatpush.bf16.msra.mxu0 %v2843
    %3815 = vmatpush.bf16.msra.mxu0 %v2837
    %3816 = vmatpush.bf16.msra.mxu0 %v2831
    %3817 = vmatpush.bf16.msra.mxu0 %v2825
    %3818 = vmatpush.bf16.msra.mxu0 %v2819
    %3819 = vmatmul.bf16.gmra.mxu0 %v79
    %v3820 = vpop.f32.mrf.mxu0
    %v3821 = vadd.f32 %v3808, %v3820
    %v3822 = vpop.f32.mrf.mxu0
    %3823 = vdwg.mxu0
    %3824 = vmatpush.bf16.msra.mxu0 %v2909
    %3825 = vmatpush.bf16.msra.mxu0 %v2903
    %3826 = vmatpush.bf16.msra.mxu0 %v2897
    %3827 = vmatpush.bf16.msra.mxu0 %v2891
    %3828 = vmatpush.bf16.msra.mxu0 %v2885
    %3829 = vmatpush.bf16.msra.mxu0 %v2879
    %3830 = vmatpush.bf16.msra.mxu0 %v2873
    %3831 = vmatpush.bf16.msra.mxu0 %v2867
    %3832 = vmatmul.bf16.gmra.mxu0 %v80
    %v3833 = vpop.f32.mrf.mxu0
    %v3834 = vadd.f32 %v3821, %v3833
    %v3835 = vpop.f32.mrf.mxu0
    %3836 = vdwg.mxu0
    %3837 = vmatpush.bf16.msra.mxu0 %v2957
    %3838 = vmatpush.bf16.msra.mxu0 %v2951
    %3839 = vmatpush.bf16.msra.mxu0 %v2945
    %3840 = vmatpush.bf16.msra.mxu0 %v2939
    %3841 = vmatpush.bf16.msra.mxu0 %v2933
    %3842 = vmatpush.bf16.msra.mxu0 %v2927
    %3843 = vmatpush.bf16.msra.mxu0 %v2921
    %3844 = vmatpush.bf16.msra.mxu0 %v2915
    %3845 = vmatmul.bf16.gmra.mxu0 %v81
    %v3846 = vpop.f32.mrf.mxu0
    %v3847 = vadd.f32 %v3834, %v3846
    %v3848 = vpop.f32.mrf.mxu0
    %3849 = vdwg.mxu0
    %3850 = vmatpush.bf16.msra.mxu0 %v2430
    %3851 = vmatpush.bf16.msra.mxu0 %v2424
    %3852 = vmatpush.bf16.msra.mxu0 %v2418
    %3853 = vmatpush.bf16.msra.mxu0 %v2412
    %3854 = vmatpush.bf16.msra.mxu0 %v2406
    %3855 = vmatpush.bf16.msra.mxu0 %v2400
    %3856 = vmatpush.bf16.msra.mxu0 %v2394
    %3857 = vmatpush.bf16.msra.mxu0 %v2388
    %3858 = vmatmul.bf16.gmra.mxu0 %v70
    %v3859 = vpop.f32.mrf.mxu0
    %v3860 = vadd.f32 0.0, %v3859
    %v3861 = vpop.f32.mrf.mxu0
    %3862 = vdwg.mxu0
    %3863 = vmatpush.bf16.msra.mxu0 %v2478
    %3864 = vmatpush.bf16.msra.mxu0 %v2472
    %3865 = vmatpush.bf16.msra.mxu0 %v2466
    %3866 = vmatpush.bf16.msra.mxu0 %v2460
    %3867 = vmatpush.bf16.msra.mxu0 %v2454
    %3868 = vmatpush.bf16.msra.mxu0 %v2448
    %3869 = vmatpush.bf16.msra.mxu0 %v2442
    %3870 = vmatpush.bf16.msra.mxu0 %v2436
    %3871 = vmatmul.bf16.gmra.mxu0 %v71
    %v3872 = vpop.f32.mrf.mxu0
    %v3873 = vadd.f32 %v3860, %v3872
    %v3874 = vpop.f32.mrf.mxu0
    %3875 = vdwg.mxu0
    %3876 = vmatpush.bf16.msra.mxu0 %v2526
    %3877 = vmatpush.bf16.msra.mxu0 %v2520
    %3878 = vmatpush.bf16.msra.mxu0 %v2514
    %3879 = vmatpush.bf16.msra.mxu0 %v2508
    %3880 = vmatpush.bf16.msra.mxu0 %v2502
    %3881 = vmatpush.bf16.msra.mxu0 %v2496
    %3882 = vmatpush.bf16.msra.mxu0 %v2490
    %3883 = vmatpush.bf16.msra.mxu0 %v2484
    %3884 = vmatmul.bf16.gmra.mxu0 %v72
    %v3885 = vpop.f32.mrf.mxu0
    %v3886 = vadd.f32 %v3873, %v3885
    %v3887 = vpop.f32.mrf.mxu0
    %3888 = vdwg.mxu0
    %3889 = vmatpush.bf16.msra.mxu0 %v2574
    %3890 = vmatpush.bf16.msra.mxu0 %v2568
    %3891 = vmatpush.bf16.msra.mxu0 %v2562
    %3892 = vmatpush.bf16.msra.mxu0 %v2556
    %3893 = vmatpush.bf16.msra.mxu0 %v2550
    %3894 = vmatpush.bf16.msra.mxu0 %v2544
    %3895 = vmatpush.bf16.msra.mxu0 %v2538
    %3896 = vmatpush.bf16.msra.mxu0 %v2532
    %3897 = vmatmul.bf16.gmra.mxu0 %v73
    %v3898 = vpop.f32.mrf.mxu0
    %v3899 = vadd.f32 %v3886, %v3898
    %v3900 = vpop.f32.mrf.mxu0
    %3901 = vdwg.mxu0
    %3902 = vmatpush.bf16.msra.mxu0 %v2622
    %3903 = vmatpush.bf16.msra.mxu0 %v2616
    %3904 = vmatpush.bf16.msra.mxu0 %v2610
    %3905 = vmatpush.bf16.msra.mxu0 %v2604
    %3906 = vmatpush.bf16.msra.mxu0 %v2598
    %3907 = vmatpush.bf16.msra.mxu0 %v2592
    %3908 = vmatpush.bf16.msra.mxu0 %v2586
    %3909 = vmatpush.bf16.msra.mxu0 %v2580
    %3910 = vmatmul.bf16.gmra.mxu0 %v74
    %v3911 = vpop.f32.mrf.mxu0
    %v3912 = vadd.f32 %v3899, %v3911
    %v3913 = vpop.f32.mrf.mxu0
    %3914 = vdwg.mxu0
    %3915 = vmatpush.bf16.msra.mxu0 %v2670
    %3916 = vmatpush.bf16.msra.mxu0 %v2664
    %3917 = vmatpush.bf16.msra.mxu0 %v2658
    %3918 = vmatpush.bf16.msra.mxu0 %v2652
    %3919 = vmatpush.bf16.msra.mxu0 %v2646
    %3920 = vmatpush.bf16.msra.mxu0 %v2640
    %3921 = vmatpush.bf16.msra.mxu0 %v2634
    %3922 = vmatpush.bf16.msra.mxu0 %v2628
    %3923 = vmatmul.bf16.gmra.mxu0 %v75
    %v3924 = vpop.f32.mrf.mxu0
    %v3925 = vadd.f32 %v3912, %v3924
    %v3926 = vpop.f32.mrf.mxu0
    %3927 = vdwg.mxu0
    %3928 = vmatpush.bf16.msra.mxu0 %v2718
    %3929 = vmatpush.bf16.msra.mxu0 %v2712
    %3930 = vmatpush.bf16.msra.mxu0 %v2706
    %3931 = vmatpush.bf16.msra.mxu0 %v2700
    %3932 = vmatpush.bf16.msra.mxu0 %v2694
    %3933 = vmatpush.bf16.msra.mxu0 %v2688
    %3934 = vmatpush.bf16.msra.mxu0 %v2682
    %3935 = vmatpush.bf16.msra.mxu0 %v2676
    %3936 = vmatmul.bf16.gmra.mxu0 %v76
    %v3937 = vpop.f32.mrf.mxu0
    %v3938 = vadd.f32 %v3925, %v3937
    %v3939 = vpop.f32.mrf.mxu0
    %3940 = vdwg.mxu0
    %3941 = vmatpush.bf16.msra.mxu0 %v2766
    %3942 = vmatpush.bf16.msra.mxu0 %v2760
    %3943 = vmatpush.bf16.msra.mxu0 %v2754
    %3944 = vmatpush.bf16.msra.mxu0 %v2748
    %3945 = vmatpush.bf16.msra.mxu0 %v2742
    %3946 = vmatpush.bf16.msra.mxu0 %v2736
    %3947 = vmatpush.bf16.msra.mxu0 %v2730
    %3948 = vmatpush.bf16.msra.mxu0 %v2724
    %3949 = vmatmul.bf16.gmra.mxu0 %v77
    %v3950 = vpop.f32.mrf.mxu0
    %v3951 = vadd.f32 %v3938, %v3950
    %v3952 = vpop.f32.mrf.mxu0
    %3953 = vdwg.mxu0
    %3954 = vmatpush.bf16.msra.mxu0 %v2814
    %3955 = vmatpush.bf16.msra.mxu0 %v2808
    %3956 = vmatpush.bf16.msra.mxu0 %v2802
    %3957 = vmatpush.bf16.msra.mxu0 %v2796
    %3958 = vmatpush.bf16.msra.mxu0 %v2790
    %3959 = vmatpush.bf16.msra.mxu0 %v2784
    %3960 = vmatpush.bf16.msra.mxu0 %v2778
    %3961 = vmatpush.bf16.msra.mxu0 %v2772
    %3962 = vmatmul.bf16.gmra.mxu0 %v78
    %v3963 = vpop.f32.mrf.mxu0
    %v3964 = vadd.f32 %v3951, %v3963
    %v3965 = vpop.f32.mrf.mxu0
    %3966 = vdwg.mxu0
    %3967 = vmatpush.bf16.msra.mxu0 %v2862
    %3968 = vmatpush.bf16.msra.mxu0 %v2856
    %3969 = vmatpush.bf16.msra.mxu0 %v2850
    %3970 = vmatpush.bf16.msra.mxu0 %v2844
    %3971 = vmatpush.bf16.msra.mxu0 %v2838
    %3972 = vmatpush.bf16.msra.mxu0 %v2832
    %3973 = vmatpush.bf16.msra.mxu0 %v2826
    %3974 = vmatpush.bf16.msra.mxu0 %v2820
    %3975 = vmatmul.bf16.gmra.mxu0 %v79
    %v3976 = vpop.f32.mrf.mxu0
    %v3977 = vadd.f32 %v3964, %v3976
    %v3978 = vpop.f32.mrf.mxu0
    %3979 = vdwg.mxu0
    %3980 = vmatpush.bf16.msra.mxu0 %v2910
    %3981 = vmatpush.bf16.msra.mxu0 %v2904
    %3982 = vmatpush.bf16.msra.mxu0 %v2898
    %3983 = vmatpush.bf16.msra.mxu0 %v2892
    %3984 = vmatpush.bf16.msra.mxu0 %v2886
    %3985 = vmatpush.bf16.msra.mxu0 %v2880
    %3986 = vmatpush.bf16.msra.mxu0 %v2874
    %3987 = vmatpush.bf16.msra.mxu0 %v2868
    %3988 = vmatmul.bf16.gmra.mxu0 %v80
    %v3989 = vpop.f32.mrf.mxu0
    %v3990 = vadd.f32 %v3977, %v3989
    %v3991 = vpop.f32.mrf.mxu0
    %3992 = vdwg.mxu0
    %3993 = vmatpush.bf16.msra.mxu0 %v2958
    %3994 = vmatpush.bf16.msra.mxu0 %v2952
    %3995 = vmatpush.bf16.msra.mxu0 %v2946
    %3996 = vmatpush.bf16.msra.mxu0 %v2940
    %3997 = vmatpush.bf16.msra.mxu0 %v2934
    %3998 = vmatpush.bf16.msra.mxu0 %v2928
    %3999 = vmatpush.bf16.msra.mxu0 %v2922
    %4000 = vmatpush.bf16.msra.mxu0 %v2916
    %4001 = vmatmul.bf16.gmra.mxu0 %v81
    %v4002 = vpop.f32.mrf.mxu0
    %v4003 = vadd.f32 %v3990, %v4002
    %v4004 = vpop.f32.mrf.mxu0
    %4005 = vdwg.mxu0
    %4006 = vmatpush.bf16.msra.mxu0 %v2431
    %4007 = vmatpush.bf16.msra.mxu0 %v2425
    %4008 = vmatpush.bf16.msra.mxu0 %v2419
    %4009 = vmatpush.bf16.msra.mxu0 %v2413
    %4010 = vmatpush.bf16.msra.mxu0 %v2407
    %4011 = vmatpush.bf16.msra.mxu0 %v2401
    %4012 = vmatpush.bf16.msra.mxu0 %v2395
    %4013 = vmatpush.bf16.msra.mxu0 %v2389
    %4014 = vmatmul.bf16.gmra.mxu0 %v70
    %v4015 = vpop.f32.mrf.mxu0
    %v4016 = vadd.f32 0.0, %v4015
    %v4017 = vpop.f32.mrf.mxu0
    %4018 = vdwg.mxu0
    %4019 = vmatpush.bf16.msra.mxu0 %v2479
    %4020 = vmatpush.bf16.msra.mxu0 %v2473
    %4021 = vmatpush.bf16.msra.mxu0 %v2467
    %4022 = vmatpush.bf16.msra.mxu0 %v2461
    %4023 = vmatpush.bf16.msra.mxu0 %v2455
    %4024 = vmatpush.bf16.msra.mxu0 %v2449
    %4025 = vmatpush.bf16.msra.mxu0 %v2443
    %4026 = vmatpush.bf16.msra.mxu0 %v2437
    %4027 = vmatmul.bf16.gmra.mxu0 %v71
    %v4028 = vpop.f32.mrf.mxu0
    %v4029 = vadd.f32 %v4016, %v4028
    %v4030 = vpop.f32.mrf.mxu0
    %4031 = vdwg.mxu0
    %4032 = vmatpush.bf16.msra.mxu0 %v2527
    %4033 = vmatpush.bf16.msra.mxu0 %v2521
    %4034 = vmatpush.bf16.msra.mxu0 %v2515
    %4035 = vmatpush.bf16.msra.mxu0 %v2509
    %4036 = vmatpush.bf16.msra.mxu0 %v2503
    %4037 = vmatpush.bf16.msra.mxu0 %v2497
    %4038 = vmatpush.bf16.msra.mxu0 %v2491
    %4039 = vmatpush.bf16.msra.mxu0 %v2485
    %4040 = vmatmul.bf16.gmra.mxu0 %v72
    %v4041 = vpop.f32.mrf.mxu0
    %v4042 = vadd.f32 %v4029, %v4041
    %v4043 = vpop.f32.mrf.mxu0
    %4044 = vdwg.mxu0
    %4045 = vmatpush.bf16.msra.mxu0 %v2575
    %4046 = vmatpush.bf16.msra.mxu0 %v2569
    %4047 = vmatpush.bf16.msra.mxu0 %v2563
    %4048 = vmatpush.bf16.msra.mxu0 %v2557
    %4049 = vmatpush.bf16.msra.mxu0 %v2551
    %4050 = vmatpush.bf16.msra.mxu0 %v2545
    %4051 = vmatpush.bf16.msra.mxu0 %v2539
    %4052 = vmatpush.bf16.msra.mxu0 %v2533
    %4053 = vmatmul.bf16.gmra.mxu0 %v73
    %v4054 = vpop.f32.mrf.mxu0
    %v4055 = vadd.f32 %v4042, %v4054
    %v4056 = vpop.f32.mrf.mxu0
    %4057 = vdwg.mxu0
    %4058 = vmatpush.bf16.msra.mxu0 %v2623
    %4059 = vmatpush.bf16.msra.mxu0 %v2617
    %4060 = vmatpush.bf16.msra.mxu0 %v2611
    %4061 = vmatpush.bf16.msra.mxu0 %v2605
    %4062 = vmatpush.bf16.msra.mxu0 %v2599
    %4063 = vmatpush.bf16.msra.mxu0 %v2593
    %4064 = vmatpush.bf16.msra.mxu0 %v2587
    %4065 = vmatpush.bf16.msra.mxu0 %v2581
    %4066 = vmatmul.bf16.gmra.mxu0 %v74
    %v4067 = vpop.f32.mrf.mxu0
    %v4068 = vadd.f32 %v4055, %v4067
    %v4069 = vpop.f32.mrf.mxu0
    %4070 = vdwg.mxu0
    %4071 = vmatpush.bf16.msra.mxu0 %v2671
    %4072 = vmatpush.bf16.msra.mxu0 %v2665
    %4073 = vmatpush.bf16.msra.mxu0 %v2659
    %4074 = vmatpush.bf16.msra.mxu0 %v2653
    %4075 = vmatpush.bf16.msra.mxu0 %v2647
    %4076 = vmatpush.bf16.msra.mxu0 %v2641
    %4077 = vmatpush.bf16.msra.mxu0 %v2635
    %4078 = vmatpush.bf16.msra.mxu0 %v2629
    %4079 = vmatmul.bf16.gmra.mxu0 %v75
    %v4080 = vpop.f32.mrf.mxu0
    %v4081 = vadd.f32 %v4068, %v4080
    %v4082 = vpop.f32.mrf.mxu0
    %4083 = vdwg.mxu0
    %4084 = vmatpush.bf16.msra.mxu0 %v2719
    %4085 = vmatpush.bf16.msra.mxu0 %v2713
    %4086 = vmatpush.bf16.msra.mxu0 %v2707
    %4087 = vmatpush.bf16.msra.mxu0 %v2701
    %4088 = vmatpush.bf16.msra.mxu0 %v2695
    %4089 = vmatpush.bf16.msra.mxu0 %v2689
    %4090 = vmatpush.bf16.msra.mxu0 %v2683
    %4091 = vmatpush.bf16.msra.mxu0 %v2677
    %4092 = vmatmul.bf16.gmra.mxu0 %v76
    %v4093 = vpop.f32.mrf.mxu0
    %v4094 = vadd.f32 %v4081, %v4093
    %v4095 = vpop.f32.mrf.mxu0
    %4096 = vdwg.mxu0
    %4097 = vmatpush.bf16.msra.mxu0 %v2767
    %4098 = vmatpush.bf16.msra.mxu0 %v2761
    %4099 = vmatpush.bf16.msra.mxu0 %v2755
    %4100 = vmatpush.bf16.msra.mxu0 %v2749
    %4101 = vmatpush.bf16.msra.mxu0 %v2743
    %4102 = vmatpush.bf16.msra.mxu0 %v2737
    %4103 = vmatpush.bf16.msra.mxu0 %v2731
    %4104 = vmatpush.bf16.msra.mxu0 %v2725
    %4105 = vmatmul.bf16.gmra.mxu0 %v77
    %v4106 = vpop.f32.mrf.mxu0
    %v4107 = vadd.f32 %v4094, %v4106
    %v4108 = vpop.f32.mrf.mxu0
    %4109 = vdwg.mxu0
    %4110 = vmatpush.bf16.msra.mxu0 %v2815
    %4111 = vmatpush.bf16.msra.mxu0 %v2809
    %4112 = vmatpush.bf16.msra.mxu0 %v2803
    %4113 = vmatpush.bf16.msra.mxu0 %v2797
    %4114 = vmatpush.bf16.msra.mxu0 %v2791
    %4115 = vmatpush.bf16.msra.mxu0 %v2785
    %4116 = vmatpush.bf16.msra.mxu0 %v2779
    %4117 = vmatpush.bf16.msra.mxu0 %v2773
    %4118 = vmatmul.bf16.gmra.mxu0 %v78
    %v4119 = vpop.f32.mrf.mxu0
    %v4120 = vadd.f32 %v4107, %v4119
    %v4121 = vpop.f32.mrf.mxu0
    %4122 = vdwg.mxu0
    %4123 = vmatpush.bf16.msra.mxu0 %v2863
    %4124 = vmatpush.bf16.msra.mxu0 %v2857
    %4125 = vmatpush.bf16.msra.mxu0 %v2851
    %4126 = vmatpush.bf16.msra.mxu0 %v2845
    %4127 = vmatpush.bf16.msra.mxu0 %v2839
    %4128 = vmatpush.bf16.msra.mxu0 %v2833
    %4129 = vmatpush.bf16.msra.mxu0 %v2827
    %4130 = vmatpush.bf16.msra.mxu0 %v2821
    %4131 = vmatmul.bf16.gmra.mxu0 %v79
    %v4132 = vpop.f32.mrf.mxu0
    %v4133 = vadd.f32 %v4120, %v4132
    %v4134 = vpop.f32.mrf.mxu0
    %4135 = vdwg.mxu0
    %4136 = vmatpush.bf16.msra.mxu0 %v2911
    %4137 = vmatpush.bf16.msra.mxu0 %v2905
    %4138 = vmatpush.bf16.msra.mxu0 %v2899
    %4139 = vmatpush.bf16.msra.mxu0 %v2893
    %4140 = vmatpush.bf16.msra.mxu0 %v2887
    %4141 = vmatpush.bf16.msra.mxu0 %v2881
    %4142 = vmatpush.bf16.msra.mxu0 %v2875
    %4143 = vmatpush.bf16.msra.mxu0 %v2869
    %4144 = vmatmul.bf16.gmra.mxu0 %v80
    %v4145 = vpop.f32.mrf.mxu0
    %v4146 = vadd.f32 %v4133, %v4145
    %v4147 = vpop.f32.mrf.mxu0
    %4148 = vdwg.mxu0
    %4149 = vmatpush.bf16.msra.mxu0 %v2959
    %4150 = vmatpush.bf16.msra.mxu0 %v2953
    %4151 = vmatpush.bf16.msra.mxu0 %v2947
    %4152 = vmatpush.bf16.msra.mxu0 %v2941
    %4153 = vmatpush.bf16.msra.mxu0 %v2935
    %4154 = vmatpush.bf16.msra.mxu0 %v2929
    %4155 = vmatpush.bf16.msra.mxu0 %v2923
    %4156 = vmatpush.bf16.msra.mxu0 %v2917
    %4157 = vmatmul.bf16.gmra.mxu0 %v81
    %v4158 = vpop.f32.mrf.mxu0
    %v4159 = vadd.f32 %v4146, %v4158
    %v4160 = vpop.f32.mrf.mxu0
    %4161 = vdwg.mxu0
    %4162 = vmatpush.bf16.msra.mxu0 %v2432
    %4163 = vmatpush.bf16.msra.mxu0 %v2426
    %4164 = vmatpush.bf16.msra.mxu0 %v2420
    %4165 = vmatpush.bf16.msra.mxu0 %v2414
    %4166 = vmatpush.bf16.msra.mxu0 %v2408
    %4167 = vmatpush.bf16.msra.mxu0 %v2402
    %4168 = vmatpush.bf16.msra.mxu0 %v2396
    %4169 = vmatpush.bf16.msra.mxu0 %v2390
    %4170 = vmatmul.bf16.gmra.mxu0 %v70
    %v4171 = vpop.f32.mrf.mxu0
    %v4172 = vadd.f32 0.0, %v4171
    %v4173 = vpop.f32.mrf.mxu0
    %4174 = vdwg.mxu0
    %4175 = vmatpush.bf16.msra.mxu0 %v2480
    %4176 = vmatpush.bf16.msra.mxu0 %v2474
    %4177 = vmatpush.bf16.msra.mxu0 %v2468
    %4178 = vmatpush.bf16.msra.mxu0 %v2462
    %4179 = vmatpush.bf16.msra.mxu0 %v2456
    %4180 = vmatpush.bf16.msra.mxu0 %v2450
    %4181 = vmatpush.bf16.msra.mxu0 %v2444
    %4182 = vmatpush.bf16.msra.mxu0 %v2438
    %4183 = vmatmul.bf16.gmra.mxu0 %v71
    %v4184 = vpop.f32.mrf.mxu0
    %v4185 = vadd.f32 %v4172, %v4184
    %v4186 = vpop.f32.mrf.mxu0
    %4187 = vdwg.mxu0
    %4188 = vmatpush.bf16.msra.mxu0 %v2528
    %4189 = vmatpush.bf16.msra.mxu0 %v2522
    %4190 = vmatpush.bf16.msra.mxu0 %v2516
    %4191 = vmatpush.bf16.msra.mxu0 %v2510
    %4192 = vmatpush.bf16.msra.mxu0 %v2504
    %4193 = vmatpush.bf16.msra.mxu0 %v2498
    %4194 = vmatpush.bf16.msra.mxu0 %v2492
    %4195 = vmatpush.bf16.msra.mxu0 %v2486
    %4196 = vmatmul.bf16.gmra.mxu0 %v72
    %v4197 = vpop.f32.mrf.mxu0
    %v4198 = vadd.f32 %v4185, %v4197
    %v4199 = vpop.f32.mrf.mxu0
    %4200 = vdwg.mxu0
    %4201 = vmatpush.bf16.msra.mxu0 %v2576
    %4202 = vmatpush.bf16.msra.mxu0 %v2570
    %4203 = vmatpush.bf16.msra.mxu0 %v2564
    %4204 = vmatpush.bf16.msra.mxu0 %v2558
    %4205 = vmatpush.bf16.msra.mxu0 %v2552
    %4206 = vmatpush.bf16.msra.mxu0 %v2546
    %4207 = vmatpush.bf16.msra.mxu0 %v2540
    %4208 = vmatpush.bf16.msra.mxu0 %v2534
    %4209 = vmatmul.bf16.gmra.mxu0 %v73
    %v4210 = vpop.f32.mrf.mxu0
    %v4211 = vadd.f32 %v4198, %v4210
    %v4212 = vpop.f32.mrf.mxu0
    %4213 = vdwg.mxu0
    %4214 = vmatpush.bf16.msra.mxu0 %v2624
    %4215 = vmatpush.bf16.msra.mxu0 %v2618
    %4216 = vmatpush.bf16.msra.mxu0 %v2612
    %4217 = vmatpush.bf16.msra.mxu0 %v2606
    %4218 = vmatpush.bf16.msra.mxu0 %v2600
    %4219 = vmatpush.bf16.msra.mxu0 %v2594
    %4220 = vmatpush.bf16.msra.mxu0 %v2588
    %4221 = vmatpush.bf16.msra.mxu0 %v2582
    %4222 = vmatmul.bf16.gmra.mxu0 %v74
    %v4223 = vpop.f32.mrf.mxu0
    %v4224 = vadd.f32 %v4211, %v4223
    %v4225 = vpop.f32.mrf.mxu0
    %4226 = vdwg.mxu0
    %4227 = vmatpush.bf16.msra.mxu0 %v2672
    %4228 = vmatpush.bf16.msra.mxu0 %v2666
    %4229 = vmatpush.bf16.msra.mxu0 %v2660
    %4230 = vmatpush.bf16.msra.mxu0 %v2654
    %4231 = vmatpush.bf16.msra.mxu0 %v2648
    %4232 = vmatpush.bf16.msra.mxu0 %v2642
    %4233 = vmatpush.bf16.msra.mxu0 %v2636
    %4234 = vmatpush.bf16.msra.mxu0 %v2630
    %4235 = vmatmul.bf16.gmra.mxu0 %v75
    %v4236 = vpop.f32.mrf.mxu0
    %v4237 = vadd.f32 %v4224, %v4236
    %v4238 = vpop.f32.mrf.mxu0
    %4239 = vdwg.mxu0
    %4240 = vmatpush.bf16.msra.mxu0 %v2720
    %4241 = vmatpush.bf16.msra.mxu0 %v2714
    %4242 = vmatpush.bf16.msra.mxu0 %v2708
    %4243 = vmatpush.bf16.msra.mxu0 %v2702
    %4244 = vmatpush.bf16.msra.mxu0 %v2696
    %4245 = vmatpush.bf16.msra.mxu0 %v2690
    %4246 = vmatpush.bf16.msra.mxu0 %v2684
    %4247 = vmatpush.bf16.msra.mxu0 %v2678
    %4248 = vmatmul.bf16.gmra.mxu0 %v76
    %v4249 = vpop.f32.mrf.mxu0
    %v4250 = vadd.f32 %v4237, %v4249
    %v4251 = vpop.f32.mrf.mxu0
    %4252 = vdwg.mxu0
    %4253 = vmatpush.bf16.msra.mxu0 %v2768
    %4254 = vmatpush.bf16.msra.mxu0 %v2762
    %4255 = vmatpush.bf16.msra.mxu0 %v2756
    %4256 = vmatpush.bf16.msra.mxu0 %v2750
    %4257 = vmatpush.bf16.msra.mxu0 %v2744
    %4258 = vmatpush.bf16.msra.mxu0 %v2738
    %4259 = vmatpush.bf16.msra.mxu0 %v2732
    %4260 = vmatpush.bf16.msra.mxu0 %v2726
    %4261 = vmatmul.bf16.gmra.mxu0 %v77
    %v4262 = vpop.f32.mrf.mxu0
    %v4263 = vadd.f32 %v4250, %v4262
    %v4264 = vpop.f32.mrf.mxu0
    %4265 = vdwg.mxu0
    %4266 = vmatpush.bf16.msra.mxu0 %v2816
    %4267 = vmatpush.bf16.msra.mxu0 %v2810
    %4268 = vmatpush.bf16.msra.mxu0 %v2804
    %4269 = vmatpush.bf16.msra.mxu0 %v2798
    %4270 = vmatpush.bf16.msra.mxu0 %v2792
    %4271 = vmatpush.bf16.msra.mxu0 %v2786
    %4272 = vmatpush.bf16.msra.mxu0 %v2780
    %4273 = vmatpush.bf16.msra.mxu0 %v2774
    %4274 = vmatmul.bf16.gmra.mxu0 %v78
    %v4275 = vpop.f32.mrf.mxu0
    %v4276 = vadd.f32 %v4263, %v4275
    %v4277 = vpop.f32.mrf.mxu0
    %4278 = vdwg.mxu0
    %4279 = vmatpush.bf16.msra.mxu0 %v2864
    %4280 = vmatpush.bf16.msra.mxu0 %v2858
    %4281 = vmatpush.bf16.msra.mxu0 %v2852
    %4282 = vmatpush.bf16.msra.mxu0 %v2846
    %4283 = vmatpush.bf16.msra.mxu0 %v2840
    %4284 = vmatpush.bf16.msra.mxu0 %v2834
    %4285 = vmatpush.bf16.msra.mxu0 %v2828
    %4286 = vmatpush.bf16.msra.mxu0 %v2822
    %4287 = vmatmul.bf16.gmra.mxu0 %v79
    %v4288 = vpop.f32.mrf.mxu0
    %v4289 = vadd.f32 %v4276, %v4288
    %v4290 = vpop.f32.mrf.mxu0
    %4291 = vdwg.mxu0
    %4292 = vmatpush.bf16.msra.mxu0 %v2912
    %4293 = vmatpush.bf16.msra.mxu0 %v2906
    %4294 = vmatpush.bf16.msra.mxu0 %v2900
    %4295 = vmatpush.bf16.msra.mxu0 %v2894
    %4296 = vmatpush.bf16.msra.mxu0 %v2888
    %4297 = vmatpush.bf16.msra.mxu0 %v2882
    %4298 = vmatpush.bf16.msra.mxu0 %v2876
    %4299 = vmatpush.bf16.msra.mxu0 %v2870
    %4300 = vmatmul.bf16.gmra.mxu0 %v80
    %v4301 = vpop.f32.mrf.mxu0
    %v4302 = vadd.f32 %v4289, %v4301
    %v4303 = vpop.f32.mrf.mxu0
    %4304 = vdwg.mxu0
    %4305 = vmatpush.bf16.msra.mxu0 %v2960
    %4306 = vmatpush.bf16.msra.mxu0 %v2954
    %4307 = vmatpush.bf16.msra.mxu0 %v2948
    %4308 = vmatpush.bf16.msra.mxu0 %v2942
    %4309 = vmatpush.bf16.msra.mxu0 %v2936
    %4310 = vmatpush.bf16.msra.mxu0 %v2930
    %4311 = vmatpush.bf16.msra.mxu0 %v2924
    %4312 = vmatpush.bf16.msra.mxu0 %v2918
    %4313 = vmatmul.bf16.gmra.mxu0 %v81
    %v4314 = vpop.f32.mrf.mxu0
    %v4315 = vadd.f32 %v4302, %v4314
    %v4316 = vpop.f32.mrf.mxu0
    %4317 = vdwg.mxu0
    %4318 = vmatpush.bf16.msra.mxu0 %v2433
    %4319 = vmatpush.bf16.msra.mxu0 %v2427
    %4320 = vmatpush.bf16.msra.mxu0 %v2421
    %4321 = vmatpush.bf16.msra.mxu0 %v2415
    %4322 = vmatpush.bf16.msra.mxu0 %v2409
    %4323 = vmatpush.bf16.msra.mxu0 %v2403
    %4324 = vmatpush.bf16.msra.mxu0 %v2397
    %4325 = vmatpush.bf16.msra.mxu0 %v2391
    %4326 = vmatmul.bf16.gmra.mxu0 %v70
    %v4327 = vpop.f32.mrf.mxu0
    %v4328 = vadd.f32 0.0, %v4327
    %v4329 = vpop.f32.mrf.mxu0
    %4330 = vdwg.mxu0
    %4331 = vmatpush.bf16.msra.mxu0 %v2481
    %4332 = vmatpush.bf16.msra.mxu0 %v2475
    %4333 = vmatpush.bf16.msra.mxu0 %v2469
    %4334 = vmatpush.bf16.msra.mxu0 %v2463
    %4335 = vmatpush.bf16.msra.mxu0 %v2457
    %4336 = vmatpush.bf16.msra.mxu0 %v2451
    %4337 = vmatpush.bf16.msra.mxu0 %v2445
    %4338 = vmatpush.bf16.msra.mxu0 %v2439
    %4339 = vmatmul.bf16.gmra.mxu0 %v71
    %v4340 = vpop.f32.mrf.mxu0
    %v4341 = vadd.f32 %v4328, %v4340
    %v4342 = vpop.f32.mrf.mxu0
    %4343 = vdwg.mxu0
    %4344 = vmatpush.bf16.msra.mxu0 %v2529
    %4345 = vmatpush.bf16.msra.mxu0 %v2523
    %4346 = vmatpush.bf16.msra.mxu0 %v2517
    %4347 = vmatpush.bf16.msra.mxu0 %v2511
    %4348 = vmatpush.bf16.msra.mxu0 %v2505
    %4349 = vmatpush.bf16.msra.mxu0 %v2499
    %4350 = vmatpush.bf16.msra.mxu0 %v2493
    %4351 = vmatpush.bf16.msra.mxu0 %v2487
    %4352 = vmatmul.bf16.gmra.mxu0 %v72
    %v4353 = vpop.f32.mrf.mxu0
    %v4354 = vadd.f32 %v4341, %v4353
    %v4355 = vpop.f32.mrf.mxu0
    %4356 = vdwg.mxu0
    %4357 = vmatpush.bf16.msra.mxu0 %v2577
    %4358 = vmatpush.bf16.msra.mxu0 %v2571
    %4359 = vmatpush.bf16.msra.mxu0 %v2565
    %4360 = vmatpush.bf16.msra.mxu0 %v2559
    %4361 = vmatpush.bf16.msra.mxu0 %v2553
    %4362 = vmatpush.bf16.msra.mxu0 %v2547
    %4363 = vmatpush.bf16.msra.mxu0 %v2541
    %4364 = vmatpush.bf16.msra.mxu0 %v2535
    %4365 = vmatmul.bf16.gmra.mxu0 %v73
    %v4366 = vpop.f32.mrf.mxu0
    %v4367 = vadd.f32 %v4354, %v4366
    %v4368 = vpop.f32.mrf.mxu0
    %4369 = vdwg.mxu0
    %4370 = vmatpush.bf16.msra.mxu0 %v2625
    %4371 = vmatpush.bf16.msra.mxu0 %v2619
    %4372 = vmatpush.bf16.msra.mxu0 %v2613
    %4373 = vmatpush.bf16.msra.mxu0 %v2607
    %4374 = vmatpush.bf16.msra.mxu0 %v2601
    %4375 = vmatpush.bf16.msra.mxu0 %v2595
    %4376 = vmatpush.bf16.msra.mxu0 %v2589
    %4377 = vmatpush.bf16.msra.mxu0 %v2583
    %4378 = vmatmul.bf16.gmra.mxu0 %v74
    %v4379 = vpop.f32.mrf.mxu0
    %v4380 = vadd.f32 %v4367, %v4379
    %v4381 = vpop.f32.mrf.mxu0
    %4382 = vdwg.mxu0
    %4383 = vmatpush.bf16.msra.mxu0 %v2673
    %4384 = vmatpush.bf16.msra.mxu0 %v2667
    %4385 = vmatpush.bf16.msra.mxu0 %v2661
    %4386 = vmatpush.bf16.msra.mxu0 %v2655
    %4387 = vmatpush.bf16.msra.mxu0 %v2649
    %4388 = vmatpush.bf16.msra.mxu0 %v2643
    %4389 = vmatpush.bf16.msra.mxu0 %v2637
    %4390 = vmatpush.bf16.msra.mxu0 %v2631
    %4391 = vmatmul.bf16.gmra.mxu0 %v75
    %v4392 = vpop.f32.mrf.mxu0
    %v4393 = vadd.f32 %v4380, %v4392
    %v4394 = vpop.f32.mrf.mxu0
    %4395 = vdwg.mxu0
    %4396 = vmatpush.bf16.msra.mxu0 %v2721
    %4397 = vmatpush.bf16.msra.mxu0 %v2715
    %4398 = vmatpush.bf16.msra.mxu0 %v2709
    %4399 = vmatpush.bf16.msra.mxu0 %v2703
    %4400 = vmatpush.bf16.msra.mxu0 %v2697
    %4401 = vmatpush.bf16.msra.mxu0 %v2691
    %4402 = vmatpush.bf16.msra.mxu0 %v2685
    %4403 = vmatpush.bf16.msra.mxu0 %v2679
    %4404 = vmatmul.bf16.gmra.mxu0 %v76
    %v4405 = vpop.f32.mrf.mxu0
    %v4406 = vadd.f32 %v4393, %v4405
    %v4407 = vpop.f32.mrf.mxu0
    %4408 = vdwg.mxu0
    %4409 = vmatpush.bf16.msra.mxu0 %v2769
    %4410 = vmatpush.bf16.msra.mxu0 %v2763
    %4411 = vmatpush.bf16.msra.mxu0 %v2757
    %4412 = vmatpush.bf16.msra.mxu0 %v2751
    %4413 = vmatpush.bf16.msra.mxu0 %v2745
    %4414 = vmatpush.bf16.msra.mxu0 %v2739
    %4415 = vmatpush.bf16.msra.mxu0 %v2733
    %4416 = vmatpush.bf16.msra.mxu0 %v2727
    %4417 = vmatmul.bf16.gmra.mxu0 %v77
    %v4418 = vpop.f32.mrf.mxu0
    %v4419 = vadd.f32 %v4406, %v4418
    %v4420 = vpop.f32.mrf.mxu0
    %4421 = vdwg.mxu0
    %4422 = vmatpush.bf16.msra.mxu0 %v2817
    %4423 = vmatpush.bf16.msra.mxu0 %v2811
    %4424 = vmatpush.bf16.msra.mxu0 %v2805
    %4425 = vmatpush.bf16.msra.mxu0 %v2799
    %4426 = vmatpush.bf16.msra.mxu0 %v2793
    %4427 = vmatpush.bf16.msra.mxu0 %v2787
    %4428 = vmatpush.bf16.msra.mxu0 %v2781
    %4429 = vmatpush.bf16.msra.mxu0 %v2775
    %4430 = vmatmul.bf16.gmra.mxu0 %v78
    %v4431 = vpop.f32.mrf.mxu0
    %v4432 = vadd.f32 %v4419, %v4431
    %v4433 = vpop.f32.mrf.mxu0
    %4434 = vdwg.mxu0
    %4435 = vmatpush.bf16.msra.mxu0 %v2865
    %4436 = vmatpush.bf16.msra.mxu0 %v2859
    %4437 = vmatpush.bf16.msra.mxu0 %v2853
    %4438 = vmatpush.bf16.msra.mxu0 %v2847
    %4439 = vmatpush.bf16.msra.mxu0 %v2841
    %4440 = vmatpush.bf16.msra.mxu0 %v2835
    %4441 = vmatpush.bf16.msra.mxu0 %v2829
    %4442 = vmatpush.bf16.msra.mxu0 %v2823
    %4443 = vmatmul.bf16.gmra.mxu0 %v79
    %v4444 = vpop.f32.mrf.mxu0
    %v4445 = vadd.f32 %v4432, %v4444
    %v4446 = vpop.f32.mrf.mxu0
    %4447 = vdwg.mxu0
    %4448 = vmatpush.bf16.msra.mxu0 %v2913
    %4449 = vmatpush.bf16.msra.mxu0 %v2907
    %4450 = vmatpush.bf16.msra.mxu0 %v2901
    %4451 = vmatpush.bf16.msra.mxu0 %v2895
    %4452 = vmatpush.bf16.msra.mxu0 %v2889
    %4453 = vmatpush.bf16.msra.mxu0 %v2883
    %4454 = vmatpush.bf16.msra.mxu0 %v2877
    %4455 = vmatpush.bf16.msra.mxu0 %v2871
    %4456 = vmatmul.bf16.gmra.mxu0 %v80
    %v4457 = vpop.f32.mrf.mxu0
    %v4458 = vadd.f32 %v4445, %v4457
    %v4459 = vpop.f32.mrf.mxu0
    %4460 = vdwg.mxu0
    %4461 = vmatpush.bf16.msra.mxu0 %v2961
    %4462 = vmatpush.bf16.msra.mxu0 %v2955
    %4463 = vmatpush.bf16.msra.mxu0 %v2949
    %4464 = vmatpush.bf16.msra.mxu0 %v2943
    %4465 = vmatpush.bf16.msra.mxu0 %v2937
    %4466 = vmatpush.bf16.msra.mxu0 %v2931
    %4467 = vmatpush.bf16.msra.mxu0 %v2925
    %4468 = vmatpush.bf16.msra.mxu0 %v2919
    %4469 = vmatmul.bf16.gmra.mxu0 %v81
    %v4470 = vpop.f32.mrf.mxu0
    %v4471 = vadd.f32 %v4458, %v4470
    %v4472 = vpop.f32.mrf.mxu0
    %4473 = vdwg.mxu0
    %v4474 = vrot.slane %v3691, 4
    %v4475 = vadd.f32 %v3691, %v4474
    %v4476 = vrot.slane %v4475, 2
    %v4477 = vadd.f32 %v4475, %v4476
    %v4478 = vrot.slane %v4477, 1
    %v4479 = vadd.f32 %v4477, %v4478
    %v4480 = vrot.slane %v3847, 4
    %v4481 = vadd.f32 %v3847, %v4480
    %v4482 = vrot.slane %v4481, 2
    %v4483 = vadd.f32 %v4481, %v4482
    %v4484 = vrot.slane %v4483, 1
    %v4485 = vadd.f32 %v4483, %v4484
    %v4486 = vrot.slane %v4003, 4
    %v4487 = vadd.f32 %v4003, %v4486
    %v4488 = vrot.slane %v4487, 2
    %v4489 = vadd.f32 %v4487, %v4488
    %v4490 = vrot.slane %v4489, 1
    %v4491 = vadd.f32 %v4489, %v4490
    %v4492 = vrot.slane %v4159, 4
    %v4493 = vadd.f32 %v4159, %v4492
    %v4494 = vrot.slane %v4493, 2
    %v4495 = vadd.f32 %v4493, %v4494
    %v4496 = vrot.slane %v4495, 1
    %v4497 = vadd.f32 %v4495, %v4496
    %v4498 = vrot.slane %v4315, 4
    %v4499 = vadd.f32 %v4315, %v4498
    %v4500 = vrot.slane %v4499, 2
    %v4501 = vadd.f32 %v4499, %v4500
    %v4502 = vrot.slane %v4501, 1
    %v4503 = vadd.f32 %v4501, %v4502
    %v4504 = vrot.slane %v4471, 4
    %v4505 = vadd.f32 %v4471, %v4504
    %v4506 = vrot.slane %v4505, 2
    %v4507 = vadd.f32 %v4505, %v4506
    %v4508 = vrot.slane %v4507, 1
    %v4509 = vadd.f32 %v4507, %v4508
    %v4510 = vmul.f32 %v4479, 0.125
    %v4511 = vmul.f32 %v4485, 0.125
    %v4512 = vmul.f32 %v4491, 0.125
    %v4513 = vmul.f32 %v4497, 0.125
    %v4514 = vmul.f32 %v4503, 0.125
    %v4515 = vmul.f32 %v4509, 0.125
    %v4516 = vsub.f32 %v3691, %v4510
    %v4517 = vsub.f32 %v3847, %v4511
    %v4518 = vsub.f32 %v4003, %v4512
    %v4519 = vsub.f32 %v4159, %v4513
    %v4520 = vsub.f32 %v4315, %v4514
    %v4521 = vsub.f32 %v4471, %v4515
    %v4522 = vmul.f32 %v4516, %v4516
    %v4523 = vmul.f32 %v4517, %v4517
    %v4524 = vmul.f32 %v4518, %v4518
    %v4525 = vmul.f32 %v4519, %v4519
    %v4526 = vmul.f32 %v4520, %v4520
    %v4527 = vmul.f32 %v4521, %v4521
    %v4528 = vrot.slane %v4522, 4
    %v4529 = vadd.f32 %v4522, %v4528
    %v4530 = vrot.slane %v4529, 2
    %v4531 = vadd.f32 %v4529, %v4530
    %v4532 = vrot.slane %v4531, 1
    %v4533 = vadd.f32 %v4531, %v4532
    %v4534 = vrot.slane %v4523, 4
    %v4535 = vadd.f32 %v4523, %v4534
    %v4536 = vrot.slane %v4535, 2
    %v4537 = vadd.f32 %v4535, %v4536
    %v4538 = vrot.slane %v4537, 1
    %v4539 = vadd.f32 %v4537, %v4538
    %v4540 = vrot.slane %v4524, 4
    %v4541 = vadd.f32 %v4524, %v4540
    %v4542 = vrot.slane %v4541, 2
    %v4543 = vadd.f32 %v4541, %v4542
    %v4544 = vrot.slane %v4543, 1
    %v4545 = vadd.f32 %v4543, %v4544
    %v4546 = vrot.slane %v4525, 4
    %v4547 = vadd.f32 %v4525, %v4546
    %v4548 = vrot.slane %v4547, 2
    %v4549 = vadd.f32 %v4547, %v4548
    %v4550 = vrot.slane %v4549, 1
    %v4551 = vadd.f32 %v4549, %v4550
    %v4552 = vrot.slane %v4526, 4
    %v4553 = vadd.f32 %v4526, %v4552
    %v4554 = vrot.slane %v4553, 2
    %v4555 = vadd.f32 %v4553, %v4554
    %v4556 = vrot.slane %v4555, 1
    %v4557 = vadd.f32 %v4555, %v4556
    %v4558 = vrot.slane %v4527, 4
    %v4559 = vadd.f32 %v4527, %v4558
    %v4560 = vrot.slane %v4559, 2
    %v4561 = vadd.f32 %v4559, %v4560
    %v4562 = vrot.slane %v4561, 1
    %v4563 = vadd.f32 %v4561, %v4562
    %v4564 = vmul.f32 %v4533, 0.125
    %v4565 = vmul.f32 %v4539, 0.125
    %v4566 = vmul.f32 %v4545, 0.125
    %v4567 = vmul.f32 %v4551, 0.125
    %v4568 = vmul.f32 %v4557, 0.125
    %v4569 = vmul.f32 %v4563, 0.125
    %v4570 = vld [vmem:[#allocation7] ss:$2 sm:$0x3f]
    %v4571 = vadd.f32 %v4564, 1e-05
    %v4572 = vadd.f32 %v4565, 1e-05
    %v4573 = vadd.f32 %v4566, 1e-05
    %v4574 = vadd.f32 %v4567, 1e-05
    %v4575 = vadd.f32 %v4568, 1e-05
    %v4576 = vadd.f32 %v4569, 1e-05
    %v4577 = vrsqrt.pop %v4571
    %v4578 = vmul.f32 %v4577, %v4571
    %v4579 = vmul.f32 %v4578, %v4577
    %v4580 = vmul.f32 0.5, %v4579
    %v4581 = vsub.f32 1.5, %v4580
    %v4582 = vmul.f32 %v4577, %v4581
    %vm4583 = vweird.f32 %v4571
    %vm4584 = vweird.f32 %v4577
    %vm4585 = vmor %vm4583, %vm4584
    %v4586 = vsel %vm4585, %v4577, %v4582
    %v4587 = vrsqrt.pop %v4572
    %v4588 = vmul.f32 %v4587, %v4572
    %v4589 = vmul.f32 %v4588, %v4587
    %v4590 = vmul.f32 0.5, %v4589
    %v4591 = vsub.f32 1.5, %v4590
    %v4592 = vmul.f32 %v4587, %v4591
    %vm4593 = vweird.f32 %v4572
    %vm4594 = vweird.f32 %v4587
    %vm4595 = vmor %vm4593, %vm4594
    %v4596 = vsel %vm4595, %v4587, %v4592
    %v4597 = vrsqrt.pop %v4573
    %v4598 = vmul.f32 %v4597, %v4573
    %v4599 = vmul.f32 %v4598, %v4597
    %v4600 = vmul.f32 0.5, %v4599
    %v4601 = vsub.f32 1.5, %v4600
    %v4602 = vmul.f32 %v4597, %v4601
    %vm4603 = vweird.f32 %v4573
    %vm4604 = vweird.f32 %v4597
    %vm4605 = vmor %vm4603, %vm4604
    %v4606 = vsel %vm4605, %v4597, %v4602
    %v4607 = vrsqrt.pop %v4574
    %v4608 = vmul.f32 %v4607, %v4574
    %v4609 = vmul.f32 %v4608, %v4607
    %v4610 = vmul.f32 0.5, %v4609
    %v4611 = vsub.f32 1.5, %v4610
    %v4612 = vmul.f32 %v4607, %v4611
    %vm4613 = vweird.f32 %v4574
    %vm4614 = vweird.f32 %v4607
    %vm4615 = vmor %vm4613, %vm4614
    %v4616 = vsel %vm4615, %v4607, %v4612
    %v4617 = vrsqrt.pop %v4575
    %v4618 = vmul.f32 %v4617, %v4575
    %v4619 = vmul.f32 %v4618, %v4617
    %v4620 = vmul.f32 0.5, %v4619
    %v4621 = vsub.f32 1.5, %v4620
    %v4622 = vmul.f32 %v4617, %v4621
    %vm4623 = vweird.f32 %v4575
    %vm4624 = vweird.f32 %v4617
    %vm4625 = vmor %vm4623, %vm4624
    %v4626 = vsel %vm4625, %v4617, %v4622
    %v4627 = vrsqrt.pop %v4576
    %v4628 = vmul.f32 %v4627, %v4576
    %v4629 = vmul.f32 %v4628, %v4627
    %v4630 = vmul.f32 0.5, %v4629
    %v4631 = vsub.f32 1.5, %v4630
    %v4632 = vmul.f32 %v4627, %v4631
    %vm4633 = vweird.f32 %v4576
    %vm4634 = vweird.f32 %v4627
    %vm4635 = vmor %vm4633, %vm4634
    %v4636 = vsel %vm4635, %v4627, %v4632
    %v4643 = vrot.slane %v4596, 7
    %v4644 = vrot.slane %v4606, 6
    %v4645 = vrot.slane %v4616, 5
    %v4646 = vrot.slane %v4626, 4
    %v4647 = vrot.slane %v4636, 3
    %vm4648 = vcmask 1040384
    %v4649 = vsel %vm4648, %v4586, %v4643
    %vm4650 = vcmask 1041408
    %v4651 = vsel %vm4650, %v4649, %v4644
    %vm4652 = vcmask 1043459
    %v4653 = vsel %vm4652, %v4645, %v4646
    %vm4654 = vcmask 1044483
    %v4655 = vsel %vm4654, %v4653, %v4647
    %vm4656 = vcmask 1042432
    %v4657 = vsel %vm4656, %v4651, %v4655
    %v4659 = vmul.f32 %v4570, %v4657
    %v4661 = vperm.slane %v4659, 0
    %v4662 = vperm.slane %v4659, 1
    %v4663 = vperm.slane %v4659, 2
    %v4664 = vperm.slane %v4659, 3
    %v4665 = vperm.slane %v4659, 4
    %v4666 = vperm.slane %v4659, 5
    %v4673 = vmul.f32 %v4516, %v4661
    %v4674 = vmul.f32 %v4517, %v4662
    %v4675 = vmul.f32 %v4518, %v4663
    %v4676 = vmul.f32 %v4519, %v4664
    %v4677 = vmul.f32 %v4520, %v4665
    %v4678 = vmul.f32 %v4521, %v4666
    %s4679 = scalar_lea.vmem [#allocation7], 1
    %v4680 = vld [vmem:[%s4679] ss:$2 sm:$0x3f]
    %v4682 = vperm.slane %v4680, 0
    %v4683 = vperm.slane %v4680, 1
    %v4684 = vperm.slane %v4680, 2
    %v4685 = vperm.slane %v4680, 3
    %v4686 = vperm.slane %v4680, 4
    %v4687 = vperm.slane %v4680, 5
    %v4694 = vadd.f32 %v4673, %v4682
    %v4695 = vadd.f32 %v4674, %v4683
    %v4696 = vadd.f32 %v4675, %v4684
    %v4697 = vadd.f32 %v4676, %v4685
    %v4698 = vadd.f32 %v4677, %v4686
    %v4699 = vadd.f32 %v4678, %v4687
    %v4700 = vmax.f32 %v4694, 0.0
    %v4701 = vmax.f32 %v4695, 0.0
    %v4702 = vmax.f32 %v4696, 0.0
    %v4703 = vmax.f32 %v4697, 0.0
    %v4704 = vmax.f32 %v4698, 0.0
    %v4705 = vmax.f32 %v4699, 0.0
    %4706 = vst [vmem:[#allocation8] sm:$0xff] %v4700
    %4707 = vst [vmem:[#allocation8 + $0x8] sm:$0xff] %v4701
    %4708 = vst [vmem:[#allocation8 + $0x10] sm:$0xff] %v4702
    %4709 = vst [vmem:[#allocation8 + $0x18] sm:$0xff] %v4703
    %4710 = vst [vmem:[#allocation8 + $0x20] sm:$0xff] %v4704
    %4711 = vst [vmem:[#allocation8 + $0x28] sm:$0xff] %v4705
    // Predicated region
    $region26: #{tpu_custom_call.1} parent=1 // pred_check
      _
    $region27: #{tpu_custom_call.1} parent=1 // pred_check_branch
      %4713 = sbr.rel (0) target = $region29
    $region28: #{tpu_custom_call.1} parent=1 // pred_region
      %4715 = vsyncadd [#allocation4], 0
      %s4717 = sshll.u32 [#allocation8], 4
      %s4718 = int_to_ptr.vmem [resolvable:$true] %s4717
      %s4719 = sshll.u32 %s3, 4
      %s4720 = int_to_ptr.hbm [resolvable:$true] %s4719
      %4722 = dma.vmem_to_hbm [thread:$0]  %s4718, 768, %s4720, [#allocation4]
    $region29: #{tpu_custom_call.1} parent=1 // pred_fallthru
      _
    // Predicated region
    $region30: #{tpu_custom_call.1} parent=1 // pred_check
      _
    $region31: #{tpu_custom_call.1} parent=1 // pred_check_branch
      %4724 = sbr.rel (0) target = $region33
    $region32: #{tpu_custom_call.1} parent=1 // pred_region
      %4726 = dma.done [#allocation4], 768
    $region33: #{tpu_custom_call.1} parent=1 // pred_fallthru
      _
    %4727 = vsyncpa [#allocation3], 1
    %4728 = vsyncpa [#allocation6], 1
    %4729 = vsyncpa [#allocation4], 1

</llo_original>
